<compile_context>
chip_gen: v5e
topology: v5e:2x2
jax: 0.10.0
libtpu: 0.0.40
codegen_flags: <defaults>
</compile_context>

<pallas_src>
import functools

import jax
import jax.numpy as jnp
import numpy as np
from jax import lax
from jax.experimental import pallas as pl
from jax.experimental.pallas import tpu as pltpu

EPS = 1e-5  # PyTorch LayerNorm default eps


# ----------------------------- in-kernel helpers ------------------------------
def _erf(x):
    # Abramowitz & Stegun 7.1.26 polynomial (|err| < 1.5e-7).  The divide is done with an
    # approximate reciprocal on the EUP slot (idle in the FF elementwise region).
    a1, a2, a3, a4, a5 = 0.254829592, -0.284496736, 1.421413741, -1.453152027, 1.061405429
    p = 0.3275911
    ax = jnp.abs(x)
    t = pl.reciprocal(1.0 + p * ax, approx=True)
    poly = ((((a5 * t + a4) * t + a3) * t + a2) * t + a1) * t
    y = 1.0 - poly * jnp.exp(-ax * ax)
    return jnp.where(x >= 0, y, -y)


def _layernorm(x, gamma, beta):
    mu = jnp.mean(x, axis=-1, keepdims=True)
    var = jnp.mean((x - mu) ** 2, axis=-1, keepdims=True)
    return (x - mu) * lax.rsqrt(var + EPS) * gamma + beta


# --------------------------------- kernels ------------------------------------
def layer_kernel(xq_ref, xf_ref,
                 a_ln_g_ref, a_ln_b_ref, wq_ref, wkv_ref,
                 rw_ref, rg_ref, rb_ref, wout_ref, bout_ref,
                 f_ln_g_ref, f_ln_b_ref, w1_ref, b1_ref, w2_ref, b2_ref,
                 o_ref,
                 mixed_ref,
                 *, heads, dim_head):
    """One transformer layer for one (batch, query-tile) grid step."""
    inner = heads * dim_head
    inv_h = 1.0 / heads
    bf16 = jnp.bfloat16

    xq = xq_ref[0].astype(jnp.float32)            # (TQ, DIM) query rows / residual
    xf = xf_ref[0].astype(jnp.float32)            # (N, DIM)  all rows (for K/V)

    # ------------------------- attention branch (PreNorm) ---------------------
    xq_n = _layernorm(xq, a_ln_g_ref[...], a_ln_b_ref[...])
    xf_n = _layernorm(xf, a_ln_g_ref[...], a_ln_b_ref[...])

    # Projections on the MXU: bf16 operands, f32 accumulation, then kept bf16.
    # (softmax scale is baked into wq at param-prep time.)
    q = jnp.dot(xq_n.astype(bf16), wq_ref[...],
                preferred_element_type=jnp.float32).astype(bf16)        # (TQ, inner)
    kv = jnp.dot(xf_n.astype(bf16), wkv_ref[...],
                 preferred_element_type=jnp.float32).astype(bf16)       # (N, 2*inner)
    k = kv[:, :inner]
    v = kv[:, inner:]

    # Hoist all re-attention scalars out of the loops (SMEM scalar reads once).
    rw = [[rw_ref[h * heads + g] for g in range(heads)] for h in range(heads)]
    row_mean_w = [sum(rw[h]) * inv_h for h in range(heads)]
    rgain = [rg_ref[g] for g in range(heads)]
    rbias = [rb_ref[g] for g in range(heads)]

    # Per-head softmax + on-the-fly re-attention mixing into the (H, TQ, N) scratch,
    # with the head-LayerNorm mean accumulated on the fly (saves one full read pass).
    # TODO(synk): convert to lax.fori_loop for large head counts (dynamic lane slices).
    mean_h = None
    for h in range(heads):
        q_h = q[:, h * dim_head:(h + 1) * dim_head]
        k_h = k[:, h * dim_head:(h + 1) * dim_head]
        dots = lax.dot_general(q_h, k_h, (((1,), (1,)), ((), ())),
                               preferred_element_type=jnp.float32)      # (TQ, N)
        dots = dots - jnp.max(dots, axis=-1, keepdims=True)
        e = jnp.exp(dots)
        attn_h = e * pl.reciprocal(jnp.sum(e, axis=-1, keepdims=True), approx=True)
        mean_h = attn_h * row_mean_w[h] if h == 0 else mean_h + attn_h * row_mean_w[h]
        for g in range(heads):
            if h == 0:
                mixed_ref[g] = rw[h][g] * attn_h
            else:
                mixed_ref[g] = mixed_ref[g] + rw[h][g] * attn_h

    # LayerNorm over the head axis (per (i, j)): variance in one read pass.
    var_h = (mixed_ref[0] - mean_h) ** 2
    for g in range(1, heads):
        var_h = var_h + (mixed_ref[g] - mean_h) ** 2
    inv = lax.rsqrt(var_h * inv_h + EPS)

    # Per-head (A_g @ V_g) @ Wout_g accumulated into an f32 (TQ, DIM) accumulator
    # (no (TQ, inner) staging scratch / masked partial stores).
    acc = None
    for g in range(heads):
        a_g = (mixed_ref[g] - mean_h) * (inv * rgain[g]) + rbias[g]      # (TQ, N) f32
        v_g = v[:, g * dim_head:(g + 1) * dim_head]                      # (N, dh) bf16
        av = jnp.dot(a_g.astype(bf16), v_g, preferred_element_type=jnp.float32)
        contrib = jnp.dot(av.astype(bf16),
                          wout_ref[g * dim_head:(g + 1) * dim_head, :],
                          preferred_element_type=jnp.float32)
        acc = contrib if g == 0 else acc + contrib

    x1 = acc + bout_ref[...] + xq                                        # residual

    # ------------------------- feed-forward branch ----------------------------
    xn2 = _layernorm(x1, f_ln_g_ref[...], f_ln_b_ref[...])
    hdn = jnp.dot(xn2.astype(bf16), w1_ref[...],
                  preferred_element_type=jnp.float32) + b1_ref[...]
    hdn = 0.5 * hdn * (1.0 + _erf(hdn * (2.0 ** -0.5)))                  # exact (erf) GELU
    y = jnp.dot(hdn.astype(bf16), w2_ref[...],
                preferred_element_type=jnp.float32) + b2_ref[...]
    o_ref[0] = (y + x1).astype(o_ref.dtype)                              # residual


def ln_kernel(x_ref, g_ref, b_ref, o_ref):
    x = x_ref[0].astype(jnp.float32)
    o_ref[0] = _layernorm(x, g_ref[...], b_ref[...]).astype(o_ref.dtype)


# --------------------------------- wrappers ------------------------------------
_VMEM_LIMIT = None


def _vmem_limit_bytes():
    """Generation-aware VMEM limit (~80% of physical), with a safe fallback."""
    global _VMEM_LIMIT
    if _VMEM_LIMIT is None:
        try:
            cap = getattr(pltpu.get_tpu_info(), "vmem_capacity_bytes", None)
            _VMEM_LIMIT = int(cap * 0.8) if cap else 48 * 1024 * 1024
        except Exception:
            _VMEM_LIMIT = 48 * 1024 * 1024
    return _VMEM_LIMIT


def _pick_tq(n):
    """Query-tile size: MXU-friendly multiple of 8 (prefer 256/128), else full N."""
    for cand in (256, 128):
        if n % cand == 0:
            return cand
    return n


_SINGLE_BUF_WEIGHTS = True  # flipped off automatically if pl.Buffered(1) is unsupported


def _fused_layer_call(x, a, f, heads, dim_head, single_buf):
    B, N, DIM = x.shape
    inner = heads * dim_head
    MLP = f["w1"].shape[1]
    bf = jnp.bfloat16
    TQ = _pick_tq(N)
    NQ = N // TQ
    scale = dim_head ** -0.5

    # Weight prep: bake softmax scale into Q columns, split QKV, store matmul weights bf16.
    w_q = (a["w_qkv"][:, :inner] * scale).astype(bf)
    w_kv = a["w_qkv"][:, inner:].astype(bf)

    def wspec(shape):
        nd = len(shape)
        idx = lambda b, qi, _n=nd: (0,) * _n
        if single_buf:
            # Constant-index weights: double buffering is pure VMEM waste.
            return pl.BlockSpec(shape, idx, pipeline_mode=pl.Buffered(1))
        return pl.BlockSpec(shape, idx)

    smem = pl.BlockSpec(memory_space=pltpu.MemorySpace.SMEM)
    kern = functools.partial(layer_kernel, heads=heads, dim_head=dim_head)

    return pl.pallas_call(
        kern,
        out_shape=jax.ShapeDtypeStruct((B, N, DIM), x.dtype),
        grid=(B, NQ),
        in_specs=[
            pl.BlockSpec((1, TQ, DIM), lambda b, qi: (b, qi, 0)),   # x query tile
            pl.BlockSpec((1, N, DIM), lambda b, qi: (b, 0, 0)),     # x full (for K/V)
            wspec((1, DIM)), wspec((1, DIM)),                       # attn LN gamma/beta
            wspec((DIM, inner)),                                    # w_q (scale baked, bf16)
            wspec((DIM, 2 * inner)),                                # w_kv (bf16)
            smem, smem, smem,                                       # reattn w(flat)/gamma/beta
            wspec((inner, DIM)), wspec((1, DIM)),                   # out proj weight / bias
            wspec((1, DIM)), wspec((1, DIM)),                       # ff LN gamma/beta
            wspec((DIM, MLP)), wspec((1, MLP)),                     # ff w1 (bf16), b1
            wspec((MLP, DIM)), wspec((1, DIM)),                     # ff w2 (bf16), b2
        ],
        out_specs=pl.BlockSpec((1, TQ, DIM), lambda b, qi: (b, qi, 0)),
        scratch_shapes=[pltpu.VMEM((heads, TQ, N), jnp.float32)],   # mixed attention maps
        compiler_params=pltpu.CompilerParams(
            dimension_semantics=("parallel", "parallel"),
            vmem_limit_bytes=_vmem_limit_bytes()),
    )(x, x,
      a["ln_g"], a["ln_b"], w_q, w_kv,
      a["reattn_w"].reshape(-1), a["reattn_g"], a["reattn_b"],
      a["w_out"].astype(bf), a["b_out"],
      f["ln_g"], f["ln_b"], f["w1"].astype(bf), f["b1"], f["w2"].astype(bf), f["b2"])


def fused_layer_block(x, a, f, heads, dim_head):
    """One transformer layer (attn + FF fused) as a single pallas_call over grid=(B, NQ)."""
    global _SINGLE_BUF_WEIGHTS
    if _SINGLE_BUF_WEIGHTS:
        try:
            return _fused_layer_call(x, a, f, heads, dim_head, True)
        except Exception:
            _SINGLE_BUF_WEIGHTS = False  # pl.Buffered(1) unsupported here -> default buffering
    return _fused_layer_call(x, a, f, heads, dim_head, False)


def final_layernorm(x, g, b):
    B, N, DIM = x.shape
    return pl.pallas_call(
        ln_kernel,
        out_shape=jax.ShapeDtypeStruct((B, N, DIM), x.dtype),
        grid=(B,),
        in_specs=[pl.BlockSpec((1, N, DIM), lambda i: (i, 0, 0)),
                  pl.BlockSpec((1, DIM), lambda i: (0, 0)),
                  pl.BlockSpec((1, DIM), lambda i: (0, 0))],
        out_specs=pl.BlockSpec((1, N, DIM), lambda i: (i, 0, 0)),
        compiler_params=pltpu.CompilerParams(dimension_semantics=("parallel",)),
    )(x, g, b)


def transformer_forward(x, params, heads, dim_head):
    for layer in params["layers"]:
        x = fused_layer_block(x, layer["attn"], layer["ff"], heads, dim_head)
    return final_layernorm(x, params["norm_g"], params["norm_b"])


# ------------------------------ parameter setup --------------------------------
def init_params(key, dim, depth, heads, dim_head, mlp_dim):
    inner = heads * dim_head
    layers = []
    for _ in range(depth):
        key, *ks = jax.random.split(key, 9)
        attn = {
            "ln_g": jnp.ones((1, dim), jnp.float32),
            "ln_b": jnp.zeros((1, dim), jnp.float32),
            "w_qkv": jax.random.normal(ks[0], (dim, 3 * inner), jnp.float32) * 0.05,
            "reattn_w": jax.random.normal(ks[1], (heads, heads), jnp.float32),
            "reattn_g": jnp.ones((heads,), jnp.float32),
            "reattn_b": jnp.zeros((heads,), jnp.float32),
            "w_out": jax.random.normal(ks[2], (inner, dim), jnp.float32) * 0.05,
            "b_out": jax.random.normal(ks[3], (1, dim), jnp.float32) * 0.05,
        }
        ff = {
            "ln_g": jnp.ones((1, dim), jnp.float32),
            "ln_b": jnp.zeros((1, dim), jnp.float32),
            "w1": jax.random.normal(ks[4], (dim, mlp_dim), jnp.float32) * 0.05,
            "b1": jax.random.normal(ks[5], (1, mlp_dim), jnp.float32) * 0.05,
            "w2": jax.random.normal(ks[6], (mlp_dim, dim), jnp.float32) * 0.05,
            "b2": jax.random.normal(ks[7], (1, dim), jnp.float32) * 0.05,
        }
        layers.append({"attn": attn, "ff": ff})
    return {"layers": layers,
            "norm_g": jnp.ones((1, dim), jnp.float32),
            "norm_b": jnp.zeros((1, dim), jnp.float32)}


# --------------------------- pure-JAX reference check ---------------------------
def reference_forward(x, params, heads, dim_head):
    def ln(t, g, b):
        mu = t.mean(-1, keepdims=True)
        var = ((t - mu) ** 2).mean(-1, keepdims=True)
        return (t - mu) / jnp.sqrt(var + EPS) * g.reshape(-1) + b.reshape(-1)

    inner = heads * dim_head
    for layer in params["layers"]:
        a = layer["attn"]
        xn = ln(x, a["ln_g"], a["ln_b"])
        qkv = jnp.einsum("bnd,df->bnf", xn, a["w_qkv"], precision="highest")
        q, k, v = jnp.split(qkv, 3, axis=-1)
        sp = lambda t: t.reshape(t.shape[0], t.shape[1], heads, dim_head).transpose(0, 2, 1, 3)
        q, k, v = map(sp, (q, k, v))
        dots = jnp.einsum("bhid,bhjd->bhij", q, k, precision="highest") * dim_head ** -0.5
        attn = jax.nn.softmax(dots, axis=-1)
        attn = jnp.einsum("bhij,hg->bgij", attn, a["reattn_w"], precision="highest")
        at = attn.transpose(0, 2, 3, 1)
        mu = at.mean(-1, keepdims=True)
        var = ((at - mu) ** 2).mean(-1, keepdims=True)
        at = (at - mu) / jnp.sqrt(var + EPS) * a["reattn_g"] + a["reattn_b"]
        attn = at.transpose(0, 3, 1, 2)
        out = jnp.einsum("bhij,bhjd->bhid", attn, v, precision="highest")
        out = out.transpose(0, 2, 1, 3).reshape(x.shape[0], x.shape[1], inner)
        out = jnp.einsum("bnf,fd->bnd", out, a["w_out"], precision="highest") + a["b_out"].reshape(-1)
        x = out + x

        f = layer["ff"]
        xn = ln(x, f["ln_g"], f["ln_b"])
        h = jnp.einsum("bnd,dm->bnm", xn, f["w1"], precision="highest") + f["b1"].reshape(-1)
        h = 0.5 * h * (1.0 + lax.erf(h / jnp.sqrt(2.0)))
        y = jnp.einsum("bnm,md->bnd", h, f["w2"], precision="highest") + f["b2"].reshape(-1)
        x = y + x
    return ln(x, params["norm_g"], params["norm_b"])


# ------------------------------------ main --------------------------------------
if __name__ == "__main__":
    B, N, DIM = 2, 8, 32
    HEADS, DIM_HEAD, MLP_DIM, DEPTH = 4, 8, 64, 2

    key = jax.random.PRNGKey(0)
    kx, kp = jax.random.split(key)
    x = jax.random.normal(kx, (B, N, DIM), jnp.float32)
    params = init_params(kp, DIM, DEPTH, HEADS, DIM_HEAD, MLP_DIM)

    ref = jax.block_until_ready(reference_forward(x, params, HEADS, DIM_HEAD))

    out = transformer_forward(x, params, HEADS, DIM_HEAD)
    out = jax.block_until_ready(out)
    assert out.shape == (B, N, DIM)

    # Tolerance accounts for bf16 MXU operands (f32 accumulation), approx reciprocals and
    # the polynomial erf vs. the f32/exact-erf reference.
    np.testing.assert_allclose(np.asarray(out), np.asarray(ref), atol=5e-2, rtol=5e-2)

    print("KERNEL_OK")
</pallas_src>

<mosaic_0001>
module attributes {stable_mosaic.version = 11 : i64} {
  func.func @layer_kernel(%arg0: i32, %arg1: i32, %arg2: memref<1x8x32xf32, #tpu.memory_space<vmem>>, %arg3: memref<1x8x32xf32, #tpu.memory_space<vmem>>, %arg4: memref<1x32xf32, #tpu.memory_space<vmem>>, %arg5: memref<1x32xf32, #tpu.memory_space<vmem>>, %arg6: memref<32x32xbf16, #tpu.memory_space<vmem>>, %arg7: memref<32x64xbf16, #tpu.memory_space<vmem>>, %arg8: memref<16xf32, #tpu.memory_space<smem>>, %arg9: memref<4xf32, #tpu.memory_space<smem>>, %arg10: memref<4xf32, #tpu.memory_space<smem>>, %arg11: memref<32x32xbf16, #tpu.memory_space<vmem>>, %arg12: memref<1x32xf32, #tpu.memory_space<vmem>>, %arg13: memref<1x32xf32, #tpu.memory_space<vmem>>, %arg14: memref<1x32xf32, #tpu.memory_space<vmem>>, %arg15: memref<32x64xbf16, #tpu.memory_space<vmem>>, %arg16: memref<1x64xf32, #tpu.memory_space<vmem>>, %arg17: memref<64x32xbf16, #tpu.memory_space<vmem>>, %arg18: memref<1x32xf32, #tpu.memory_space<vmem>>, %arg19: memref<1x8x32xf32, #tpu.memory_space<vmem>>, %arg20: memref<4x8x8xf32, #tpu.memory_space<vmem>>) attributes {dimension_semantics = [#tpu.dimension_semantics<parallel>, #tpu.dimension_semantics<parallel>], iteration_bounds = array<i64: 2, 1>, scalar_prefetch = 0 : i64, scratch_operands = 1 : i64, tpu.core_type = #tpu.core_type<tc>, window_params = [{transform_indices = @transform_0, window_bounds = array<i64: 1, 8, 32>}, {transform_indices = @transform_1, window_bounds = array<i64: 1, 8, 32>}, {pipeline_mode = #tpu.pipeline_mode<synchronous>, transform_indices = @transform_2, window_bounds = array<i64: 1, 32>}, {pipeline_mode = #tpu.pipeline_mode<synchronous>, transform_indices = @transform_3, window_bounds = array<i64: 1, 32>}, {pipeline_mode = #tpu.pipeline_mode<synchronous>, transform_indices = @transform_4, window_bounds = array<i64: 32, 32>}, {pipeline_mode = #tpu.pipeline_mode<synchronous>, transform_indices = @transform_5, window_bounds = array<i64: 32, 64>}, {transform_indices = @transform_6, window_bounds = array<i64: 16>}, {transform_indices = @transform_7, window_bounds = array<i64: 4>}, {transform_indices = @transform_8, window_bounds = array<i64: 4>}, {pipeline_mode = #tpu.pipeline_mode<synchronous>, transform_indices = @transform_9, window_bounds = array<i64: 32, 32>}, {pipeline_mode = #tpu.pipeline_mode<synchronous>, transform_indices = @transform_10, window_bounds = array<i64: 1, 32>}, {pipeline_mode = #tpu.pipeline_mode<synchronous>, transform_indices = @transform_11, window_bounds = array<i64: 1, 32>}, {pipeline_mode = #tpu.pipeline_mode<synchronous>, transform_indices = @transform_12, window_bounds = array<i64: 1, 32>}, {pipeline_mode = #tpu.pipeline_mode<synchronous>, transform_indices = @transform_13, window_bounds = array<i64: 32, 64>}, {pipeline_mode = #tpu.pipeline_mode<synchronous>, transform_indices = @transform_14, window_bounds = array<i64: 1, 64>}, {pipeline_mode = #tpu.pipeline_mode<synchronous>, transform_indices = @transform_15, window_bounds = array<i64: 64, 32>}, {pipeline_mode = #tpu.pipeline_mode<synchronous>, transform_indices = @transform_16, window_bounds = array<i64: 1, 32>}, {transform_indices = @transform_17, window_bounds = array<i64: 1, 8, 32>}]} {
    %c0 = arith.constant 0 : index
    %c0_0 = arith.constant 0 : index
    %c0_1 = arith.constant 0 : index
    %0 = vector.load %arg2[%c0, %c0_0, %c0_1] : memref<1x8x32xf32, #tpu.memory_space<vmem>>, vector<1x8x32xf32>
    %1 = vector.shape_cast %0 : vector<1x8x32xf32> to vector<8x32xf32>
    %c0_2 = arith.constant 0 : index
    %c0_3 = arith.constant 0 : index
    %c0_4 = arith.constant 0 : index
    %2 = vector.load %arg3[%c0_2, %c0_3, %c0_4] : memref<1x8x32xf32, #tpu.memory_space<vmem>>, vector<1x8x32xf32>
    %3 = vector.shape_cast %2 : vector<1x8x32xf32> to vector<8x32xf32>
    %c0_5 = arith.constant 0 : index
    %c0_6 = arith.constant 0 : index
    %4 = vector.load %arg4[%c0_5, %c0_6] : memref<1x32xf32, #tpu.memory_space<vmem>>, vector<1x32xf32>
    %c0_7 = arith.constant 0 : index
    %c0_8 = arith.constant 0 : index
    %5 = vector.load %arg5[%c0_7, %c0_8] : memref<1x32xf32, #tpu.memory_space<vmem>>, vector<1x32xf32>
    %cst = arith.constant dense<0.000000e+00> : vector<8xf32>
    %6 = vector.multi_reduction <add>, %1, %cst [1] : vector<8x32xf32> to vector<8xf32>
    %7 = vector.shape_cast %6 : vector<8xf32> to vector<8x1xf32>
    %cst_9 = arith.constant 3.200000e+01 : f32
    %8 = vector.broadcast %cst_9 : f32 to vector<8x1xf32>
    %9 = arith.divf %7, %8 : vector<8x1xf32>
    %10 = vector.broadcast %9 : vector<8x1xf32> to vector<8x32xf32>
    %11 = arith.subf %1, %10 : vector<8x32xf32>
    %12 = arith.mulf %11, %11 : vector<8x32xf32>
    %cst_10 = arith.constant dense<0.000000e+00> : vector<8xf32>
    %13 = vector.multi_reduction <add>, %12, %cst_10 [1] : vector<8x32xf32> to vector<8xf32>
    %14 = vector.shape_cast %13 : vector<8xf32> to vector<8x1xf32>
    %cst_11 = arith.constant 3.200000e+01 : f32
    %15 = vector.broadcast %cst_11 : f32 to vector<8x1xf32>
    %16 = arith.divf %14, %15 : vector<8x1xf32>
    %17 = vector.broadcast %9 : vector<8x1xf32> to vector<8x32xf32>
    %18 = arith.subf %1, %17 : vector<8x32xf32>
    %cst_12 = arith.constant 9.99999974E-6 : f32
    %19 = vector.broadcast %cst_12 : f32 to vector<8x1xf32>
    %20 = arith.addf %16, %19 : vector<8x1xf32>
    %21 = math.rsqrt %20 : vector<8x1xf32>
    %22 = vector.broadcast %21 : vector<8x1xf32> to vector<8x32xf32>
    %23 = arith.mulf %18, %22 : vector<8x32xf32>
    %24 = vector.broadcast %4 : vector<1x32xf32> to vector<8x32xf32>
    %25 = arith.mulf %23, %24 : vector<8x32xf32>
    %26 = vector.broadcast %5 : vector<1x32xf32> to vector<8x32xf32>
    %27 = arith.addf %25, %26 : vector<8x32xf32>
    %c0_13 = arith.constant 0 : index
    %c0_14 = arith.constant 0 : index
    %28 = vector.load %arg4[%c0_13, %c0_14] : memref<1x32xf32, #tpu.memory_space<vmem>>, vector<1x32xf32>
    %c0_15 = arith.constant 0 : index
    %c0_16 = arith.constant 0 : index
    %29 = vector.load %arg5[%c0_15, %c0_16] : memref<1x32xf32, #tpu.memory_space<vmem>>, vector<1x32xf32>
    %cst_17 = arith.constant dense<0.000000e+00> : vector<8xf32>
    %30 = vector.multi_reduction <add>, %3, %cst_17 [1] : vector<8x32xf32> to vector<8xf32>
    %31 = vector.shape_cast %30 : vector<8xf32> to vector<8x1xf32>
    %cst_18 = arith.constant 3.200000e+01 : f32
    %32 = vector.broadcast %cst_18 : f32 to vector<8x1xf32>
    %33 = arith.divf %31, %32 : vector<8x1xf32>
    %34 = vector.broadcast %33 : vector<8x1xf32> to vector<8x32xf32>
    %35 = arith.subf %3, %34 : vector<8x32xf32>
    %36 = arith.mulf %35, %35 : vector<8x32xf32>
    %cst_19 = arith.constant dense<0.000000e+00> : vector<8xf32>
    %37 = vector.multi_reduction <add>, %36, %cst_19 [1] : vector<8x32xf32> to vector<8xf32>
    %38 = vector.shape_cast %37 : vector<8xf32> to vector<8x1xf32>
    %cst_20 = arith.constant 3.200000e+01 : f32
    %39 = vector.broadcast %cst_20 : f32 to vector<8x1xf32>
    %40 = arith.divf %38, %39 : vector<8x1xf32>
    %41 = vector.broadcast %33 : vector<8x1xf32> to vector<8x32xf32>
    %42 = arith.subf %3, %41 : vector<8x32xf32>
    %cst_21 = arith.constant 9.99999974E-6 : f32
    %43 = vector.broadcast %cst_21 : f32 to vector<8x1xf32>
    %44 = arith.addf %40, %43 : vector<8x1xf32>
    %45 = math.rsqrt %44 : vector<8x1xf32>
    %46 = vector.broadcast %45 : vector<8x1xf32> to vector<8x32xf32>
    %47 = arith.mulf %42, %46 : vector<8x32xf32>
    %48 = vector.broadcast %28 : vector<1x32xf32> to vector<8x32xf32>
    %49 = arith.mulf %47, %48 : vector<8x32xf32>
    %50 = vector.broadcast %29 : vector<1x32xf32> to vector<8x32xf32>
    %51 = arith.addf %49, %50 : vector<8x32xf32>
    %52 = arith.truncf %27 : vector<8x32xf32> to vector<8x32xbf16>
    %c0_22 = arith.constant 0 : index
    %c0_23 = arith.constant 0 : index
    %53 = vector.load %arg6[%c0_22, %c0_23] : memref<32x32xbf16, #tpu.memory_space<vmem>>, vector<32x32xbf16>
    %cst_24 = arith.constant dense<0.000000e+00> : vector<8x32xf32>
    %54 = tpu.matmul %52, %53, %cst_24 {dimension_numbers = #tpu.dot_dimension_numbers<[1], [0], [0], [1], [0, 0, 1, 1], [], []>} : vector<8x32xbf16>, vector<32x32xbf16>, vector<8x32xf32> -> vector<8x32xf32>
    %55 = arith.truncf %54 : vector<8x32xf32> to vector<8x32xbf16>
    %56 = arith.truncf %51 : vector<8x32xf32> to vector<8x32xbf16>
    %c0_25 = arith.constant 0 : index
    %c0_26 = arith.constant 0 : index
    %57 = vector.load %arg7[%c0_25, %c0_26] : memref<32x64xbf16, #tpu.memory_space<vmem>>, vector<32x64xbf16>
    %cst_27 = arith.constant dense<0.000000e+00> : vector<8x64xf32>
    %58 = tpu.matmul %56, %57, %cst_27 {dimension_numbers = #tpu.dot_dimension_numbers<[1], [0], [0], [1], [0, 0, 1, 1], [], []>} : vector<8x32xbf16>, vector<32x64xbf16>, vector<8x64xf32> -> vector<8x64xf32>
    %59 = arith.truncf %58 : vector<8x64xf32> to vector<8x64xbf16>
    %60 = vector.extract_strided_slice %59 {offsets = [0, 0], sizes = [8, 32], strides = [1, 1]} : vector<8x64xbf16> to vector<8x32xbf16>
    %61 = vector.extract_strided_slice %59 {offsets = [0, 32], sizes = [8, 32], strides = [1, 1]} : vector<8x64xbf16> to vector<8x32xbf16>
    %c0_28 = arith.constant 0 : index
    %62 = memref.load %arg8[%c0_28] : memref<16xf32, #tpu.memory_space<smem>>
    %c1 = arith.constant 1 : index
    %63 = memref.load %arg8[%c1] : memref<16xf32, #tpu.memory_space<smem>>
    %c2 = arith.constant 2 : index
    %64 = memref.load %arg8[%c2] : memref<16xf32, #tpu.memory_space<smem>>
    %c3 = arith.constant 3 : index
    %65 = memref.load %arg8[%c3] : memref<16xf32, #tpu.memory_space<smem>>
    %c4 = arith.constant 4 : index
    %66 = memref.load %arg8[%c4] : memref<16xf32, #tpu.memory_space<smem>>
    %c5 = arith.constant 5 : index
    %67 = memref.load %arg8[%c5] : memref<16xf32, #tpu.memory_space<smem>>
    %c6 = arith.constant 6 : index
    %68 = memref.load %arg8[%c6] : memref<16xf32, #tpu.memory_space<smem>>
    %c7 = arith.constant 7 : index
    %69 = memref.load %arg8[%c7] : memref<16xf32, #tpu.memory_space<smem>>
    %c8 = arith.constant 8 : index
    %70 = memref.load %arg8[%c8] : memref<16xf32, #tpu.memory_space<smem>>
    %c9 = arith.constant 9 : index
    %71 = memref.load %arg8[%c9] : memref<16xf32, #tpu.memory_space<smem>>
    %c10 = arith.constant 10 : index
    %72 = memref.load %arg8[%c10] : memref<16xf32, #tpu.memory_space<smem>>
    %c11 = arith.constant 11 : index
    %73 = memref.load %arg8[%c11] : memref<16xf32, #tpu.memory_space<smem>>
    %c12 = arith.constant 12 : index
    %74 = memref.load %arg8[%c12] : memref<16xf32, #tpu.memory_space<smem>>
    %c13 = arith.constant 13 : index
    %75 = memref.load %arg8[%c13] : memref<16xf32, #tpu.memory_space<smem>>
    %c14 = arith.constant 14 : index
    %76 = memref.load %arg8[%c14] : memref<16xf32, #tpu.memory_space<smem>>
    %c15 = arith.constant 15 : index
    %77 = memref.load %arg8[%c15] : memref<16xf32, #tpu.memory_space<smem>>
    %cst_29 = arith.constant 0.000000e+00 : f32
    %78 = arith.addf %cst_29, %62 : f32
    %79 = arith.addf %78, %63 : f32
    %80 = arith.addf %79, %64 : f32
    %81 = arith.addf %80, %65 : f32
    %cst_30 = arith.constant 2.500000e-01 : f32
    %82 = arith.mulf %81, %cst_30 : f32
    %cst_31 = arith.constant 0.000000e+00 : f32
    %83 = arith.addf %cst_31, %66 : f32
    %84 = arith.addf %83, %67 : f32
    %85 = arith.addf %84, %68 : f32
    %86 = arith.addf %85, %69 : f32
    %cst_32 = arith.constant 2.500000e-01 : f32
    %87 = arith.mulf %86, %cst_32 : f32
    %cst_33 = arith.constant 0.000000e+00 : f32
    %88 = arith.addf %cst_33, %70 : f32
    %89 = arith.addf %88, %71 : f32
    %90 = arith.addf %89, %72 : f32
    %91 = arith.addf %90, %73 : f32
    %cst_34 = arith.constant 2.500000e-01 : f32
    %92 = arith.mulf %91, %cst_34 : f32
    %cst_35 = arith.constant 0.000000e+00 : f32
    %93 = arith.addf %cst_35, %74 : f32
    %94 = arith.addf %93, %75 : f32
    %95 = arith.addf %94, %76 : f32
    %96 = arith.addf %95, %77 : f32
    %cst_36 = arith.constant 2.500000e-01 : f32
    %97 = arith.mulf %96, %cst_36 : f32
    %c0_37 = arith.constant 0 : index
    %98 = memref.load %arg9[%c0_37] : memref<4xf32, #tpu.memory_space<smem>>
    %c1_38 = arith.constant 1 : index
    %99 = memref.load %arg9[%c1_38] : memref<4xf32, #tpu.memory_space<smem>>
    %c2_39 = arith.constant 2 : index
    %100 = memref.load %arg9[%c2_39] : memref<4xf32, #tpu.memory_space<smem>>
    %c3_40 = arith.constant 3 : index
    %101 = memref.load %arg9[%c3_40] : memref<4xf32, #tpu.memory_space<smem>>
    %c0_41 = arith.constant 0 : index
    %102 = memref.load %arg10[%c0_41] : memref<4xf32, #tpu.memory_space<smem>>
    %c1_42 = arith.constant 1 : index
    %103 = memref.load %arg10[%c1_42] : memref<4xf32, #tpu.memory_space<smem>>
    %c2_43 = arith.constant 2 : index
    %104 = memref.load %arg10[%c2_43] : memref<4xf32, #tpu.memory_space<smem>>
    %c3_44 = arith.constant 3 : index
    %105 = memref.load %arg10[%c3_44] : memref<4xf32, #tpu.memory_space<smem>>
    %106 = vector.extract_strided_slice %55 {offsets = [0, 0], sizes = [8, 8], strides = [1, 1]} : vector<8x32xbf16> to vector<8x8xbf16>
    %107 = vector.extract_strided_slice %60 {offsets = [0, 0], sizes = [8, 8], strides = [1, 1]} : vector<8x32xbf16> to vector<8x8xbf16>
    %cst_45 = arith.constant dense<0.000000e+00> : vector<8x8xf32>
    %108 = tpu.matmul %106, %107, %cst_45 {dimension_numbers = #tpu.dot_dimension_numbers<[1], [1], [0], [0], [0, 0, 1, 0], [], []>} : vector<8x8xbf16>, vector<8x8xbf16>, vector<8x8xf32> -> vector<8x8xf32>
    %cst_46 = arith.constant dense<0xFF800000> : vector<8xf32>
    %109 = vector.multi_reduction <maximumf>, %108, %cst_46 [1] : vector<8x8xf32> to vector<8xf32>
    %110 = vector.shape_cast %109 : vector<8xf32> to vector<8x1xf32>
    %111 = vector.broadcast %110 : vector<8x1xf32> to vector<8x8xf32>
    %112 = arith.subf %108, %111 : vector<8x8xf32>
    %113 = math.exp %112 : vector<8x8xf32>
    %cst_47 = arith.constant dense<0.000000e+00> : vector<8xf32>
    %114 = vector.multi_reduction <add>, %113, %cst_47 [1] : vector<8x8xf32> to vector<8xf32>
    %115 = vector.shape_cast %114 : vector<8xf32> to vector<8x1xf32>
    %116 = tpu.reciprocal %115 {approx = true} : vector<8x1xf32> -> vector<8x1xf32>
    %117 = vector.broadcast %116 : vector<8x1xf32> to vector<8x8xf32>
    %118 = arith.mulf %113, %117 : vector<8x8xf32>
    %119 = vector.broadcast %82 : f32 to vector<8x8xf32>
    %120 = arith.mulf %118, %119 : vector<8x8xf32>
    %121 = vector.broadcast %62 : f32 to vector<8x8xf32>
    %122 = arith.mulf %121, %118 : vector<8x8xf32>
    %c0_48 = arith.constant 0 : index
    %c0_49 = arith.constant 0 : index
    %c0_50 = arith.constant 0 : index
    %123 = vector.load %arg20[%c0_48, %c0_49, %c0_50] : memref<4x8x8xf32, #tpu.memory_space<vmem>>, vector<1x8x8xf32>
    %124 = vector.shape_cast %123 : vector<1x8x8xf32> to vector<8x8xf32>
    %125 = vector.shape_cast %122 : vector<8x8xf32> to vector<1x8x8xf32>
    tpu.vector_store %arg20[%c0_48, %c0_49, %c0_50], %125 {strides = array<i32>} : memref<4x8x8xf32, #tpu.memory_space<vmem>>, vector<1x8x8xf32>,
    %126 = vector.broadcast %63 : f32 to vector<8x8xf32>
    %127 = arith.mulf %126, %118 : vector<8x8xf32>
    %c1_51 = arith.constant 1 : index
    %c0_52 = arith.constant 0 : index
    %c0_53 = arith.constant 0 : index
    %128 = vector.load %arg20[%c1_51, %c0_52, %c0_53] : memref<4x8x8xf32, #tpu.memory_space<vmem>>, vector<1x8x8xf32>
    %129 = vector.shape_cast %128 : vector<1x8x8xf32> to vector<8x8xf32>
    %130 = vector.shape_cast %127 : vector<8x8xf32> to vector<1x8x8xf32>
    tpu.vector_store %arg20[%c1_51, %c0_52, %c0_53], %130 {strides = array<i32>} : memref<4x8x8xf32, #tpu.memory_space<vmem>>, vector<1x8x8xf32>,
    %131 = vector.broadcast %64 : f32 to vector<8x8xf32>
    %132 = arith.mulf %131, %118 : vector<8x8xf32>
    %c2_54 = arith.constant 2 : index
    %c0_55 = arith.constant 0 : index
    %c0_56 = arith.constant 0 : index
    %133 = vector.load %arg20[%c2_54, %c0_55, %c0_56] : memref<4x8x8xf32, #tpu.memory_space<vmem>>, vector<1x8x8xf32>
    %134 = vector.shape_cast %133 : vector<1x8x8xf32> to vector<8x8xf32>
    %135 = vector.shape_cast %132 : vector<8x8xf32> to vector<1x8x8xf32>
    tpu.vector_store %arg20[%c2_54, %c0_55, %c0_56], %135 {strides = array<i32>} : memref<4x8x8xf32, #tpu.memory_space<vmem>>, vector<1x8x8xf32>,
    %136 = vector.broadcast %65 : f32 to vector<8x8xf32>
    %137 = arith.mulf %136, %118 : vector<8x8xf32>
    %c3_57 = arith.constant 3 : index
    %c0_58 = arith.constant 0 : index
    %c0_59 = arith.constant 0 : index
    %138 = vector.load %arg20[%c3_57, %c0_58, %c0_59] : memref<4x8x8xf32, #tpu.memory_space<vmem>>, vector<1x8x8xf32>
    %139 = vector.shape_cast %138 : vector<1x8x8xf32> to vector<8x8xf32>
    %140 = vector.shape_cast %137 : vector<8x8xf32> to vector<1x8x8xf32>
    tpu.vector_store %arg20[%c3_57, %c0_58, %c0_59], %140 {strides = array<i32>} : memref<4x8x8xf32, #tpu.memory_space<vmem>>, vector<1x8x8xf32>,
    %141 = vector.extract_strided_slice %55 {offsets = [0, 8], sizes = [8, 8], strides = [1, 1]} : vector<8x32xbf16> to vector<8x8xbf16>
    %142 = vector.extract_strided_slice %60 {offsets = [0, 8], sizes = [8, 8], strides = [1, 1]} : vector<8x32xbf16> to vector<8x8xbf16>
    %cst_60 = arith.constant dense<0.000000e+00> : vector<8x8xf32>
    %143 = tpu.matmul %141, %142, %cst_60 {dimension_numbers = #tpu.dot_dimension_numbers<[1], [1], [0], [0], [0, 0, 1, 0], [], []>} : vector<8x8xbf16>, vector<8x8xbf16>, vector<8x8xf32> -> vector<8x8xf32>
    %cst_61 = arith.constant dense<0xFF800000> : vector<8xf32>
    %144 = vector.multi_reduction <maximumf>, %143, %cst_61 [1] : vector<8x8xf32> to vector<8xf32>
    %145 = vector.shape_cast %144 : vector<8xf32> to vector<8x1xf32>
    %146 = vector.broadcast %145 : vector<8x1xf32> to vector<8x8xf32>
    %147 = arith.subf %143, %146 : vector<8x8xf32>
    %148 = math.exp %147 : vector<8x8xf32>
    %cst_62 = arith.constant dense<0.000000e+00> : vector<8xf32>
    %149 = vector.multi_reduction <add>, %148, %cst_62 [1] : vector<8x8xf32> to vector<8xf32>
    %150 = vector.shape_cast %149 : vector<8xf32> to vector<8x1xf32>
    %151 = tpu.reciprocal %150 {approx = true} : vector<8x1xf32> -> vector<8x1xf32>
    %152 = vector.broadcast %151 : vector<8x1xf32> to vector<8x8xf32>
    %153 = arith.mulf %148, %152 : vector<8x8xf32>
    %154 = vector.broadcast %87 : f32 to vector<8x8xf32>
    %155 = arith.mulf %153, %154 : vector<8x8xf32>
    %156 = arith.addf %120, %155 : vector<8x8xf32>
    %c0_63 = arith.constant 0 : index
    %c0_64 = arith.constant 0 : index
    %c0_65 = arith.constant 0 : index
    %157 = vector.load %arg20[%c0_63, %c0_64, %c0_65] : memref<4x8x8xf32, #tpu.memory_space<vmem>>, vector<1x8x8xf32>
    %158 = vector.shape_cast %157 : vector<1x8x8xf32> to vector<8x8xf32>
    %159 = vector.broadcast %66 : f32 to vector<8x8xf32>
    %160 = arith.mulf %159, %153 : vector<8x8xf32>
    %161 = arith.addf %158, %160 : vector<8x8xf32>
    %c0_66 = arith.constant 0 : index
    %c0_67 = arith.constant 0 : index
    %c0_68 = arith.constant 0 : index
    %162 = vector.load %arg20[%c0_66, %c0_67, %c0_68] : memref<4x8x8xf32, #tpu.memory_space<vmem>>, vector<1x8x8xf32>
    %163 = vector.shape_cast %162 : vector<1x8x8xf32> to vector<8x8xf32>
    %164 = vector.shape_cast %161 : vector<8x8xf32> to vector<1x8x8xf32>
    tpu.vector_store %arg20[%c0_66, %c0_67, %c0_68], %164 {strides = array<i32>} : memref<4x8x8xf32, #tpu.memory_space<vmem>>, vector<1x8x8xf32>,
    %c1_69 = arith.constant 1 : index
    %c0_70 = arith.constant 0 : index
    %c0_71 = arith.constant 0 : index
    %165 = vector.load %arg20[%c1_69, %c0_70, %c0_71] : memref<4x8x8xf32, #tpu.memory_space<vmem>>, vector<1x8x8xf32>
    %166 = vector.shape_cast %165 : vector<1x8x8xf32> to vector<8x8xf32>
    %167 = vector.broadcast %67 : f32 to vector<8x8xf32>
    %168 = arith.mulf %167, %153 : vector<8x8xf32>
    %169 = arith.addf %166, %168 : vector<8x8xf32>
    %c1_72 = arith.constant 1 : index
    %c0_73 = arith.constant 0 : index
    %c0_74 = arith.constant 0 : index
    %170 = vector.load %arg20[%c1_72, %c0_73, %c0_74] : memref<4x8x8xf32, #tpu.memory_space<vmem>>, vector<1x8x8xf32>
    %171 = vector.shape_cast %170 : vector<1x8x8xf32> to vector<8x8xf32>
    %172 = vector.shape_cast %169 : vector<8x8xf32> to vector<1x8x8xf32>
    tpu.vector_store %arg20[%c1_72, %c0_73, %c0_74], %172 {strides = array<i32>} : memref<4x8x8xf32, #tpu.memory_space<vmem>>, vector<1x8x8xf32>,
    %c2_75 = arith.constant 2 : index
    %c0_76 = arith.constant 0 : index
    %c0_77 = arith.constant 0 : index
    %173 = vector.load %arg20[%c2_75, %c0_76, %c0_77] : memref<4x8x8xf32, #tpu.memory_space<vmem>>, vector<1x8x8xf32>
    %174 = vector.shape_cast %173 : vector<1x8x8xf32> to vector<8x8xf32>
    %175 = vector.broadcast %68 : f32 to vector<8x8xf32>
    %176 = arith.mulf %175, %153 : vector<8x8xf32>
    %177 = arith.addf %174, %176 : vector<8x8xf32>
    %c2_78 = arith.constant 2 : index
    %c0_79 = arith.constant 0 : index
    %c0_80 = arith.constant 0 : index
    %178 = vector.load %arg20[%c2_78, %c0_79, %c0_80] : memref<4x8x8xf32, #tpu.memory_space<vmem>>, vector<1x8x8xf32>
    %179 = vector.shape_cast %178 : vector<1x8x8xf32> to vector<8x8xf32>
    %180 = vector.shape_cast %177 : vector<8x8xf32> to vector<1x8x8xf32>
    tpu.vector_store %arg20[%c2_78, %c0_79, %c0_80], %180 {strides = array<i32>} : memref<4x8x8xf32, #tpu.memory_space<vmem>>, vector<1x8x8xf32>,
    %c3_81 = arith.constant 3 : index
    %c0_82 = arith.constant 0 : index
    %c0_83 = arith.constant 0 : index
    %181 = vector.load %arg20[%c3_81, %c0_82, %c0_83] : memref<4x8x8xf32, #tpu.memory_space<vmem>>, vector<1x8x8xf32>
    %182 = vector.shape_cast %181 : vector<1x8x8xf32> to vector<8x8xf32>
    %183 = vector.broadcast %69 : f32 to vector<8x8xf32>
    %184 = arith.mulf %183, %153 : vector<8x8xf32>
    %185 = arith.addf %182, %184 : vector<8x8xf32>
    %c3_84 = arith.constant 3 : index
    %c0_85 = arith.constant 0 : index
    %c0_86 = arith.constant 0 : index
    %186 = vector.load %arg20[%c3_84, %c0_85, %c0_86] : memref<4x8x8xf32, #tpu.memory_space<vmem>>, vector<1x8x8xf32>
    %187 = vector.shape_cast %186 : vector<1x8x8xf32> to vector<8x8xf32>
    %188 = vector.shape_cast %185 : vector<8x8xf32> to vector<1x8x8xf32>
    tpu.vector_store %arg20[%c3_84, %c0_85, %c0_86], %188 {strides = array<i32>} : memref<4x8x8xf32, #tpu.memory_space<vmem>>, vector<1x8x8xf32>,
    %189 = vector.extract_strided_slice %55 {offsets = [0, 16], sizes = [8, 8], strides = [1, 1]} : vector<8x32xbf16> to vector<8x8xbf16>
    %190 = vector.extract_strided_slice %60 {offsets = [0, 16], sizes = [8, 8], strides = [1, 1]} : vector<8x32xbf16> to vector<8x8xbf16>
    %cst_87 = arith.constant dense<0.000000e+00> : vector<8x8xf32>
    %191 = tpu.matmul %189, %190, %cst_87 {dimension_numbers = #tpu.dot_dimension_numbers<[1], [1], [0], [0], [0, 0, 1, 0], [], []>} : vector<8x8xbf16>, vector<8x8xbf16>, vector<8x8xf32> -> vector<8x8xf32>
    %cst_88 = arith.constant dense<0xFF800000> : vector<8xf32>
    %192 = vector.multi_reduction <maximumf>, %191, %cst_88 [1] : vector<8x8xf32> to vector<8xf32>
    %193 = vector.shape_cast %192 : vector<8xf32> to vector<8x1xf32>
    %194 = vector.broadcast %193 : vector<8x1xf32> to vector<8x8xf32>
    %195 = arith.subf %191, %194 : vector<8x8xf32>
    %196 = math.exp %195 : vector<8x8xf32>
    %cst_89 = arith.constant dense<0.000000e+00> : vector<8xf32>
    %197 = vector.multi_reduction <add>, %196, %cst_89 [1] : vector<8x8xf32> to vector<8xf32>
    %198 = vector.shape_cast %197 : vector<8xf32> to vector<8x1xf32>
    %199 = tpu.reciprocal %198 {approx = true} : vector<8x1xf32> -> vector<8x1xf32>
    %200 = vector.broadcast %199 : vector<8x1xf32> to vector<8x8xf32>
    %201 = arith.mulf %196, %200 : vector<8x8xf32>
    %202 = vector.broadcast %92 : f32 to vector<8x8xf32>
    %203 = arith.mulf %201, %202 : vector<8x8xf32>
    %204 = arith.addf %156, %203 : vector<8x8xf32>
    %c0_90 = arith.constant 0 : index
    %c0_91 = arith.constant 0 : index
    %c0_92 = arith.constant 0 : index
    %205 = vector.load %arg20[%c0_90, %c0_91, %c0_92] : memref<4x8x8xf32, #tpu.memory_space<vmem>>, vector<1x8x8xf32>
    %206 = vector.shape_cast %205 : vector<1x8x8xf32> to vector<8x8xf32>
    %207 = vector.broadcast %70 : f32 to vector<8x8xf32>
    %208 = arith.mulf %207, %201 : vector<8x8xf32>
    %209 = arith.addf %206, %208 : vector<8x8xf32>
    %c0_93 = arith.constant 0 : index
    %c0_94 = arith.constant 0 : index
    %c0_95 = arith.constant 0 : index
    %210 = vector.load %arg20[%c0_93, %c0_94, %c0_95] : memref<4x8x8xf32, #tpu.memory_space<vmem>>, vector<1x8x8xf32>
    %211 = vector.shape_cast %210 : vector<1x8x8xf32> to vector<8x8xf32>
    %212 = vector.shape_cast %209 : vector<8x8xf32> to vector<1x8x8xf32>
    tpu.vector_store %arg20[%c0_93, %c0_94, %c0_95], %212 {strides = array<i32>} : memref<4x8x8xf32, #tpu.memory_space<vmem>>, vector<1x8x8xf32>,
    %c1_96 = arith.constant 1 : index
    %c0_97 = arith.constant 0 : index
    %c0_98 = arith.constant 0 : index
    %213 = vector.load %arg20[%c1_96, %c0_97, %c0_98] : memref<4x8x8xf32, #tpu.memory_space<vmem>>, vector<1x8x8xf32>
    %214 = vector.shape_cast %213 : vector<1x8x8xf32> to vector<8x8xf32>
    %215 = vector.broadcast %71 : f32 to vector<8x8xf32>
    %216 = arith.mulf %215, %201 : vector<8x8xf32>
    %217 = arith.addf %214, %216 : vector<8x8xf32>
    %c1_99 = arith.constant 1 : index
    %c0_100 = arith.constant 0 : index
    %c0_101 = arith.constant 0 : index
    %218 = vector.load %arg20[%c1_99, %c0_100, %c0_101] : memref<4x8x8xf32, #tpu.memory_space<vmem>>, vector<1x8x8xf32>
    %219 = vector.shape_cast %218 : vector<1x8x8xf32> to vector<8x8xf32>
    %220 = vector.shape_cast %217 : vector<8x8xf32> to vector<1x8x8xf32>
    tpu.vector_store %arg20[%c1_99, %c0_100, %c0_101], %220 {strides = array<i32>} : memref<4x8x8xf32, #tpu.memory_space<vmem>>, vector<1x8x8xf32>,
    %c2_102 = arith.constant 2 : index
    %c0_103 = arith.constant 0 : index
    %c0_104 = arith.constant 0 : index
    %221 = vector.load %arg20[%c2_102, %c0_103, %c0_104] : memref<4x8x8xf32, #tpu.memory_space<vmem>>, vector<1x8x8xf32>
    %222 = vector.shape_cast %221 : vector<1x8x8xf32> to vector<8x8xf32>
    %223 = vector.broadcast %72 : f32 to vector<8x8xf32>
    %224 = arith.mulf %223, %201 : vector<8x8xf32>
    %225 = arith.addf %222, %224 : vector<8x8xf32>
    %c2_105 = arith.constant 2 : index
    %c0_106 = arith.constant 0 : index
    %c0_107 = arith.constant 0 : index
    %226 = vector.load %arg20[%c2_105, %c0_106, %c0_107] : memref<4x8x8xf32, #tpu.memory_space<vmem>>, vector<1x8x8xf32>
    %227 = vector.shape_cast %226 : vector<1x8x8xf32> to vector<8x8xf32>
    %228 = vector.shape_cast %225 : vector<8x8xf32> to vector<1x8x8xf32>
    tpu.vector_store %arg20[%c2_105, %c0_106, %c0_107], %228 {strides = array<i32>} : memref<4x8x8xf32, #tpu.memory_space<vmem>>, vector<1x8x8xf32>,
    %c3_108 = arith.constant 3 : index
    %c0_109 = arith.constant 0 : index
    %c0_110 = arith.constant 0 : index
    %229 = vector.load %arg20[%c3_108, %c0_109, %c0_110] : memref<4x8x8xf32, #tpu.memory_space<vmem>>, vector<1x8x8xf32>
    %230 = vector.shape_cast %229 : vector<1x8x8xf32> to vector<8x8xf32>
    %231 = vector.broadcast %73 : f32 to vector<8x8xf32>
    %232 = arith.mulf %231, %201 : vector<8x8xf32>
    %233 = arith.addf %230, %232 : vector<8x8xf32>
    %c3_111 = arith.constant 3 : index
    %c0_112 = arith.constant 0 : index
    %c0_113 = arith.constant 0 : index
    %234 = vector.load %arg20[%c3_111, %c0_112, %c0_113] : memref<4x8x8xf32, #tpu.memory_space<vmem>>, vector<1x8x8xf32>
    %235 = vector.shape_cast %234 : vector<1x8x8xf32> to vector<8x8xf32>
    %236 = vector.shape_cast %233 : vector<8x8xf32> to vector<1x8x8xf32>
    tpu.vector_store %arg20[%c3_111, %c0_112, %c0_113], %236 {strides = array<i32>} : memref<4x8x8xf32, #tpu.memory_space<vmem>>, vector<1x8x8xf32>,
    %237 = vector.extract_strided_slice %55 {offsets = [0, 24], sizes = [8, 8], strides = [1, 1]} : vector<8x32xbf16> to vector<8x8xbf16>
    %238 = vector.extract_strided_slice %60 {offsets = [0, 24], sizes = [8, 8], strides = [1, 1]} : vector<8x32xbf16> to vector<8x8xbf16>
    %cst_114 = arith.constant dense<0.000000e+00> : vector<8x8xf32>
    %239 = tpu.matmul %237, %238, %cst_114 {dimension_numbers = #tpu.dot_dimension_numbers<[1], [1], [0], [0], [0, 0, 1, 0], [], []>} : vector<8x8xbf16>, vector<8x8xbf16>, vector<8x8xf32> -> vector<8x8xf32>
    %cst_115 = arith.constant dense<0xFF800000> : vector<8xf32>
    %240 = vector.multi_reduction <maximumf>, %239, %cst_115 [1] : vector<8x8xf32> to vector<8xf32>
    %241 = vector.shape_cast %240 : vector<8xf32> to vector<8x1xf32>
    %242 = vector.broadcast %241 : vector<8x1xf32> to vector<8x8xf32>
    %243 = arith.subf %239, %242 : vector<8x8xf32>
    %244 = math.exp %243 : vector<8x8xf32>
    %cst_116 = arith.constant dense<0.000000e+00> : vector<8xf32>
    %245 = vector.multi_reduction <add>, %244, %cst_116 [1] : vector<8x8xf32> to vector<8xf32>
    %246 = vector.shape_cast %245 : vector<8xf32> to vector<8x1xf32>
    %247 = tpu.reciprocal %246 {approx = true} : vector<8x1xf32> -> vector<8x1xf32>
    %248 = vector.broadcast %247 : vector<8x1xf32> to vector<8x8xf32>
    %249 = arith.mulf %244, %248 : vector<8x8xf32>
    %250 = vector.broadcast %97 : f32 to vector<8x8xf32>
    %251 = arith.mulf %249, %250 : vector<8x8xf32>
    %252 = arith.addf %204, %251 : vector<8x8xf32>
    %c0_117 = arith.constant 0 : index
    %c0_118 = arith.constant 0 : index
    %c0_119 = arith.constant 0 : index
    %253 = vector.load %arg20[%c0_117, %c0_118, %c0_119] : memref<4x8x8xf32, #tpu.memory_space<vmem>>, vector<1x8x8xf32>
    %254 = vector.shape_cast %253 : vector<1x8x8xf32> to vector<8x8xf32>
    %255 = vector.broadcast %74 : f32 to vector<8x8xf32>
    %256 = arith.mulf %255, %249 : vector<8x8xf32>
    %257 = arith.addf %254, %256 : vector<8x8xf32>
    %c0_120 = arith.constant 0 : index
    %c0_121 = arith.constant 0 : index
    %c0_122 = arith.constant 0 : index
    %258 = vector.load %arg20[%c0_120, %c0_121, %c0_122] : memref<4x8x8xf32, #tpu.memory_space<vmem>>, vector<1x8x8xf32>
    %259 = vector.shape_cast %258 : vector<1x8x8xf32> to vector<8x8xf32>
    %260 = vector.shape_cast %257 : vector<8x8xf32> to vector<1x8x8xf32>
    tpu.vector_store %arg20[%c0_120, %c0_121, %c0_122], %260 {strides = array<i32>} : memref<4x8x8xf32, #tpu.memory_space<vmem>>, vector<1x8x8xf32>,
    %c1_123 = arith.constant 1 : index
    %c0_124 = arith.constant 0 : index
    %c0_125 = arith.constant 0 : index
    %261 = vector.load %arg20[%c1_123, %c0_124, %c0_125] : memref<4x8x8xf32, #tpu.memory_space<vmem>>, vector<1x8x8xf32>
    %262 = vector.shape_cast %261 : vector<1x8x8xf32> to vector<8x8xf32>
    %263 = vector.broadcast %75 : f32 to vector<8x8xf32>
    %264 = arith.mulf %263, %249 : vector<8x8xf32>
    %265 = arith.addf %262, %264 : vector<8x8xf32>
    %c1_126 = arith.constant 1 : index
    %c0_127 = arith.constant 0 : index
    %c0_128 = arith.constant 0 : index
    %266 = vector.load %arg20[%c1_126, %c0_127, %c0_128] : memref<4x8x8xf32, #tpu.memory_space<vmem>>, vector<1x8x8xf32>
    %267 = vector.shape_cast %266 : vector<1x8x8xf32> to vector<8x8xf32>
    %268 = vector.shape_cast %265 : vector<8x8xf32> to vector<1x8x8xf32>
    tpu.vector_store %arg20[%c1_126, %c0_127, %c0_128], %268 {strides = array<i32>} : memref<4x8x8xf32, #tpu.memory_space<vmem>>, vector<1x8x8xf32>,
    %c2_129 = arith.constant 2 : index
    %c0_130 = arith.constant 0 : index
    %c0_131 = arith.constant 0 : index
    %269 = vector.load %arg20[%c2_129, %c0_130, %c0_131] : memref<4x8x8xf32, #tpu.memory_space<vmem>>, vector<1x8x8xf32>
    %270 = vector.shape_cast %269 : vector<1x8x8xf32> to vector<8x8xf32>
    %271 = vector.broadcast %76 : f32 to vector<8x8xf32>
    %272 = arith.mulf %271, %249 : vector<8x8xf32>
    %273 = arith.addf %270, %272 : vector<8x8xf32>
    %c2_132 = arith.constant 2 : index
    %c0_133 = arith.constant 0 : index
    %c0_134 = arith.constant 0 : index
    %274 = vector.load %arg20[%c2_132, %c0_133, %c0_134] : memref<4x8x8xf32, #tpu.memory_space<vmem>>, vector<1x8x8xf32>
    %275 = vector.shape_cast %274 : vector<1x8x8xf32> to vector<8x8xf32>
    %276 = vector.shape_cast %273 : vector<8x8xf32> to vector<1x8x8xf32>
    tpu.vector_store %arg20[%c2_132, %c0_133, %c0_134], %276 {strides = array<i32>} : memref<4x8x8xf32, #tpu.memory_space<vmem>>, vector<1x8x8xf32>,
    %c3_135 = arith.constant 3 : index
    %c0_136 = arith.constant 0 : index
    %c0_137 = arith.constant 0 : index
    %277 = vector.load %arg20[%c3_135, %c0_136, %c0_137] : memref<4x8x8xf32, #tpu.memory_space<vmem>>, vector<1x8x8xf32>
    %278 = vector.shape_cast %277 : vector<1x8x8xf32> to vector<8x8xf32>
    %279 = vector.broadcast %77 : f32 to vector<8x8xf32>
    %280 = arith.mulf %279, %249 : vector<8x8xf32>
    %281 = arith.addf %278, %280 : vector<8x8xf32>
    %c3_138 = arith.constant 3 : index
    %c0_139 = arith.constant 0 : index
    %c0_140 = arith.constant 0 : index
    %282 = vector.load %arg20[%c3_138, %c0_139, %c0_140] : memref<4x8x8xf32, #tpu.memory_space<vmem>>, vector<1x8x8xf32>
    %283 = vector.shape_cast %282 : vector<1x8x8xf32> to vector<8x8xf32>
    %284 = vector.shape_cast %281 : vector<8x8xf32> to vector<1x8x8xf32>
    tpu.vector_store %arg20[%c3_138, %c0_139, %c0_140], %284 {strides = array<i32>} : memref<4x8x8xf32, #tpu.memory_space<vmem>>, vector<1x8x8xf32>,
    %c0_141 = arith.constant 0 : index
    %c0_142 = arith.constant 0 : index
    %c0_143 = arith.constant 0 : index
    %285 = vector.load %arg20[%c0_141, %c0_142, %c0_143] : memref<4x8x8xf32, #tpu.memory_space<vmem>>, vector<1x8x8xf32>
    %286 = vector.shape_cast %285 : vector<1x8x8xf32> to vector<8x8xf32>
    %287 = arith.subf %286, %252 : vector<8x8xf32>
    %288 = arith.mulf %287, %287 : vector<8x8xf32>
    %c1_144 = arith.constant 1 : index
    %c0_145 = arith.constant 0 : index
    %c0_146 = arith.constant 0 : index
    %289 = vector.load %arg20[%c1_144, %c0_145, %c0_146] : memref<4x8x8xf32, #tpu.memory_space<vmem>>, vector<1x8x8xf32>
    %290 = vector.shape_cast %289 : vector<1x8x8xf32> to vector<8x8xf32>
    %291 = arith.subf %290, %252 : vector<8x8xf32>
    %292 = arith.mulf %291, %291 : vector<8x8xf32>
    %293 = arith.addf %288, %292 : vector<8x8xf32>
    %c2_147 = arith.constant 2 : index
    %c0_148 = arith.constant 0 : index
    %c0_149 = arith.constant 0 : index
    %294 = vector.load %arg20[%c2_147, %c0_148, %c0_149] : memref<4x8x8xf32, #tpu.memory_space<vmem>>, vector<1x8x8xf32>
    %295 = vector.shape_cast %294 : vector<1x8x8xf32> to vector<8x8xf32>
    %296 = arith.subf %295, %252 : vector<8x8xf32>
    %297 = arith.mulf %296, %296 : vector<8x8xf32>
    %298 = arith.addf %293, %297 : vector<8x8xf32>
    %c3_150 = arith.constant 3 : index
    %c0_151 = arith.constant 0 : index
    %c0_152 = arith.constant 0 : index
    %299 = vector.load %arg20[%c3_150, %c0_151, %c0_152] : memref<4x8x8xf32, #tpu.memory_space<vmem>>, vector<1x8x8xf32>
    %300 = vector.shape_cast %299 : vector<1x8x8xf32> to vector<8x8xf32>
    %301 = arith.subf %300, %252 : vector<8x8xf32>
    %302 = arith.mulf %301, %301 : vector<8x8xf32>
    %303 = arith.addf %298, %302 : vector<8x8xf32>
    %cst_153 = arith.constant 2.500000e-01 : f32
    %304 = vector.broadcast %cst_153 : f32 to vector<8x8xf32>
    %305 = arith.mulf %303, %304 : vector<8x8xf32>
    %cst_154 = arith.constant 9.99999974E-6 : f32
    %306 = vector.broadcast %cst_154 : f32 to vector<8x8xf32>
    %307 = arith.addf %305, %306 : vector<8x8xf32>
    %308 = math.rsqrt %307 : vector<8x8xf32>
    %c0_155 = arith.constant 0 : index
    %c0_156 = arith.constant 0 : index
    %c0_157 = arith.constant 0 : index
    %309 = vector.load %arg20[%c0_155, %c0_156, %c0_157] : memref<4x8x8xf32, #tpu.memory_space<vmem>>, vector<1x8x8xf32>
    %310 = vector.shape_cast %309 : vector<1x8x8xf32> to vector<8x8xf32>
    %311 = arith.subf %310, %252 : vector<8x8xf32>
    %312 = vector.broadcast %98 : f32 to vector<8x8xf32>
    %313 = arith.mulf %308, %312 : vector<8x8xf32>
    %314 = arith.mulf %311, %313 : vector<8x8xf32>
    %315 = vector.broadcast %102 : f32 to vector<8x8xf32>
    %316 = arith.addf %314, %315 : vector<8x8xf32>
    %317 = vector.extract_strided_slice %61 {offsets = [0, 0], sizes = [8, 8], strides = [1, 1]} : vector<8x32xbf16> to vector<8x8xbf16>
    %318 = arith.truncf %316 : vector<8x8xf32> to vector<8x8xbf16>
    %cst_158 = arith.constant dense<0.000000e+00> : vector<8x8xf32>
    %319 = tpu.matmul %318, %317, %cst_158 {dimension_numbers = #tpu.dot_dimension_numbers<[1], [0], [0], [1], [0, 0, 1, 1], [], []>} : vector<8x8xbf16>, vector<8x8xbf16>, vector<8x8xf32> -> vector<8x8xf32>
    %320 = arith.truncf %319 : vector<8x8xf32> to vector<8x8xbf16>
    %c0_159 = arith.constant 0 : index
    %c0_160 = arith.constant 0 : index
    %321 = vector.load %arg11[%c0_159, %c0_160] : memref<32x32xbf16, #tpu.memory_space<vmem>>, vector<8x32xbf16>
    %cst_161 = arith.constant dense<0.000000e+00> : vector<8x32xf32>
    %322 = tpu.matmul %320, %321, %cst_161 {dimension_numbers = #tpu.dot_dimension_numbers<[1], [0], [0], [1], [0, 0, 1, 1], [], []>} : vector<8x8xbf16>, vector<8x32xbf16>, vector<8x32xf32> -> vector<8x32xf32>
    %c1_162 = arith.constant 1 : index
    %c0_163 = arith.constant 0 : index
    %c0_164 = arith.constant 0 : index
    %323 = vector.load %arg20[%c1_162, %c0_163, %c0_164] : memref<4x8x8xf32, #tpu.memory_space<vmem>>, vector<1x8x8xf32>
    %324 = vector.shape_cast %323 : vector<1x8x8xf32> to vector<8x8xf32>
    %325 = arith.subf %324, %252 : vector<8x8xf32>
    %326 = vector.broadcast %99 : f32 to vector<8x8xf32>
    %327 = arith.mulf %308, %326 : vector<8x8xf32>
    %328 = arith.mulf %325, %327 : vector<8x8xf32>
    %329 = vector.broadcast %103 : f32 to vector<8x8xf32>
    %330 = arith.addf %328, %329 : vector<8x8xf32>
    %331 = vector.extract_strided_slice %61 {offsets = [0, 8], sizes = [8, 8], strides = [1, 1]} : vector<8x32xbf16> to vector<8x8xbf16>
    %332 = arith.truncf %330 : vector<8x8xf32> to vector<8x8xbf16>
    %cst_165 = arith.constant dense<0.000000e+00> : vector<8x8xf32>
    %333 = tpu.matmul %332, %331, %cst_165 {dimension_numbers = #tpu.dot_dimension_numbers<[1], [0], [0], [1], [0, 0, 1, 1], [], []>} : vector<8x8xbf16>, vector<8x8xbf16>, vector<8x8xf32> -> vector<8x8xf32>
    %334 = arith.truncf %333 : vector<8x8xf32> to vector<8x8xbf16>
    %c8_166 = arith.constant 8 : index
    %c0_167 = arith.constant 0 : index
    %335 = vector.load %arg11[%c8_166, %c0_167] : memref<32x32xbf16, #tpu.memory_space<vmem>>, vector<8x32xbf16>
    %cst_168 = arith.constant dense<0.000000e+00> : vector<8x32xf32>
    %336 = tpu.matmul %334, %335, %cst_168 {dimension_numbers = #tpu.dot_dimension_numbers<[1], [0], [0], [1], [0, 0, 1, 1], [], []>} : vector<8x8xbf16>, vector<8x32xbf16>, vector<8x32xf32> -> vector<8x32xf32>
    %337 = arith.addf %322, %336 : vector<8x32xf32>
    %c2_169 = arith.constant 2 : index
    %c0_170 = arith.constant 0 : index
    %c0_171 = arith.constant 0 : index
    %338 = vector.load %arg20[%c2_169, %c0_170, %c0_171] : memref<4x8x8xf32, #tpu.memory_space<vmem>>, vector<1x8x8xf32>
    %339 = vector.shape_cast %338 : vector<1x8x8xf32> to vector<8x8xf32>
    %340 = arith.subf %339, %252 : vector<8x8xf32>
    %341 = vector.broadcast %100 : f32 to vector<8x8xf32>
    %342 = arith.mulf %308, %341 : vector<8x8xf32>
    %343 = arith.mulf %340, %342 : vector<8x8xf32>
    %344 = vector.broadcast %104 : f32 to vector<8x8xf32>
    %345 = arith.addf %343, %344 : vector<8x8xf32>
    %346 = vector.extract_strided_slice %61 {offsets = [0, 16], sizes = [8, 8], strides = [1, 1]} : vector<8x32xbf16> to vector<8x8xbf16>
    %347 = arith.truncf %345 : vector<8x8xf32> to vector<8x8xbf16>
    %cst_172 = arith.constant dense<0.000000e+00> : vector<8x8xf32>
    %348 = tpu.matmul %347, %346, %cst_172 {dimension_numbers = #tpu.dot_dimension_numbers<[1], [0], [0], [1], [0, 0, 1, 1], [], []>} : vector<8x8xbf16>, vector<8x8xbf16>, vector<8x8xf32> -> vector<8x8xf32>
    %349 = arith.truncf %348 : vector<8x8xf32> to vector<8x8xbf16>
    %c16 = arith.constant 16 : index
    %c0_173 = arith.constant 0 : index
    %350 = vector.load %arg11[%c16, %c0_173] : memref<32x32xbf16, #tpu.memory_space<vmem>>, vector<8x32xbf16>
    %cst_174 = arith.constant dense<0.000000e+00> : vector<8x32xf32>
    %351 = tpu.matmul %349, %350, %cst_174 {dimension_numbers = #tpu.dot_dimension_numbers<[1], [0], [0], [1], [0, 0, 1, 1], [], []>} : vector<8x8xbf16>, vector<8x32xbf16>, vector<8x32xf32> -> vector<8x32xf32>
    %352 = arith.addf %337, %351 : vector<8x32xf32>
    %c3_175 = arith.constant 3 : index
    %c0_176 = arith.constant 0 : index
    %c0_177 = arith.constant 0 : index
    %353 = vector.load %arg20[%c3_175, %c0_176, %c0_177] : memref<4x8x8xf32, #tpu.memory_space<vmem>>, vector<1x8x8xf32>
    %354 = vector.shape_cast %353 : vector<1x8x8xf32> to vector<8x8xf32>
    %355 = arith.subf %354, %252 : vector<8x8xf32>
    %356 = vector.broadcast %101 : f32 to vector<8x8xf32>
    %357 = arith.mulf %308, %356 : vector<8x8xf32>
    %358 = arith.mulf %355, %357 : vector<8x8xf32>
    %359 = vector.broadcast %105 : f32 to vector<8x8xf32>
    %360 = arith.addf %358, %359 : vector<8x8xf32>
    %361 = vector.extract_strided_slice %61 {offsets = [0, 24], sizes = [8, 8], strides = [1, 1]} : vector<8x32xbf16> to vector<8x8xbf16>
    %362 = arith.truncf %360 : vector<8x8xf32> to vector<8x8xbf16>
    %cst_178 = arith.constant dense<0.000000e+00> : vector<8x8xf32>
    %363 = tpu.matmul %362, %361, %cst_178 {dimension_numbers = #tpu.dot_dimension_numbers<[1], [0], [0], [1], [0, 0, 1, 1], [], []>} : vector<8x8xbf16>, vector<8x8xbf16>, vector<8x8xf32> -> vector<8x8xf32>
    %364 = arith.truncf %363 : vector<8x8xf32> to vector<8x8xbf16>
    %c24 = arith.constant 24 : index
    %c0_179 = arith.constant 0 : index
    %365 = vector.load %arg11[%c24, %c0_179] : memref<32x32xbf16, #tpu.memory_space<vmem>>, vector<8x32xbf16>
    %cst_180 = arith.constant dense<0.000000e+00> : vector<8x32xf32>
    %366 = tpu.matmul %364, %365, %cst_180 {dimension_numbers = #tpu.dot_dimension_numbers<[1], [0], [0], [1], [0, 0, 1, 1], [], []>} : vector<8x8xbf16>, vector<8x32xbf16>, vector<8x32xf32> -> vector<8x32xf32>
    %367 = arith.addf %352, %366 : vector<8x32xf32>
    %c0_181 = arith.constant 0 : index
    %c0_182 = arith.constant 0 : index
    %368 = vector.load %arg12[%c0_181, %c0_182] : memref<1x32xf32, #tpu.memory_space<vmem>>, vector<1x32xf32>
    %369 = vector.broadcast %368 : vector<1x32xf32> to vector<8x32xf32>
    %370 = arith.addf %367, %369 : vector<8x32xf32>
    %371 = arith.addf %370, %1 : vector<8x32xf32>
    %c0_183 = arith.constant 0 : index
    %c0_184 = arith.constant 0 : index
    %372 = vector.load %arg13[%c0_183, %c0_184] : memref<1x32xf32, #tpu.memory_space<vmem>>, vector<1x32xf32>
    %c0_185 = arith.constant 0 : index
    %c0_186 = arith.constant 0 : index
    %373 = vector.load %arg14[%c0_185, %c0_186] : memref<1x32xf32, #tpu.memory_space<vmem>>, vector<1x32xf32>
    %cst_187 = arith.constant dense<0.000000e+00> : vector<8xf32>
    %374 = vector.multi_reduction <add>, %371, %cst_187 [1] : vector<8x32xf32> to vector<8xf32>
    %375 = vector.shape_cast %374 : vector<8xf32> to vector<8x1xf32>
    %cst_188 = arith.constant 3.200000e+01 : f32
    %376 = vector.broadcast %cst_188 : f32 to vector<8x1xf32>
    %377 = arith.divf %375, %376 : vector<8x1xf32>
    %378 = vector.broadcast %377 : vector<8x1xf32> to vector<8x32xf32>
    %379 = arith.subf %371, %378 : vector<8x32xf32>
    %380 = arith.mulf %379, %379 : vector<8x32xf32>
    %cst_189 = arith.constant dense<0.000000e+00> : vector<8xf32>
    %381 = vector.multi_reduction <add>, %380, %cst_189 [1] : vector<8x32xf32> to vector<8xf32>
    %382 = vector.shape_cast %381 : vector<8xf32> to vector<8x1xf32>
    %cst_190 = arith.constant 3.200000e+01 : f32
    %383 = vector.broadcast %cst_190 : f32 to vector<8x1xf32>
    %384 = arith.divf %382, %383 : vector<8x1xf32>
    %385 = vector.broadcast %377 : vector<8x1xf32> to vector<8x32xf32>
    %386 = arith.subf %371, %385 : vector<8x32xf32>
    %cst_191 = arith.constant 9.99999974E-6 : f32
    %387 = vector.broadcast %cst_191 : f32 to vector<8x1xf32>
    %388 = arith.addf %384, %387 : vector<8x1xf32>
    %389 = math.rsqrt %388 : vector<8x1xf32>
    %390 = vector.broadcast %389 : vector<8x1xf32> to vector<8x32xf32>
    %391 = arith.mulf %386, %390 : vector<8x32xf32>
    %392 = vector.broadcast %372 : vector<1x32xf32> to vector<8x32xf32>
    %393 = arith.mulf %391, %392 : vector<8x32xf32>
    %394 = vector.broadcast %373 : vector<1x32xf32> to vector<8x32xf32>
    %395 = arith.addf %393, %394 : vector<8x32xf32>
    %396 = arith.truncf %395 : vector<8x32xf32> to vector<8x32xbf16>
    %c0_192 = arith.constant 0 : index
    %c0_193 = arith.constant 0 : index
    %397 = vector.load %arg15[%c0_192, %c0_193] : memref<32x64xbf16, #tpu.memory_space<vmem>>, vector<32x64xbf16>
    %cst_194 = arith.constant dense<0.000000e+00> : vector<8x64xf32>
    %398 = tpu.matmul %396, %397, %cst_194 {dimension_numbers = #tpu.dot_dimension_numbers<[1], [0], [0], [1], [0, 0, 1, 1], [], []>} : vector<8x32xbf16>, vector<32x64xbf16>, vector<8x64xf32> -> vector<8x64xf32>
    %c0_195 = arith.constant 0 : index
    %c0_196 = arith.constant 0 : index
    %399 = vector.load %arg16[%c0_195, %c0_196] : memref<1x64xf32, #tpu.memory_space<vmem>>, vector<1x64xf32>
    %400 = vector.broadcast %399 : vector<1x64xf32> to vector<8x64xf32>
    %401 = arith.addf %398, %400 : vector<8x64xf32>
    %cst_197 = arith.constant 5.000000e-01 : f32
    %402 = vector.broadcast %cst_197 : f32 to vector<8x64xf32>
    %403 = arith.mulf %402, %401 : vector<8x64xf32>
    %cst_198 = arith.constant 0.707106769 : f32
    %404 = vector.broadcast %cst_198 : f32 to vector<8x64xf32>
    %405 = arith.mulf %401, %404 : vector<8x64xf32>
    %406 = math.absf %405 : vector<8x64xf32>
    %cst_199 = arith.constant 0.327591091 : f32
    %407 = vector.broadcast %cst_199 : f32 to vector<8x64xf32>
    %408 = arith.mulf %407, %406 : vector<8x64xf32>
    %cst_200 = arith.constant 1.000000e+00 : f32
    %409 = vector.broadcast %cst_200 : f32 to vector<8x64xf32>
    %410 = arith.addf %409, %408 : vector<8x64xf32>
    %411 = tpu.reciprocal %410 {approx = true} : vector<8x64xf32> -> vector<8x64xf32>
    %cst_201 = arith.constant 1.06140542 : f32
    %412 = vector.broadcast %cst_201 : f32 to vector<8x64xf32>
    %413 = arith.mulf %412, %411 : vector<8x64xf32>
    %cst_202 = arith.constant -1.45315206 : f32
    %414 = vector.broadcast %cst_202 : f32 to vector<8x64xf32>
    %415 = arith.addf %413, %414 : vector<8x64xf32>
    %416 = arith.mulf %415, %411 : vector<8x64xf32>
    %cst_203 = arith.constant 1.42141378 : f32
    %417 = vector.broadcast %cst_203 : f32 to vector<8x64xf32>
    %418 = arith.addf %416, %417 : vector<8x64xf32>
    %419 = arith.mulf %418, %411 : vector<8x64xf32>
    %cst_204 = arith.constant -0.284496725 : f32
    %420 = vector.broadcast %cst_204 : f32 to vector<8x64xf32>
    %421 = arith.addf %419, %420 : vector<8x64xf32>
    %422 = arith.mulf %421, %411 : vector<8x64xf32>
    %cst_205 = arith.constant 0.254829586 : f32
    %423 = vector.broadcast %cst_205 : f32 to vector<8x64xf32>
    %424 = arith.addf %422, %423 : vector<8x64xf32>
    %425 = arith.mulf %424, %411 : vector<8x64xf32>
    %cst_206 = arith.constant 0.000000e+00 : f32
    %426 = vector.broadcast %cst_206 : f32 to vector<8x64xf32>
    %427 = arith.subf %426, %406 : vector<8x64xf32>
    %428 = arith.mulf %427, %406 : vector<8x64xf32>
    %429 = math.exp %428 : vector<8x64xf32>
    %430 = arith.mulf %425, %429 : vector<8x64xf32>
    %cst_207 = arith.constant 1.000000e+00 : f32
    %431 = vector.broadcast %cst_207 : f32 to vector<8x64xf32>
    %432 = arith.subf %431, %430 : vector<8x64xf32>
    %cst_208 = arith.constant 0.000000e+00 : f32
    %433 = vector.broadcast %cst_208 : f32 to vector<8x64xf32>
    %434 = arith.cmpf oge, %405, %433 : vector<8x64xf32>
    %cst_209 = arith.constant 0.000000e+00 : f32
    %435 = vector.broadcast %cst_209 : f32 to vector<8x64xf32>
    %436 = arith.subf %435, %432 : vector<8x64xf32>
    %437 = arith.select %434, %432, %436 : vector<8x64xi1>, vector<8x64xf32>
    %cst_210 = arith.constant 1.000000e+00 : f32
    %438 = vector.broadcast %cst_210 : f32 to vector<8x64xf32>
    %439 = arith.addf %438, %437 : vector<8x64xf32>
    %440 = arith.mulf %403, %439 : vector<8x64xf32>
    %441 = arith.truncf %440 : vector<8x64xf32> to vector<8x64xbf16>
    %c0_211 = arith.constant 0 : index
    %c0_212 = arith.constant 0 : index
    %442 = vector.load %arg17[%c0_211, %c0_212] : memref<64x32xbf16, #tpu.memory_space<vmem>>, vector<64x32xbf16>
    %cst_213 = arith.constant dense<0.000000e+00> : vector<8x32xf32>
    %443 = tpu.matmul %441, %442, %cst_213 {dimension_numbers = #tpu.dot_dimension_numbers<[1], [0], [0], [1], [0, 0, 1, 1], [], []>} : vector<8x64xbf16>, vector<64x32xbf16>, vector<8x32xf32> -> vector<8x32xf32>
    %c0_214 = arith.constant 0 : index
    %c0_215 = arith.constant 0 : index
    %444 = vector.load %arg18[%c0_214, %c0_215] : memref<1x32xf32, #tpu.memory_space<vmem>>, vector<1x32xf32>
    %445 = vector.broadcast %444 : vector<1x32xf32> to vector<8x32xf32>
    %446 = arith.addf %443, %445 : vector<8x32xf32>
    %447 = arith.addf %446, %371 : vector<8x32xf32>
    %c0_216 = arith.constant 0 : index
    %c0_217 = arith.constant 0 : index
    %c0_218 = arith.constant 0 : index
    %448 = vector.load %arg19[%c0_216, %c0_217, %c0_218] : memref<1x8x32xf32, #tpu.memory_space<vmem>>, vector<1x8x32xf32>
    %449 = vector.shape_cast %448 : vector<1x8x32xf32> to vector<8x32xf32>
    %450 = vector.shape_cast %447 : vector<8x32xf32> to vector<1x8x32xf32>
    tpu.vector_store %arg19[%c0_216, %c0_217, %c0_218], %450 {strides = array<i32>} : memref<1x8x32xf32, #tpu.memory_space<vmem>>, vector<1x8x32xf32>,
    return
  }
  func.func @transform_0(%arg0: i32, %arg1: i32) -> (i32, i32, i32) {
    %c0_i32 = arith.constant 0 : i32
    %c0_i32_0 = arith.constant 0 : i32
    return %arg0, %arg1, %c0_i32 : i32, i32, i32
  }
  func.func @transform_1(%arg0: i32, %arg1: i32) -> (i32, i32, i32) {
    %c0_i32 = arith.constant 0 : i32
    %c0_i32_0 = arith.constant 0 : i32
    %c0_i32_1 = arith.constant 0 : i32
    return %arg0, %c0_i32, %c0_i32_0 : i32, i32, i32
  }
  func.func @transform_2(%arg0: i32, %arg1: i32) -> (i32, i32) {
    %c0_i32 = arith.constant 0 : i32
    %c0_i32_0 = arith.constant 0 : i32
    %c0_i32_1 = arith.constant 0 : i32
    return %c0_i32, %c0_i32_0 : i32, i32
  }
  func.func @transform_3(%arg0: i32, %arg1: i32) -> (i32, i32) {
    %c0_i32 = arith.constant 0 : i32
    %c0_i32_0 = arith.constant 0 : i32
    %c0_i32_1 = arith.constant 0 : i32
    return %c0_i32, %c0_i32_0 : i32, i32
  }
  func.func @transform_4(%arg0: i32, %arg1: i32) -> (i32, i32) {
    %c0_i32 = arith.constant 0 : i32
    %c0_i32_0 = arith.constant 0 : i32
    %c0_i32_1 = arith.constant 0 : i32
    return %c0_i32, %c0_i32_0 : i32, i32
  }
  func.func @transform_5(%arg0: i32, %arg1: i32) -> (i32, i32) {
    %c0_i32 = arith.constant 0 : i32
    %c0_i32_0 = arith.constant 0 : i32
    %c0_i32_1 = arith.constant 0 : i32
    return %c0_i32, %c0_i32_0 : i32, i32
  }
  func.func @transform_6(%arg0: i32, %arg1: i32) -> i32 {
    %c0_i32 = arith.constant 0 : i32
    %c0_i32_0 = arith.constant 0 : i32
    return %c0_i32 : i32
  }
  func.func @transform_7(%arg0: i32, %arg1: i32) -> i32 {
    %c0_i32 = arith.constant 0 : i32
    %c0_i32_0 = arith.constant 0 : i32
    return %c0_i32 : i32
  }
  func.func @transform_8(%arg0: i32, %arg1: i32) -> i32 {
    %c0_i32 = arith.constant 0 : i32
    %c0_i32_0 = arith.constant 0 : i32
    return %c0_i32 : i32
  }
  func.func @transform_9(%arg0: i32, %arg1: i32) -> (i32, i32) {
    %c0_i32 = arith.constant 0 : i32
    %c0_i32_0 = arith.constant 0 : i32
    %c0_i32_1 = arith.constant 0 : i32
    return %c0_i32, %c0_i32_0 : i32, i32
  }
  func.func @transform_10(%arg0: i32, %arg1: i32) -> (i32, i32) {
    %c0_i32 = arith.constant 0 : i32
    %c0_i32_0 = arith.constant 0 : i32
    %c0_i32_1 = arith.constant 0 : i32
    return %c0_i32, %c0_i32_0 : i32, i32
  }
  func.func @transform_11(%arg0: i32, %arg1: i32) -> (i32, i32) {
    %c0_i32 = arith.constant 0 : i32
    %c0_i32_0 = arith.constant 0 : i32
    %c0_i32_1 = arith.constant 0 : i32
    return %c0_i32, %c0_i32_0 : i32, i32
  }
  func.func @transform_12(%arg0: i32, %arg1: i32) -> (i32, i32) {
    %c0_i32 = arith.constant 0 : i32
    %c0_i32_0 = arith.constant 0 : i32
    %c0_i32_1 = arith.constant 0 : i32
    return %c0_i32, %c0_i32_0 : i32, i32
  }
  func.func @transform_13(%arg0: i32, %arg1: i32) -> (i32, i32) {
    %c0_i32 = arith.constant 0 : i32
    %c0_i32_0 = arith.constant 0 : i32
    %c0_i32_1 = arith.constant 0 : i32
    return %c0_i32, %c0_i32_0 : i32, i32
  }
  func.func @transform_14(%arg0: i32, %arg1: i32) -> (i32, i32) {
    %c0_i32 = arith.constant 0 : i32
    %c0_i32_0 = arith.constant 0 : i32
    %c0_i32_1 = arith.constant 0 : i32
    return %c0_i32, %c0_i32_0 : i32, i32
  }
  func.func @transform_15(%arg0: i32, %arg1: i32) -> (i32, i32) {
    %c0_i32 = arith.constant 0 : i32
    %c0_i32_0 = arith.constant 0 : i32
    %c0_i32_1 = arith.constant 0 : i32
    return %c0_i32, %c0_i32_0 : i32, i32
  }
  func.func @transform_16(%arg0: i32, %arg1: i32) -> (i32, i32) {
    %c0_i32 = arith.constant 0 : i32
    %c0_i32_0 = arith.constant 0 : i32
    %c0_i32_1 = arith.constant 0 : i32
    return %c0_i32, %c0_i32_0 : i32, i32
  }
  func.func @transform_17(%arg0: i32, %arg1: i32) -> (i32, i32, i32) {
    %c0_i32 = arith.constant 0 : i32
    %c0_i32_0 = arith.constant 0 : i32
    return %arg0, %arg1, %c0_i32 : i32, i32, i32
  }
}

module attributes {stable_mosaic.version = 11 : i64} {
  func.func @layer_kernel(%arg0: i32, %arg1: i32, %arg2: memref<1x8x32xf32, #tpu.memory_space<vmem>>, %arg3: memref<1x8x32xf32, #tpu.memory_space<vmem>>, %arg4: memref<1x32xf32, #tpu.memory_space<vmem>>, %arg5: memref<1x32xf32, #tpu.memory_space<vmem>>, %arg6: memref<32x32xbf16, #tpu.memory_space<vmem>>, %arg7: memref<32x64xbf16, #tpu.memory_space<vmem>>, %arg8: memref<16xf32, #tpu.memory_space<smem>>, %arg9: memref<4xf32, #tpu.memory_space<smem>>, %arg10: memref<4xf32, #tpu.memory_space<smem>>, %arg11: memref<32x32xbf16, #tpu.memory_space<vmem>>, %arg12: memref<1x32xf32, #tpu.memory_space<vmem>>, %arg13: memref<1x32xf32, #tpu.memory_space<vmem>>, %arg14: memref<1x32xf32, #tpu.memory_space<vmem>>, %arg15: memref<32x64xbf16, #tpu.memory_space<vmem>>, %arg16: memref<1x64xf32, #tpu.memory_space<vmem>>, %arg17: memref<64x32xbf16, #tpu.memory_space<vmem>>, %arg18: memref<1x32xf32, #tpu.memory_space<vmem>>, %arg19: memref<1x8x32xf32, #tpu.memory_space<vmem>>, %arg20: memref<4x8x8xf32, #tpu.memory_space<vmem>>) attributes {dimension_semantics = [#tpu.dimension_semantics<parallel>, #tpu.dimension_semantics<parallel>], iteration_bounds = array<i64: 2, 1>, scalar_prefetch = 0 : i64, scratch_operands = 1 : i64, tpu.core_type = #tpu.core_type<tc>, window_params = [{transform_indices = @transform_0, window_bounds = array<i64: 1, 8, 32>}, {transform_indices = @transform_1, window_bounds = array<i64: 1, 8, 32>}, {pipeline_mode = #tpu.pipeline_mode<synchronous>, transform_indices = @transform_2, window_bounds = array<i64: 1, 32>}, {pipeline_mode = #tpu.pipeline_mode<synchronous>, transform_indices = @transform_3, window_bounds = array<i64: 1, 32>}, {pipeline_mode = #tpu.pipeline_mode<synchronous>, transform_indices = @transform_4, window_bounds = array<i64: 32, 32>}, {pipeline_mode = #tpu.pipeline_mode<synchronous>, transform_indices = @transform_5, window_bounds = array<i64: 32, 64>}, {transform_indices = @transform_6, window_bounds = array<i64: 16>}, {transform_indices = @transform_7, window_bounds = array<i64: 4>}, {transform_indices = @transform_8, window_bounds = array<i64: 4>}, {pipeline_mode = #tpu.pipeline_mode<synchronous>, transform_indices = @transform_9, window_bounds = array<i64: 32, 32>}, {pipeline_mode = #tpu.pipeline_mode<synchronous>, transform_indices = @transform_10, window_bounds = array<i64: 1, 32>}, {pipeline_mode = #tpu.pipeline_mode<synchronous>, transform_indices = @transform_11, window_bounds = array<i64: 1, 32>}, {pipeline_mode = #tpu.pipeline_mode<synchronous>, transform_indices = @transform_12, window_bounds = array<i64: 1, 32>}, {pipeline_mode = #tpu.pipeline_mode<synchronous>, transform_indices = @transform_13, window_bounds = array<i64: 32, 64>}, {pipeline_mode = #tpu.pipeline_mode<synchronous>, transform_indices = @transform_14, window_bounds = array<i64: 1, 64>}, {pipeline_mode = #tpu.pipeline_mode<synchronous>, transform_indices = @transform_15, window_bounds = array<i64: 64, 32>}, {pipeline_mode = #tpu.pipeline_mode<synchronous>, transform_indices = @transform_16, window_bounds = array<i64: 1, 32>}, {transform_indices = @transform_17, window_bounds = array<i64: 1, 8, 32>}]} {
    %c0 = arith.constant 0 : index
    %c0_0 = arith.constant 0 : index
    %c0_1 = arith.constant 0 : index
    %0 = vector.load %arg2[%c0, %c0_0, %c0_1] : memref<1x8x32xf32, #tpu.memory_space<vmem>>, vector<1x8x32xf32>
    %1 = vector.shape_cast %0 : vector<1x8x32xf32> to vector<8x32xf32>
    %c0_2 = arith.constant 0 : index
    %c0_3 = arith.constant 0 : index
    %c0_4 = arith.constant 0 : index
    %2 = vector.load %arg3[%c0_2, %c0_3, %c0_4] : memref<1x8x32xf32, #tpu.memory_space<vmem>>, vector<1x8x32xf32>
    %3 = vector.shape_cast %2 : vector<1x8x32xf32> to vector<8x32xf32>
    %c0_5 = arith.constant 0 : index
    %c0_6 = arith.constant 0 : index
    %4 = vector.load %arg4[%c0_5, %c0_6] : memref<1x32xf32, #tpu.memory_space<vmem>>, vector<1x32xf32>
    %c0_7 = arith.constant 0 : index
    %c0_8 = arith.constant 0 : index
    %5 = vector.load %arg5[%c0_7, %c0_8] : memref<1x32xf32, #tpu.memory_space<vmem>>, vector<1x32xf32>
    %cst = arith.constant dense<0.000000e+00> : vector<8xf32>
    %6 = vector.multi_reduction <add>, %1, %cst [1] : vector<8x32xf32> to vector<8xf32>
    %7 = vector.shape_cast %6 : vector<8xf32> to vector<8x1xf32>
    %cst_9 = arith.constant 3.200000e+01 : f32
    %8 = vector.broadcast %cst_9 : f32 to vector<8x1xf32>
    %9 = arith.divf %7, %8 : vector<8x1xf32>
    %10 = vector.broadcast %9 : vector<8x1xf32> to vector<8x32xf32>
    %11 = arith.subf %1, %10 : vector<8x32xf32>
    %12 = arith.mulf %11, %11 : vector<8x32xf32>
    %cst_10 = arith.constant dense<0.000000e+00> : vector<8xf32>
    %13 = vector.multi_reduction <add>, %12, %cst_10 [1] : vector<8x32xf32> to vector<8xf32>
    %14 = vector.shape_cast %13 : vector<8xf32> to vector<8x1xf32>
    %cst_11 = arith.constant 3.200000e+01 : f32
    %15 = vector.broadcast %cst_11 : f32 to vector<8x1xf32>
    %16 = arith.divf %14, %15 : vector<8x1xf32>
    %17 = vector.broadcast %9 : vector<8x1xf32> to vector<8x32xf32>
    %18 = arith.subf %1, %17 : vector<8x32xf32>
    %cst_12 = arith.constant 9.99999974E-6 : f32
    %19 = vector.broadcast %cst_12 : f32 to vector<8x1xf32>
    %20 = arith.addf %16, %19 : vector<8x1xf32>
    %21 = math.rsqrt %20 : vector<8x1xf32>
    %22 = vector.broadcast %21 : vector<8x1xf32> to vector<8x32xf32>
    %23 = arith.mulf %18, %22 : vector<8x32xf32>
    %24 = vector.broadcast %4 : vector<1x32xf32> to vector<8x32xf32>
    %25 = arith.mulf %23, %24 : vector<8x32xf32>
    %26 = vector.broadcast %5 : vector<1x32xf32> to vector<8x32xf32>
    %27 = arith.addf %25, %26 : vector<8x32xf32>
    %c0_13 = arith.constant 0 : index
    %c0_14 = arith.constant 0 : index
    %28 = vector.load %arg4[%c0_13, %c0_14] : memref<1x32xf32, #tpu.memory_space<vmem>>, vector<1x32xf32>
    %c0_15 = arith.constant 0 : index
    %c0_16 = arith.constant 0 : index
    %29 = vector.load %arg5[%c0_15, %c0_16] : memref<1x32xf32, #tpu.memory_space<vmem>>, vector<1x32xf32>
    %cst_17 = arith.constant dense<0.000000e+00> : vector<8xf32>
    %30 = vector.multi_reduction <add>, %3, %cst_17 [1] : vector<8x32xf32> to vector<8xf32>
    %31 = vector.shape_cast %30 : vector<8xf32> to vector<8x1xf32>
    %cst_18 = arith.constant 3.200000e+01 : f32
    %32 = vector.broadcast %cst_18 : f32 to vector<8x1xf32>
    %33 = arith.divf %31, %32 : vector<8x1xf32>
    %34 = vector.broadcast %33 : vector<8x1xf32> to vector<8x32xf32>
    %35 = arith.subf %3, %34 : vector<8x32xf32>
    %36 = arith.mulf %35, %35 : vector<8x32xf32>
    %cst_19 = arith.constant dense<0.000000e+00> : vector<8xf32>
    %37 = vector.multi_reduction <add>, %36, %cst_19 [1] : vector<8x32xf32> to vector<8xf32>
    %38 = vector.shape_cast %37 : vector<8xf32> to vector<8x1xf32>
    %cst_20 = arith.constant 3.200000e+01 : f32
    %39 = vector.broadcast %cst_20 : f32 to vector<8x1xf32>
    %40 = arith.divf %38, %39 : vector<8x1xf32>
    %41 = vector.broadcast %33 : vector<8x1xf32> to vector<8x32xf32>
    %42 = arith.subf %3, %41 : vector<8x32xf32>
    %cst_21 = arith.constant 9.99999974E-6 : f32
    %43 = vector.broadcast %cst_21 : f32 to vector<8x1xf32>
    %44 = arith.addf %40, %43 : vector<8x1xf32>
    %45 = math.rsqrt %44 : vector<8x1xf32>
    %46 = vector.broadcast %45 : vector<8x1xf32> to vector<8x32xf32>
    %47 = arith.mulf %42, %46 : vector<8x32xf32>
    %48 = vector.broadcast %28 : vector<1x32xf32> to vector<8x32xf32>
    %49 = arith.mulf %47, %48 : vector<8x32xf32>
    %50 = vector.broadcast %29 : vector<1x32xf32> to vector<8x32xf32>
    %51 = arith.addf %49, %50 : vector<8x32xf32>
    %52 = arith.truncf %27 : vector<8x32xf32> to vector<8x32xbf16>
    %c0_22 = arith.constant 0 : index
    %c0_23 = arith.constant 0 : index
    %53 = vector.load %arg6[%c0_22, %c0_23] : memref<32x32xbf16, #tpu.memory_space<vmem>>, vector<32x32xbf16>
    %cst_24 = arith.constant dense<0.000000e+00> : vector<8x32xf32>
    %54 = tpu.matmul %52, %53, %cst_24 {dimension_numbers = #tpu.dot_dimension_numbers<[1], [0], [0], [1], [0, 0, 1, 1], [], []>} : vector<8x32xbf16>, vector<32x32xbf16>, vector<8x32xf32> -> vector<8x32xf32>
    %55 = arith.truncf %54 : vector<8x32xf32> to vector<8x32xbf16>
    %56 = arith.truncf %51 : vector<8x32xf32> to vector<8x32xbf16>
    %c0_25 = arith.constant 0 : index
    %c0_26 = arith.constant 0 : index
    %57 = vector.load %arg7[%c0_25, %c0_26] : memref<32x64xbf16, #tpu.memory_space<vmem>>, vector<32x64xbf16>
    %cst_27 = arith.constant dense<0.000000e+00> : vector<8x64xf32>
    %58 = tpu.matmul %56, %57, %cst_27 {dimension_numbers = #tpu.dot_dimension_numbers<[1], [0], [0], [1], [0, 0, 1, 1], [], []>} : vector<8x32xbf16>, vector<32x64xbf16>, vector<8x64xf32> -> vector<8x64xf32>
    %59 = arith.truncf %58 : vector<8x64xf32> to vector<8x64xbf16>
    %60 = vector.extract_strided_slice %59 {offsets = [0, 0], sizes = [8, 32], strides = [1, 1]} : vector<8x64xbf16> to vector<8x32xbf16>
    %61 = vector.extract_strided_slice %59 {offsets = [0, 32], sizes = [8, 32], strides = [1, 1]} : vector<8x64xbf16> to vector<8x32xbf16>
    %c0_28 = arith.constant 0 : index
    %62 = memref.load %arg8[%c0_28] : memref<16xf32, #tpu.memory_space<smem>>
    %c1 = arith.constant 1 : index
    %63 = memref.load %arg8[%c1] : memref<16xf32, #tpu.memory_space<smem>>
    %c2 = arith.constant 2 : index
    %64 = memref.load %arg8[%c2] : memref<16xf32, #tpu.memory_space<smem>>
    %c3 = arith.constant 3 : index
    %65 = memref.load %arg8[%c3] : memref<16xf32, #tpu.memory_space<smem>>
    %c4 = arith.constant 4 : index
    %66 = memref.load %arg8[%c4] : memref<16xf32, #tpu.memory_space<smem>>
    %c5 = arith.constant 5 : index
    %67 = memref.load %arg8[%c5] : memref<16xf32, #tpu.memory_space<smem>>
    %c6 = arith.constant 6 : index
    %68 = memref.load %arg8[%c6] : memref<16xf32, #tpu.memory_space<smem>>
    %c7 = arith.constant 7 : index
    %69 = memref.load %arg8[%c7] : memref<16xf32, #tpu.memory_space<smem>>
    %c8 = arith.constant 8 : index
    %70 = memref.load %arg8[%c8] : memref<16xf32, #tpu.memory_space<smem>>
    %c9 = arith.constant 9 : index
    %71 = memref.load %arg8[%c9] : memref<16xf32, #tpu.memory_space<smem>>
    %c10 = arith.constant 10 : index
    %72 = memref.load %arg8[%c10] : memref<16xf32, #tpu.memory_space<smem>>
    %c11 = arith.constant 11 : index
    %73 = memref.load %arg8[%c11] : memref<16xf32, #tpu.memory_space<smem>>
    %c12 = arith.constant 12 : index
    %74 = memref.load %arg8[%c12] : memref<16xf32, #tpu.memory_space<smem>>
    %c13 = arith.constant 13 : index
    %75 = memref.load %arg8[%c13] : memref<16xf32, #tpu.memory_space<smem>>
    %c14 = arith.constant 14 : index
    %76 = memref.load %arg8[%c14] : memref<16xf32, #tpu.memory_space<smem>>
    %c15 = arith.constant 15 : index
    %77 = memref.load %arg8[%c15] : memref<16xf32, #tpu.memory_space<smem>>
    %cst_29 = arith.constant 0.000000e+00 : f32
    %78 = arith.addf %cst_29, %62 : f32
    %79 = arith.addf %78, %63 : f32
    %80 = arith.addf %79, %64 : f32
    %81 = arith.addf %80, %65 : f32
    %cst_30 = arith.constant 2.500000e-01 : f32
    %82 = arith.mulf %81, %cst_30 : f32
    %cst_31 = arith.constant 0.000000e+00 : f32
    %83 = arith.addf %cst_31, %66 : f32
    %84 = arith.addf %83, %67 : f32
    %85 = arith.addf %84, %68 : f32
    %86 = arith.addf %85, %69 : f32
    %cst_32 = arith.constant 2.500000e-01 : f32
    %87 = arith.mulf %86, %cst_32 : f32
    %cst_33 = arith.constant 0.000000e+00 : f32
    %88 = arith.addf %cst_33, %70 : f32
    %89 = arith.addf %88, %71 : f32
    %90 = arith.addf %89, %72 : f32
    %91 = arith.addf %90, %73 : f32
    %cst_34 = arith.constant 2.500000e-01 : f32
    %92 = arith.mulf %91, %cst_34 : f32
    %cst_35 = arith.constant 0.000000e+00 : f32
    %93 = arith.addf %cst_35, %74 : f32
    %94 = arith.addf %93, %75 : f32
    %95 = arith.addf %94, %76 : f32
    %96 = arith.addf %95, %77 : f32
    %cst_36 = arith.constant 2.500000e-01 : f32
    %97 = arith.mulf %96, %cst_36 : f32
    %c0_37 = arith.constant 0 : index
    %98 = memref.load %arg9[%c0_37] : memref<4xf32, #tpu.memory_space<smem>>
    %c1_38 = arith.constant 1 : index
    %99 = memref.load %arg9[%c1_38] : memref<4xf32, #tpu.memory_space<smem>>
    %c2_39 = arith.constant 2 : index
    %100 = memref.load %arg9[%c2_39] : memref<4xf32, #tpu.memory_space<smem>>
    %c3_40 = arith.constant 3 : index
    %101 = memref.load %arg9[%c3_40] : memref<4xf32, #tpu.memory_space<smem>>
    %c0_41 = arith.constant 0 : index
    %102 = memref.load %arg10[%c0_41] : memref<4xf32, #tpu.memory_space<smem>>
    %c1_42 = arith.constant 1 : index
    %103 = memref.load %arg10[%c1_42] : memref<4xf32, #tpu.memory_space<smem>>
    %c2_43 = arith.constant 2 : index
    %104 = memref.load %arg10[%c2_43] : memref<4xf32, #tpu.memory_space<smem>>
    %c3_44 = arith.constant 3 : index
    %105 = memref.load %arg10[%c3_44] : memref<4xf32, #tpu.memory_space<smem>>
    %106 = vector.extract_strided_slice %55 {offsets = [0, 0], sizes = [8, 8], strides = [1, 1]} : vector<8x32xbf16> to vector<8x8xbf16>
    %107 = vector.extract_strided_slice %60 {offsets = [0, 0], sizes = [8, 8], strides = [1, 1]} : vector<8x32xbf16> to vector<8x8xbf16>
    %cst_45 = arith.constant dense<0.000000e+00> : vector<8x8xf32>
    %108 = tpu.matmul %106, %107, %cst_45 {dimension_numbers = #tpu.dot_dimension_numbers<[1], [1], [0], [0], [0, 0, 1, 0], [], []>} : vector<8x8xbf16>, vector<8x8xbf16>, vector<8x8xf32> -> vector<8x8xf32>
    %cst_46 = arith.constant dense<0xFF800000> : vector<8xf32>
    %109 = vector.multi_reduction <maximumf>, %108, %cst_46 [1] : vector<8x8xf32> to vector<8xf32>
    %110 = vector.shape_cast %109 : vector<8xf32> to vector<8x1xf32>
    %111 = vector.broadcast %110 : vector<8x1xf32> to vector<8x8xf32>
    %112 = arith.subf %108, %111 : vector<8x8xf32>
    %113 = math.exp %112 : vector<8x8xf32>
    %cst_47 = arith.constant dense<0.000000e+00> : vector<8xf32>
    %114 = vector.multi_reduction <add>, %113, %cst_47 [1] : vector<8x8xf32> to vector<8xf32>
    %115 = vector.shape_cast %114 : vector<8xf32> to vector<8x1xf32>
    %116 = tpu.reciprocal %115 {approx = true} : vector<8x1xf32> -> vector<8x1xf32>
    %117 = vector.broadcast %116 : vector<8x1xf32> to vector<8x8xf32>
    %118 = arith.mulf %113, %117 : vector<8x8xf32>
    %119 = vector.broadcast %82 : f32 to vector<8x8xf32>
    %120 = arith.mulf %118, %119 : vector<8x8xf32>
    %121 = vector.broadcast %62 : f32 to vector<8x8xf32>
    %122 = arith.mulf %121, %118 : vector<8x8xf32>
    %c0_48 = arith.constant 0 : index
    %c0_49 = arith.constant 0 : index
    %c0_50 = arith.constant 0 : index
    %123 = vector.load %arg20[%c0_48, %c0_49, %c0_50] : memref<4x8x8xf32, #tpu.memory_space<vmem>>, vector<1x8x8xf32>
    %124 = vector.shape_cast %123 : vector<1x8x8xf32> to vector<8x8xf32>
    %125 = vector.shape_cast %122 : vector<8x8xf32> to vector<1x8x8xf32>
    tpu.vector_store %arg20[%c0_48, %c0_49, %c0_50], %125 {strides = array<i32>} : memref<4x8x8xf32, #tpu.memory_space<vmem>>, vector<1x8x8xf32>,
    %126 = vector.broadcast %63 : f32 to vector<8x8xf32>
    %127 = arith.mulf %126, %118 : vector<8x8xf32>
    %c1_51 = arith.constant 1 : index
    %c0_52 = arith.constant 0 : index
    %c0_53 = arith.constant 0 : index
    %128 = vector.load %arg20[%c1_51, %c0_52, %c0_53] : memref<4x8x8xf32, #tpu.memory_space<vmem>>, vector<1x8x8xf32>
    %129 = vector.shape_cast %128 : vector<1x8x8xf32> to vector<8x8xf32>
    %130 = vector.shape_cast %127 : vector<8x8xf32> to vector<1x8x8xf32>
    tpu.vector_store %arg20[%c1_51, %c0_52, %c0_53], %130 {strides = array<i32>} : memref<4x8x8xf32, #tpu.memory_space<vmem>>, vector<1x8x8xf32>,
    %131 = vector.broadcast %64 : f32 to vector<8x8xf32>
    %132 = arith.mulf %131, %118 : vector<8x8xf32>
    %c2_54 = arith.constant 2 : index
    %c0_55 = arith.constant 0 : index
    %c0_56 = arith.constant 0 : index
    %133 = vector.load %arg20[%c2_54, %c0_55, %c0_56] : memref<4x8x8xf32, #tpu.memory_space<vmem>>, vector<1x8x8xf32>
    %134 = vector.shape_cast %133 : vector<1x8x8xf32> to vector<8x8xf32>
    %135 = vector.shape_cast %132 : vector<8x8xf32> to vector<1x8x8xf32>
    tpu.vector_store %arg20[%c2_54, %c0_55, %c0_56], %135 {strides = array<i32>} : memref<4x8x8xf32, #tpu.memory_space<vmem>>, vector<1x8x8xf32>,
    %136 = vector.broadcast %65 : f32 to vector<8x8xf32>
    %137 = arith.mulf %136, %118 : vector<8x8xf32>
    %c3_57 = arith.constant 3 : index
    %c0_58 = arith.constant 0 : index
    %c0_59 = arith.constant 0 : index
    %138 = vector.load %arg20[%c3_57, %c0_58, %c0_59] : memref<4x8x8xf32, #tpu.memory_space<vmem>>, vector<1x8x8xf32>
    %139 = vector.shape_cast %138 : vector<1x8x8xf32> to vector<8x8xf32>
    %140 = vector.shape_cast %137 : vector<8x8xf32> to vector<1x8x8xf32>
    tpu.vector_store %arg20[%c3_57, %c0_58, %c0_59], %140 {strides = array<i32>} : memref<4x8x8xf32, #tpu.memory_space<vmem>>, vector<1x8x8xf32>,
    %141 = vector.extract_strided_slice %55 {offsets = [0, 8], sizes = [8, 8], strides = [1, 1]} : vector<8x32xbf16> to vector<8x8xbf16>
    %142 = vector.extract_strided_slice %60 {offsets = [0, 8], sizes = [8, 8], strides = [1, 1]} : vector<8x32xbf16> to vector<8x8xbf16>
    %cst_60 = arith.constant dense<0.000000e+00> : vector<8x8xf32>
    %143 = tpu.matmul %141, %142, %cst_60 {dimension_numbers = #tpu.dot_dimension_numbers<[1], [1], [0], [0], [0, 0, 1, 0], [], []>} : vector<8x8xbf16>, vector<8x8xbf16>, vector<8x8xf32> -> vector<8x8xf32>
    %cst_61 = arith.constant dense<0xFF800000> : vector<8xf32>
    %144 = vector.multi_reduction <maximumf>, %143, %cst_61 [1] : vector<8x8xf32> to vector<8xf32>
    %145 = vector.shape_cast %144 : vector<8xf32> to vector<8x1xf32>
    %146 = vector.broadcast %145 : vector<8x1xf32> to vector<8x8xf32>
    %147 = arith.subf %143, %146 : vector<8x8xf32>
    %148 = math.exp %147 : vector<8x8xf32>
    %cst_62 = arith.constant dense<0.000000e+00> : vector<8xf32>
    %149 = vector.multi_reduction <add>, %148, %cst_62 [1] : vector<8x8xf32> to vector<8xf32>
    %150 = vector.shape_cast %149 : vector<8xf32> to vector<8x1xf32>
    %151 = tpu.reciprocal %150 {approx = true} : vector<8x1xf32> -> vector<8x1xf32>
    %152 = vector.broadcast %151 : vector<8x1xf32> to vector<8x8xf32>
    %153 = arith.mulf %148, %152 : vector<8x8xf32>
    %154 = vector.broadcast %87 : f32 to vector<8x8xf32>
    %155 = arith.mulf %153, %154 : vector<8x8xf32>
    %156 = arith.addf %120, %155 : vector<8x8xf32>
    %c0_63 = arith.constant 0 : index
    %c0_64 = arith.constant 0 : index
    %c0_65 = arith.constant 0 : index
    %157 = vector.load %arg20[%c0_63, %c0_64, %c0_65] : memref<4x8x8xf32, #tpu.memory_space<vmem>>, vector<1x8x8xf32>
    %158 = vector.shape_cast %157 : vector<1x8x8xf32> to vector<8x8xf32>
    %159 = vector.broadcast %66 : f32 to vector<8x8xf32>
    %160 = arith.mulf %159, %153 : vector<8x8xf32>
    %161 = arith.addf %158, %160 : vector<8x8xf32>
    %c0_66 = arith.constant 0 : index
    %c0_67 = arith.constant 0 : index
    %c0_68 = arith.constant 0 : index
    %162 = vector.load %arg20[%c0_66, %c0_67, %c0_68] : memref<4x8x8xf32, #tpu.memory_space<vmem>>, vector<1x8x8xf32>
    %163 = vector.shape_cast %162 : vector<1x8x8xf32> to vector<8x8xf32>
    %164 = vector.shape_cast %161 : vector<8x8xf32> to vector<1x8x8xf32>
    tpu.vector_store %arg20[%c0_66, %c0_67, %c0_68], %164 {strides = array<i32>} : memref<4x8x8xf32, #tpu.memory_space<vmem>>, vector<1x8x8xf32>,
    %c1_69 = arith.constant 1 : index
    %c0_70 = arith.constant 0 : index
    %c0_71 = arith.constant 0 : index
    %165 = vector.load %arg20[%c1_69, %c0_70, %c0_71] : memref<4x8x8xf32, #tpu.memory_space<vmem>>, vector<1x8x8xf32>
    %166 = vector.shape_cast %165 : vector<1x8x8xf32> to vector<8x8xf32>
    %167 = vector.broadcast %67 : f32 to vector<8x8xf32>
    %168 = arith.mulf %167, %153 : vector<8x8xf32>
    %169 = arith.addf %166, %168 : vector<8x8xf32>
    %c1_72 = arith.constant 1 : index
    %c0_73 = arith.constant 0 : index
    %c0_74 = arith.constant 0 : index
    %170 = vector.load %arg20[%c1_72, %c0_73, %c0_74] : memref<4x8x8xf32, #tpu.memory_space<vmem>>, vector<1x8x8xf32>
    %171 = vector.shape_cast %170 : vector<1x8x8xf32> to vector<8x8xf32>
    %172 = vector.shape_cast %169 : vector<8x8xf32> to vector<1x8x8xf32>
    tpu.vector_store %arg20[%c1_72, %c0_73, %c0_74], %172 {strides = array<i32>} : memref<4x8x8xf32, #tpu.memory_space<vmem>>, vector<1x8x8xf32>,
    %c2_75 = arith.constant 2 : index
    %c0_76 = arith.constant 0 : index
    %c0_77 = arith.constant 0 : index
    %173 = vector.load %arg20[%c2_75, %c0_76, %c0_77] : memref<4x8x8xf32, #tpu.memory_space<vmem>>, vector<1x8x8xf32>
    %174 = vector.shape_cast %173 : vector<1x8x8xf32> to vector<8x8xf32>
    %175 = vector.broadcast %68 : f32 to vector<8x8xf32>
    %176 = arith.mulf %175, %153 : vector<8x8xf32>
    %177 = arith.addf %174, %176 : vector<8x8xf32>
    %c2_78 = arith.constant 2 : index
    %c0_79 = arith.constant 0 : index
    %c0_80 = arith.constant 0 : index
    %178 = vector.load %arg20[%c2_78, %c0_79, %c0_80] : memref<4x8x8xf32, #tpu.memory_space<vmem>>, vector<1x8x8xf32>
    %179 = vector.shape_cast %178 : vector<1x8x8xf32> to vector<8x8xf32>
    %180 = vector.shape_cast %177 : vector<8x8xf32> to vector<1x8x8xf32>
    tpu.vector_store %arg20[%c2_78, %c0_79, %c0_80], %180 {strides = array<i32>} : memref<4x8x8xf32, #tpu.memory_space<vmem>>, vector<1x8x8xf32>,
    %c3_81 = arith.constant 3 : index
    %c0_82 = arith.constant 0 : index
    %c0_83 = arith.constant 0 : index
    %181 = vector.load %arg20[%c3_81, %c0_82, %c0_83] : memref<4x8x8xf32, #tpu.memory_space<vmem>>, vector<1x8x8xf32>
    %182 = vector.shape_cast %181 : vector<1x8x8xf32> to vector<8x8xf32>
    %183 = vector.broadcast %69 : f32 to vector<8x8xf32>
    %184 = arith.mulf %183, %153 : vector<8x8xf32>
    %185 = arith.addf %182, %184 : vector<8x8xf32>
    %c3_84 = arith.constant 3 : index
    %c0_85 = arith.constant 0 : index
    %c0_86 = arith.constant 0 : index
    %186 = vector.load %arg20[%c3_84, %c0_85, %c0_86] : memref<4x8x8xf32, #tpu.memory_space<vmem>>, vector<1x8x8xf32>
    %187 = vector.shape_cast %186 : vector<1x8x8xf32> to vector<8x8xf32>
    %188 = vector.shape_cast %185 : vector<8x8xf32> to vector<1x8x8xf32>
    tpu.vector_store %arg20[%c3_84, %c0_85, %c0_86], %188 {strides = array<i32>} : memref<4x8x8xf32, #tpu.memory_space<vmem>>, vector<1x8x8xf32>,
    %189 = vector.extract_strided_slice %55 {offsets = [0, 16], sizes = [8, 8], strides = [1, 1]} : vector<8x32xbf16> to vector<8x8xbf16>
    %190 = vector.extract_strided_slice %60 {offsets = [0, 16], sizes = [8, 8], strides = [1, 1]} : vector<8x32xbf16> to vector<8x8xbf16>
    %cst_87 = arith.constant dense<0.000000e+00> : vector<8x8xf32>
    %191 = tpu.matmul %189, %190, %cst_87 {dimension_numbers = #tpu.dot_dimension_numbers<[1], [1], [0], [0], [0, 0, 1, 0], [], []>} : vector<8x8xbf16>, vector<8x8xbf16>, vector<8x8xf32> -> vector<8x8xf32>
    %cst_88 = arith.constant dense<0xFF800000> : vector<8xf32>
    %192 = vector.multi_reduction <maximumf>, %191, %cst_88 [1] : vector<8x8xf32> to vector<8xf32>
    %193 = vector.shape_cast %192 : vector<8xf32> to vector<8x1xf32>
    %194 = vector.broadcast %193 : vector<8x1xf32> to vector<8x8xf32>
    %195 = arith.subf %191, %194 : vector<8x8xf32>
    %196 = math.exp %195 : vector<8x8xf32>
    %cst_89 = arith.constant dense<0.000000e+00> : vector<8xf32>
    %197 = vector.multi_reduction <add>, %196, %cst_89 [1] : vector<8x8xf32> to vector<8xf32>
    %198 = vector.shape_cast %197 : vector<8xf32> to vector<8x1xf32>
    %199 = tpu.reciprocal %198 {approx = true} : vector<8x1xf32> -> vector<8x1xf32>
    %200 = vector.broadcast %199 : vector<8x1xf32> to vector<8x8xf32>
    %201 = arith.mulf %196, %200 : vector<8x8xf32>
    %202 = vector.broadcast %92 : f32 to vector<8x8xf32>
    %203 = arith.mulf %201, %202 : vector<8x8xf32>
    %204 = arith.addf %156, %203 : vector<8x8xf32>
    %c0_90 = arith.constant 0 : index
    %c0_91 = arith.constant 0 : index
    %c0_92 = arith.constant 0 : index
    %205 = vector.load %arg20[%c0_90, %c0_91, %c0_92] : memref<4x8x8xf32, #tpu.memory_space<vmem>>, vector<1x8x8xf32>
    %206 = vector.shape_cast %205 : vector<1x8x8xf32> to vector<8x8xf32>
    %207 = vector.broadcast %70 : f32 to vector<8x8xf32>
    %208 = arith.mulf %207, %201 : vector<8x8xf32>
    %209 = arith.addf %206, %208 : vector<8x8xf32>
    %c0_93 = arith.constant 0 : index
    %c0_94 = arith.constant 0 : index
    %c0_95 = arith.constant 0 : index
    %210 = vector.load %arg20[%c0_93, %c0_94, %c0_95] : memref<4x8x8xf32, #tpu.memory_space<vmem>>, vector<1x8x8xf32>
    %211 = vector.shape_cast %210 : vector<1x8x8xf32> to vector<8x8xf32>
    %212 = vector.shape_cast %209 : vector<8x8xf32> to vector<1x8x8xf32>
    tpu.vector_store %arg20[%c0_93, %c0_94, %c0_95], %212 {strides = array<i32>} : memref<4x8x8xf32, #tpu.memory_space<vmem>>, vector<1x8x8xf32>,
    %c1_96 = arith.constant 1 : index
    %c0_97 = arith.constant 0 : index
    %c0_98 = arith.constant 0 : index
    %213 = vector.load %arg20[%c1_96, %c0_97, %c0_98] : memref<4x8x8xf32, #tpu.memory_space<vmem>>, vector<1x8x8xf32>
    %214 = vector.shape_cast %213 : vector<1x8x8xf32> to vector<8x8xf32>
    %215 = vector.broadcast %71 : f32 to vector<8x8xf32>
    %216 = arith.mulf %215, %201 : vector<8x8xf32>
    %217 = arith.addf %214, %216 : vector<8x8xf32>
    %c1_99 = arith.constant 1 : index
    %c0_100 = arith.constant 0 : index
    %c0_101 = arith.constant 0 : index
    %218 = vector.load %arg20[%c1_99, %c0_100, %c0_101] : memref<4x8x8xf32, #tpu.memory_space<vmem>>, vector<1x8x8xf32>
    %219 = vector.shape_cast %218 : vector<1x8x8xf32> to vector<8x8xf32>
    %220 = vector.shape_cast %217 : vector<8x8xf32> to vector<1x8x8xf32>
    tpu.vector_store %arg20[%c1_99, %c0_100, %c0_101], %220 {strides = array<i32>} : memref<4x8x8xf32, #tpu.memory_space<vmem>>, vector<1x8x8xf32>,
    %c2_102 = arith.constant 2 : index
    %c0_103 = arith.constant 0 : index
    %c0_104 = arith.constant 0 : index
    %221 = vector.load %arg20[%c2_102, %c0_103, %c0_104] : memref<4x8x8xf32, #tpu.memory_space<vmem>>, vector<1x8x8xf32>
    %222 = vector.shape_cast %221 : vector<1x8x8xf32> to vector<8x8xf32>
    %223 = vector.broadcast %72 : f32 to vector<8x8xf32>
    %224 = arith.mulf %223, %201 : vector<8x8xf32>
    %225 = arith.addf %222, %224 : vector<8x8xf32>
    %c2_105 = arith.constant 2 : index
    %c0_106 = arith.constant 0 : index
    %c0_107 = arith.constant 0 : index
    %226 = vector.load %arg20[%c2_105, %c0_106, %c0_107] : memref<4x8x8xf32, #tpu.memory_space<vmem>>, vector<1x8x8xf32>
    %227 = vector.shape_cast %226 : vector<1x8x8xf32> to vector<8x8xf32>
    %228 = vector.shape_cast %225 : vector<8x8xf32> to vector<1x8x8xf32>
    tpu.vector_store %arg20[%c2_105, %c0_106, %c0_107], %228 {strides = array<i32>} : memref<4x8x8xf32, #tpu.memory_space<vmem>>, vector<1x8x8xf32>,
    %c3_108 = arith.constant 3 : index
    %c0_109 = arith.constant 0 : index
    %c0_110 = arith.constant 0 : index
    %229 = vector.load %arg20[%c3_108, %c0_109, %c0_110] : memref<4x8x8xf32, #tpu.memory_space<vmem>>, vector<1x8x8xf32>
    %230 = vector.shape_cast %229 : vector<1x8x8xf32> to vector<8x8xf32>
    %231 = vector.broadcast %73 : f32 to vector<8x8xf32>
    %232 = arith.mulf %231, %201 : vector<8x8xf32>
    %233 = arith.addf %230, %232 : vector<8x8xf32>
    %c3_111 = arith.constant 3 : index
    %c0_112 = arith.constant 0 : index
    %c0_113 = arith.constant 0 : index
    %234 = vector.load %arg20[%c3_111, %c0_112, %c0_113] : memref<4x8x8xf32, #tpu.memory_space<vmem>>, vector<1x8x8xf32>
    %235 = vector.shape_cast %234 : vector<1x8x8xf32> to vector<8x8xf32>
    %236 = vector.shape_cast %233 : vector<8x8xf32> to vector<1x8x8xf32>
    tpu.vector_store %arg20[%c3_111, %c0_112, %c0_113], %236 {strides = array<i32>} : memref<4x8x8xf32, #tpu.memory_space<vmem>>, vector<1x8x8xf32>,
    %237 = vector.extract_strided_slice %55 {offsets = [0, 24], sizes = [8, 8], strides = [1, 1]} : vector<8x32xbf16> to vector<8x8xbf16>
    %238 = vector.extract_strided_slice %60 {offsets = [0, 24], sizes = [8, 8], strides = [1, 1]} : vector<8x32xbf16> to vector<8x8xbf16>
    %cst_114 = arith.constant dense<0.000000e+00> : vector<8x8xf32>
    %239 = tpu.matmul %237, %238, %cst_114 {dimension_numbers = #tpu.dot_dimension_numbers<[1], [1], [0], [0], [0, 0, 1, 0], [], []>} : vector<8x8xbf16>, vector<8x8xbf16>, vector<8x8xf32> -> vector<8x8xf32>
    %cst_115 = arith.constant dense<0xFF800000> : vector<8xf32>
    %240 = vector.multi_reduction <maximumf>, %239, %cst_115 [1] : vector<8x8xf32> to vector<8xf32>
    %241 = vector.shape_cast %240 : vector<8xf32> to vector<8x1xf32>
    %242 = vector.broadcast %241 : vector<8x1xf32> to vector<8x8xf32>
    %243 = arith.subf %239, %242 : vector<8x8xf32>
    %244 = math.exp %243 : vector<8x8xf32>
    %cst_116 = arith.constant dense<0.000000e+00> : vector<8xf32>
    %245 = vector.multi_reduction <add>, %244, %cst_116 [1] : vector<8x8xf32> to vector<8xf32>
    %246 = vector.shape_cast %245 : vector<8xf32> to vector<8x1xf32>
    %247 = tpu.reciprocal %246 {approx = true} : vector<8x1xf32> -> vector<8x1xf32>
    %248 = vector.broadcast %247 : vector<8x1xf32> to vector<8x8xf32>
    %249 = arith.mulf %244, %248 : vector<8x8xf32>
    %250 = vector.broadcast %97 : f32 to vector<8x8xf32>
    %251 = arith.mulf %249, %250 : vector<8x8xf32>
    %252 = arith.addf %204, %251 : vector<8x8xf32>
    %c0_117 = arith.constant 0 : index
    %c0_118 = arith.constant 0 : index
    %c0_119 = arith.constant 0 : index
    %253 = vector.load %arg20[%c0_117, %c0_118, %c0_119] : memref<4x8x8xf32, #tpu.memory_space<vmem>>, vector<1x8x8xf32>
    %254 = vector.shape_cast %253 : vector<1x8x8xf32> to vector<8x8xf32>
    %255 = vector.broadcast %74 : f32 to vector<8x8xf32>
    %256 = arith.mulf %255, %249 : vector<8x8xf32>
    %257 = arith.addf %254, %256 : vector<8x8xf32>
    %c0_120 = arith.constant 0 : index
    %c0_121 = arith.constant 0 : index
    %c0_122 = arith.constant 0 : index
    %258 = vector.load %arg20[%c0_120, %c0_121, %c0_122] : memref<4x8x8xf32, #tpu.memory_space<vmem>>, vector<1x8x8xf32>
    %259 = vector.shape_cast %258 : vector<1x8x8xf32> to vector<8x8xf32>
    %260 = vector.shape_cast %257 : vector<8x8xf32> to vector<1x8x8xf32>
    tpu.vector_store %arg20[%c0_120, %c0_121, %c0_122], %260 {strides = array<i32>} : memref<4x8x8xf32, #tpu.memory_space<vmem>>, vector<1x8x8xf32>,
    %c1_123 = arith.constant 1 : index
    %c0_124 = arith.constant 0 : index
    %c0_125 = arith.constant 0 : index
    %261 = vector.load %arg20[%c1_123, %c0_124, %c0_125] : memref<4x8x8xf32, #tpu.memory_space<vmem>>, vector<1x8x8xf32>
    %262 = vector.shape_cast %261 : vector<1x8x8xf32> to vector<8x8xf32>
    %263 = vector.broadcast %75 : f32 to vector<8x8xf32>
    %264 = arith.mulf %263, %249 : vector<8x8xf32>
    %265 = arith.addf %262, %264 : vector<8x8xf32>
    %c1_126 = arith.constant 1 : index
    %c0_127 = arith.constant 0 : index
    %c0_128 = arith.constant 0 : index
    %266 = vector.load %arg20[%c1_126, %c0_127, %c0_128] : memref<4x8x8xf32, #tpu.memory_space<vmem>>, vector<1x8x8xf32>
    %267 = vector.shape_cast %266 : vector<1x8x8xf32> to vector<8x8xf32>
    %268 = vector.shape_cast %265 : vector<8x8xf32> to vector<1x8x8xf32>
    tpu.vector_store %arg20[%c1_126, %c0_127, %c0_128], %268 {strides = array<i32>} : memref<4x8x8xf32, #tpu.memory_space<vmem>>, vector<1x8x8xf32>,
    %c2_129 = arith.constant 2 : index
    %c0_130 = arith.constant 0 : index
    %c0_131 = arith.constant 0 : index
    %269 = vector.load %arg20[%c2_129, %c0_130, %c0_131] : memref<4x8x8xf32, #tpu.memory_space<vmem>>, vector<1x8x8xf32>
    %270 = vector.shape_cast %269 : vector<1x8x8xf32> to vector<8x8xf32>
    %271 = vector.broadcast %76 : f32 to vector<8x8xf32>
    %272 = arith.mulf %271, %249 : vector<8x8xf32>
    %273 = arith.addf %270, %272 : vector<8x8xf32>
    %c2_132 = arith.constant 2 : index
    %c0_133 = arith.constant 0 : index
    %c0_134 = arith.constant 0 : index
    %274 = vector.load %arg20[%c2_132, %c0_133, %c0_134] : memref<4x8x8xf32, #tpu.memory_space<vmem>>, vector<1x8x8xf32>
    %275 = vector.shape_cast %274 : vector<1x8x8xf32> to vector<8x8xf32>
    %276 = vector.shape_cast %273 : vector<8x8xf32> to vector<1x8x8xf32>
    tpu.vector_store %arg20[%c2_132, %c0_133, %c0_134], %276 {strides = array<i32>} : memref<4x8x8xf32, #tpu.memory_space<vmem>>, vector<1x8x8xf32>,
    %c3_135 = arith.constant 3 : index
    %c0_136 = arith.constant 0 : index
    %c0_137 = arith.constant 0 : index
    %277 = vector.load %arg20[%c3_135, %c0_136, %c0_137] : memref<4x8x8xf32, #tpu.memory_space<vmem>>, vector<1x8x8xf32>
    %278 = vector.shape_cast %277 : vector<1x8x8xf32> to vector<8x8xf32>
    %279 = vector.broadcast %77 : f32 to vector<8x8xf32>
    %280 = arith.mulf %279, %249 : vector<8x8xf32>
    %281 = arith.addf %278, %280 : vector<8x8xf32>
    %c3_138 = arith.constant 3 : index
    %c0_139 = arith.constant 0 : index
    %c0_140 = arith.constant 0 : index
    %282 = vector.load %arg20[%c3_138, %c0_139, %c0_140] : memref<4x8x8xf32, #tpu.memory_space<vmem>>, vector<1x8x8xf32>
    %283 = vector.shape_cast %282 : vector<1x8x8xf32> to vector<8x8xf32>
    %284 = vector.shape_cast %281 : vector<8x8xf32> to vector<1x8x8xf32>
    tpu.vector_store %arg20[%c3_138, %c0_139, %c0_140], %284 {strides = array<i32>} : memref<4x8x8xf32, #tpu.memory_space<vmem>>, vector<1x8x8xf32>,
    %c0_141 = arith.constant 0 : index
    %c0_142 = arith.constant 0 : index
    %c0_143 = arith.constant 0 : index
    %285 = vector.load %arg20[%c0_141, %c0_142, %c0_143] : memref<4x8x8xf32, #tpu.memory_space<vmem>>, vector<1x8x8xf32>
    %286 = vector.shape_cast %285 : vector<1x8x8xf32> to vector<8x8xf32>
    %287 = arith.subf %286, %252 : vector<8x8xf32>
    %288 = arith.mulf %287, %287 : vector<8x8xf32>
    %c1_144 = arith.constant 1 : index
    %c0_145 = arith.constant 0 : index
    %c0_146 = arith.constant 0 : index
    %289 = vector.load %arg20[%c1_144, %c0_145, %c0_146] : memref<4x8x8xf32, #tpu.memory_space<vmem>>, vector<1x8x8xf32>
    %290 = vector.shape_cast %289 : vector<1x8x8xf32> to vector<8x8xf32>
    %291 = arith.subf %290, %252 : vector<8x8xf32>
    %292 = arith.mulf %291, %291 : vector<8x8xf32>
    %293 = arith.addf %288, %292 : vector<8x8xf32>
    %c2_147 = arith.constant 2 : index
    %c0_148 = arith.constant 0 : index
    %c0_149 = arith.constant 0 : index
    %294 = vector.load %arg20[%c2_147, %c0_148, %c0_149] : memref<4x8x8xf32, #tpu.memory_space<vmem>>, vector<1x8x8xf32>
    %295 = vector.shape_cast %294 : vector<1x8x8xf32> to vector<8x8xf32>
    %296 = arith.subf %295, %252 : vector<8x8xf32>
    %297 = arith.mulf %296, %296 : vector<8x8xf32>
    %298 = arith.addf %293, %297 : vector<8x8xf32>
    %c3_150 = arith.constant 3 : index
    %c0_151 = arith.constant 0 : index
    %c0_152 = arith.constant 0 : index
    %299 = vector.load %arg20[%c3_150, %c0_151, %c0_152] : memref<4x8x8xf32, #tpu.memory_space<vmem>>, vector<1x8x8xf32>
    %300 = vector.shape_cast %299 : vector<1x8x8xf32> to vector<8x8xf32>
    %301 = arith.subf %300, %252 : vector<8x8xf32>
    %302 = arith.mulf %301, %301 : vector<8x8xf32>
    %303 = arith.addf %298, %302 : vector<8x8xf32>
    %cst_153 = arith.constant 2.500000e-01 : f32
    %304 = vector.broadcast %cst_153 : f32 to vector<8x8xf32>
    %305 = arith.mulf %303, %304 : vector<8x8xf32>
    %cst_154 = arith.constant 9.99999974E-6 : f32
    %306 = vector.broadcast %cst_154 : f32 to vector<8x8xf32>
    %307 = arith.addf %305, %306 : vector<8x8xf32>
    %308 = math.rsqrt %307 : vector<8x8xf32>
    %c0_155 = arith.constant 0 : index
    %c0_156 = arith.constant 0 : index
    %c0_157 = arith.constant 0 : index
    %309 = vector.load %arg20[%c0_155, %c0_156, %c0_157] : memref<4x8x8xf32, #tpu.memory_space<vmem>>, vector<1x8x8xf32>
    %310 = vector.shape_cast %309 : vector<1x8x8xf32> to vector<8x8xf32>
    %311 = arith.subf %310, %252 : vector<8x8xf32>
    %312 = vector.broadcast %98 : f32 to vector<8x8xf32>
    %313 = arith.mulf %308, %312 : vector<8x8xf32>
    %314 = arith.mulf %311, %313 : vector<8x8xf32>
    %315 = vector.broadcast %102 : f32 to vector<8x8xf32>
    %316 = arith.addf %314, %315 : vector<8x8xf32>
    %317 = vector.extract_strided_slice %61 {offsets = [0, 0], sizes = [8, 8], strides = [1, 1]} : vector<8x32xbf16> to vector<8x8xbf16>
    %318 = arith.truncf %316 : vector<8x8xf32> to vector<8x8xbf16>
    %cst_158 = arith.constant dense<0.000000e+00> : vector<8x8xf32>
    %319 = tpu.matmul %318, %317, %cst_158 {dimension_numbers = #tpu.dot_dimension_numbers<[1], [0], [0], [1], [0, 0, 1, 1], [], []>} : vector<8x8xbf16>, vector<8x8xbf16>, vector<8x8xf32> -> vector<8x8xf32>
    %320 = arith.truncf %319 : vector<8x8xf32> to vector<8x8xbf16>
    %c0_159 = arith.constant 0 : index
    %c0_160 = arith.constant 0 : index
    %321 = vector.load %arg11[%c0_159, %c0_160] : memref<32x32xbf16, #tpu.memory_space<vmem>>, vector<8x32xbf16>
    %cst_161 = arith.constant dense<0.000000e+00> : vector<8x32xf32>
    %322 = tpu.matmul %320, %321, %cst_161 {dimension_numbers = #tpu.dot_dimension_numbers<[1], [0], [0], [1], [0, 0, 1, 1], [], []>} : vector<8x8xbf16>, vector<8x32xbf16>, vector<8x32xf32> -> vector<8x32xf32>
    %c1_162 = arith.constant 1 : index
    %c0_163 = arith.constant 0 : index
    %c0_164 = arith.constant 0 : index
    %323 = vector.load %arg20[%c1_162, %c0_163, %c0_164] : memref<4x8x8xf32, #tpu.memory_space<vmem>>, vector<1x8x8xf32>
    %324 = vector.shape_cast %323 : vector<1x8x8xf32> to vector<8x8xf32>
    %325 = arith.subf %324, %252 : vector<8x8xf32>
    %326 = vector.broadcast %99 : f32 to vector<8x8xf32>
    %327 = arith.mulf %308, %326 : vector<8x8xf32>
    %328 = arith.mulf %325, %327 : vector<8x8xf32>
    %329 = vector.broadcast %103 : f32 to vector<8x8xf32>
    %330 = arith.addf %328, %329 : vector<8x8xf32>
    %331 = vector.extract_strided_slice %61 {offsets = [0, 8], sizes = [8, 8], strides = [1, 1]} : vector<8x32xbf16> to vector<8x8xbf16>
    %332 = arith.truncf %330 : vector<8x8xf32> to vector<8x8xbf16>
    %cst_165 = arith.constant dense<0.000000e+00> : vector<8x8xf32>
    %333 = tpu.matmul %332, %331, %cst_165 {dimension_numbers = #tpu.dot_dimension_numbers<[1], [0], [0], [1], [0, 0, 1, 1], [], []>} : vector<8x8xbf16>, vector<8x8xbf16>, vector<8x8xf32> -> vector<8x8xf32>
    %334 = arith.truncf %333 : vector<8x8xf32> to vector<8x8xbf16>
    %c8_166 = arith.constant 8 : index
    %c0_167 = arith.constant 0 : index
    %335 = vector.load %arg11[%c8_166, %c0_167] : memref<32x32xbf16, #tpu.memory_space<vmem>>, vector<8x32xbf16>
    %cst_168 = arith.constant dense<0.000000e+00> : vector<8x32xf32>
    %336 = tpu.matmul %334, %335, %cst_168 {dimension_numbers = #tpu.dot_dimension_numbers<[1], [0], [0], [1], [0, 0, 1, 1], [], []>} : vector<8x8xbf16>, vector<8x32xbf16>, vector<8x32xf32> -> vector<8x32xf32>
    %337 = arith.addf %322, %336 : vector<8x32xf32>
    %c2_169 = arith.constant 2 : index
    %c0_170 = arith.constant 0 : index
    %c0_171 = arith.constant 0 : index
    %338 = vector.load %arg20[%c2_169, %c0_170, %c0_171] : memref<4x8x8xf32, #tpu.memory_space<vmem>>, vector<1x8x8xf32>
    %339 = vector.shape_cast %338 : vector<1x8x8xf32> to vector<8x8xf32>
    %340 = arith.subf %339, %252 : vector<8x8xf32>
    %341 = vector.broadcast %100 : f32 to vector<8x8xf32>
    %342 = arith.mulf %308, %341 : vector<8x8xf32>
    %343 = arith.mulf %340, %342 : vector<8x8xf32>
    %344 = vector.broadcast %104 : f32 to vector<8x8xf32>
    %345 = arith.addf %343, %344 : vector<8x8xf32>
    %346 = vector.extract_strided_slice %61 {offsets = [0, 16], sizes = [8, 8], strides = [1, 1]} : vector<8x32xbf16> to vector<8x8xbf16>
    %347 = arith.truncf %345 : vector<8x8xf32> to vector<8x8xbf16>
    %cst_172 = arith.constant dense<0.000000e+00> : vector<8x8xf32>
    %348 = tpu.matmul %347, %346, %cst_172 {dimension_numbers = #tpu.dot_dimension_numbers<[1], [0], [0], [1], [0, 0, 1, 1], [], []>} : vector<8x8xbf16>, vector<8x8xbf16>, vector<8x8xf32> -> vector<8x8xf32>
    %349 = arith.truncf %348 : vector<8x8xf32> to vector<8x8xbf16>
    %c16 = arith.constant 16 : index
    %c0_173 = arith.constant 0 : index
    %350 = vector.load %arg11[%c16, %c0_173] : memref<32x32xbf16, #tpu.memory_space<vmem>>, vector<8x32xbf16>
    %cst_174 = arith.constant dense<0.000000e+00> : vector<8x32xf32>
    %351 = tpu.matmul %349, %350, %cst_174 {dimension_numbers = #tpu.dot_dimension_numbers<[1], [0], [0], [1], [0, 0, 1, 1], [], []>} : vector<8x8xbf16>, vector<8x32xbf16>, vector<8x32xf32> -> vector<8x32xf32>
    %352 = arith.addf %337, %351 : vector<8x32xf32>
    %c3_175 = arith.constant 3 : index
    %c0_176 = arith.constant 0 : index
    %c0_177 = arith.constant 0 : index
    %353 = vector.load %arg20[%c3_175, %c0_176, %c0_177] : memref<4x8x8xf32, #tpu.memory_space<vmem>>, vector<1x8x8xf32>
    %354 = vector.shape_cast %353 : vector<1x8x8xf32> to vector<8x8xf32>
    %355 = arith.subf %354, %252 : vector<8x8xf32>
    %356 = vector.broadcast %101 : f32 to vector<8x8xf32>
    %357 = arith.mulf %308, %356 : vector<8x8xf32>
    %358 = arith.mulf %355, %357 : vector<8x8xf32>
    %359 = vector.broadcast %105 : f32 to vector<8x8xf32>
    %360 = arith.addf %358, %359 : vector<8x8xf32>
    %361 = vector.extract_strided_slice %61 {offsets = [0, 24], sizes = [8, 8], strides = [1, 1]} : vector<8x32xbf16> to vector<8x8xbf16>
    %362 = arith.truncf %360 : vector<8x8xf32> to vector<8x8xbf16>
    %cst_178 = arith.constant dense<0.000000e+00> : vector<8x8xf32>
    %363 = tpu.matmul %362, %361, %cst_178 {dimension_numbers = #tpu.dot_dimension_numbers<[1], [0], [0], [1], [0, 0, 1, 1], [], []>} : vector<8x8xbf16>, vector<8x8xbf16>, vector<8x8xf32> -> vector<8x8xf32>
    %364 = arith.truncf %363 : vector<8x8xf32> to vector<8x8xbf16>
    %c24 = arith.constant 24 : index
    %c0_179 = arith.constant 0 : index
    %365 = vector.load %arg11[%c24, %c0_179] : memref<32x32xbf16, #tpu.memory_space<vmem>>, vector<8x32xbf16>
    %cst_180 = arith.constant dense<0.000000e+00> : vector<8x32xf32>
    %366 = tpu.matmul %364, %365, %cst_180 {dimension_numbers = #tpu.dot_dimension_numbers<[1], [0], [0], [1], [0, 0, 1, 1], [], []>} : vector<8x8xbf16>, vector<8x32xbf16>, vector<8x32xf32> -> vector<8x32xf32>
    %367 = arith.addf %352, %366 : vector<8x32xf32>
    %c0_181 = arith.constant 0 : index
    %c0_182 = arith.constant 0 : index
    %368 = vector.load %arg12[%c0_181, %c0_182] : memref<1x32xf32, #tpu.memory_space<vmem>>, vector<1x32xf32>
    %369 = vector.broadcast %368 : vector<1x32xf32> to vector<8x32xf32>
    %370 = arith.addf %367, %369 : vector<8x32xf32>
    %371 = arith.addf %370, %1 : vector<8x32xf32>
    %c0_183 = arith.constant 0 : index
    %c0_184 = arith.constant 0 : index
    %372 = vector.load %arg13[%c0_183, %c0_184] : memref<1x32xf32, #tpu.memory_space<vmem>>, vector<1x32xf32>
    %c0_185 = arith.constant 0 : index
    %c0_186 = arith.constant 0 : index
    %373 = vector.load %arg14[%c0_185, %c0_186] : memref<1x32xf32, #tpu.memory_space<vmem>>, vector<1x32xf32>
    %cst_187 = arith.constant dense<0.000000e+00> : vector<8xf32>
    %374 = vector.multi_reduction <add>, %371, %cst_187 [1] : vector<8x32xf32> to vector<8xf32>
    %375 = vector.shape_cast %374 : vector<8xf32> to vector<8x1xf32>
    %cst_188 = arith.constant 3.200000e+01 : f32
    %376 = vector.broadcast %cst_188 : f32 to vector<8x1xf32>
    %377 = arith.divf %375, %376 : vector<8x1xf32>
    %378 = vector.broadcast %377 : vector<8x1xf32> to vector<8x32xf32>
    %379 = arith.subf %371, %378 : vector<8x32xf32>
    %380 = arith.mulf %379, %379 : vector<8x32xf32>
    %cst_189 = arith.constant dense<0.000000e+00> : vector<8xf32>
    %381 = vector.multi_reduction <add>, %380, %cst_189 [1] : vector<8x32xf32> to vector<8xf32>
    %382 = vector.shape_cast %381 : vector<8xf32> to vector<8x1xf32>
    %cst_190 = arith.constant 3.200000e+01 : f32
    %383 = vector.broadcast %cst_190 : f32 to vector<8x1xf32>
    %384 = arith.divf %382, %383 : vector<8x1xf32>
    %385 = vector.broadcast %377 : vector<8x1xf32> to vector<8x32xf32>
    %386 = arith.subf %371, %385 : vector<8x32xf32>
    %cst_191 = arith.constant 9.99999974E-6 : f32
    %387 = vector.broadcast %cst_191 : f32 to vector<8x1xf32>
    %388 = arith.addf %384, %387 : vector<8x1xf32>
    %389 = math.rsqrt %388 : vector<8x1xf32>
    %390 = vector.broadcast %389 : vector<8x1xf32> to vector<8x32xf32>
    %391 = arith.mulf %386, %390 : vector<8x32xf32>
    %392 = vector.broadcast %372 : vector<1x32xf32> to vector<8x32xf32>
    %393 = arith.mulf %391, %392 : vector<8x32xf32>
    %394 = vector.broadcast %373 : vector<1x32xf32> to vector<8x32xf32>
    %395 = arith.addf %393, %394 : vector<8x32xf32>
    %396 = arith.truncf %395 : vector<8x32xf32> to vector<8x32xbf16>
    %c0_192 = arith.constant 0 : index
    %c0_193 = arith.constant 0 : index
    %397 = vector.load %arg15[%c0_192, %c0_193] : memref<32x64xbf16, #tpu.memory_space<vmem>>, vector<32x64xbf16>
    %cst_194 = arith.constant dense<0.000000e+00> : vector<8x64xf32>
    %398 = tpu.matmul %396, %397, %cst_194 {dimension_numbers = #tpu.dot_dimension_numbers<[1], [0], [0], [1], [0, 0, 1, 1], [], []>} : vector<8x32xbf16>, vector<32x64xbf16>, vector<8x64xf32> -> vector<8x64xf32>
    %c0_195 = arith.constant 0 : index
    %c0_196 = arith.constant 0 : index
    %399 = vector.load %arg16[%c0_195, %c0_196] : memref<1x64xf32, #tpu.memory_space<vmem>>, vector<1x64xf32>
    %400 = vector.broadcast %399 : vector<1x64xf32> to vector<8x64xf32>
    %401 = arith.addf %398, %400 : vector<8x64xf32>
    %cst_197 = arith.constant 5.000000e-01 : f32
    %402 = vector.broadcast %cst_197 : f32 to vector<8x64xf32>
    %403 = arith.mulf %402, %401 : vector<8x64xf32>
    %cst_198 = arith.constant 0.707106769 : f32
    %404 = vector.broadcast %cst_198 : f32 to vector<8x64xf32>
    %405 = arith.mulf %401, %404 : vector<8x64xf32>
    %406 = math.absf %405 : vector<8x64xf32>
    %cst_199 = arith.constant 0.327591091 : f32
    %407 = vector.broadcast %cst_199 : f32 to vector<8x64xf32>
    %408 = arith.mulf %407, %406 : vector<8x64xf32>
    %cst_200 = arith.constant 1.000000e+00 : f32
    %409 = vector.broadcast %cst_200 : f32 to vector<8x64xf32>
    %410 = arith.addf %409, %408 : vector<8x64xf32>
    %411 = tpu.reciprocal %410 {approx = true} : vector<8x64xf32> -> vector<8x64xf32>
    %cst_201 = arith.constant 1.06140542 : f32
    %412 = vector.broadcast %cst_201 : f32 to vector<8x64xf32>
    %413 = arith.mulf %412, %411 : vector<8x64xf32>
    %cst_202 = arith.constant -1.45315206 : f32
    %414 = vector.broadcast %cst_202 : f32 to vector<8x64xf32>
    %415 = arith.addf %413, %414 : vector<8x64xf32>
    %416 = arith.mulf %415, %411 : vector<8x64xf32>
    %cst_203 = arith.constant 1.42141378 : f32
    %417 = vector.broadcast %cst_203 : f32 to vector<8x64xf32>
    %418 = arith.addf %416, %417 : vector<8x64xf32>
    %419 = arith.mulf %418, %411 : vector<8x64xf32>
    %cst_204 = arith.constant -0.284496725 : f32
    %420 = vector.broadcast %cst_204 : f32 to vector<8x64xf32>
    %421 = arith.addf %419, %420 : vector<8x64xf32>
    %422 = arith.mulf %421, %411 : vector<8x64xf32>
    %cst_205 = arith.constant 0.254829586 : f32
    %423 = vector.broadcast %cst_205 : f32 to vector<8x64xf32>
    %424 = arith.addf %422, %423 : vector<8x64xf32>
    %425 = arith.mulf %424, %411 : vector<8x64xf32>
    %cst_206 = arith.constant 0.000000e+00 : f32
    %426 = vector.broadcast %cst_206 : f32 to vector<8x64xf32>
    %427 = arith.subf %426, %406 : vector<8x64xf32>
    %428 = arith.mulf %427, %406 : vector<8x64xf32>
    %429 = math.exp %428 : vector<8x64xf32>
    %430 = arith.mulf %425, %429 : vector<8x64xf32>
    %cst_207 = arith.constant 1.000000e+00 : f32
    %431 = vector.broadcast %cst_207 : f32 to vector<8x64xf32>
    %432 = arith.subf %431, %430 : vector<8x64xf32>
    %cst_208 = arith.constant 0.000000e+00 : f32
    %433 = vector.broadcast %cst_208 : f32 to vector<8x64xf32>
    %434 = arith.cmpf oge, %405, %433 : vector<8x64xf32>
    %cst_209 = arith.constant 0.000000e+00 : f32
    %435 = vector.broadcast %cst_209 : f32 to vector<8x64xf32>
    %436 = arith.subf %435, %432 : vector<8x64xf32>
    %437 = arith.select %434, %432, %436 : vector<8x64xi1>, vector<8x64xf32>
    %cst_210 = arith.constant 1.000000e+00 : f32
    %438 = vector.broadcast %cst_210 : f32 to vector<8x64xf32>
    %439 = arith.addf %438, %437 : vector<8x64xf32>
    %440 = arith.mulf %403, %439 : vector<8x64xf32>
    %441 = arith.truncf %440 : vector<8x64xf32> to vector<8x64xbf16>
    %c0_211 = arith.constant 0 : index
    %c0_212 = arith.constant 0 : index
    %442 = vector.load %arg17[%c0_211, %c0_212] : memref<64x32xbf16, #tpu.memory_space<vmem>>, vector<64x32xbf16>
    %cst_213 = arith.constant dense<0.000000e+00> : vector<8x32xf32>
    %443 = tpu.matmul %441, %442, %cst_213 {dimension_numbers = #tpu.dot_dimension_numbers<[1], [0], [0], [1], [0, 0, 1, 1], [], []>} : vector<8x64xbf16>, vector<64x32xbf16>, vector<8x32xf32> -> vector<8x32xf32>
    %c0_214 = arith.constant 0 : index
    %c0_215 = arith.constant 0 : index
    %444 = vector.load %arg18[%c0_214, %c0_215] : memref<1x32xf32, #tpu.memory_space<vmem>>, vector<1x32xf32>
    %445 = vector.broadcast %444 : vector<1x32xf32> to vector<8x32xf32>
    %446 = arith.addf %443, %445 : vector<8x32xf32>
    %447 = arith.addf %446, %371 : vector<8x32xf32>
    %c0_216 = arith.constant 0 : index
    %c0_217 = arith.constant 0 : index
    %c0_218 = arith.constant 0 : index
    %448 = vector.load %arg19[%c0_216, %c0_217, %c0_218] : memref<1x8x32xf32, #tpu.memory_space<vmem>>, vector<1x8x32xf32>
    %449 = vector.shape_cast %448 : vector<1x8x32xf32> to vector<8x32xf32>
    %450 = vector.shape_cast %447 : vector<8x32xf32> to vector<1x8x32xf32>
    tpu.vector_store %arg19[%c0_216, %c0_217, %c0_218], %450 {strides = array<i32>} : memref<1x8x32xf32, #tpu.memory_space<vmem>>, vector<1x8x32xf32>,
    return
  }
  func.func @transform_0(%arg0: i32, %arg1: i32) -> (i32, i32, i32) {
    %c0_i32 = arith.constant 0 : i32
    %c0_i32_0 = arith.constant 0 : i32
    return %arg0, %arg1, %c0_i32 : i32, i32, i32
  }
  func.func @transform_1(%arg0: i32, %arg1: i32) -> (i32, i32, i32) {
    %c0_i32 = arith.constant 0 : i32
    %c0_i32_0 = arith.constant 0 : i32
    %c0_i32_1 = arith.constant 0 : i32
    return %arg0, %c0_i32, %c0_i32_0 : i32, i32, i32
  }
  func.func @transform_2(%arg0: i32, %arg1: i32) -> (i32, i32) {
    %c0_i32 = arith.constant 0 : i32
    %c0_i32_0 = arith.constant 0 : i32
    %c0_i32_1 = arith.constant 0 : i32
    return %c0_i32, %c0_i32_0 : i32, i32
  }
  func.func @transform_3(%arg0: i32, %arg1: i32) -> (i32, i32) {
    %c0_i32 = arith.constant 0 : i32
    %c0_i32_0 = arith.constant 0 : i32
    %c0_i32_1 = arith.constant 0 : i32
    return %c0_i32, %c0_i32_0 : i32, i32
  }
  func.func @transform_4(%arg0: i32, %arg1: i32) -> (i32, i32) {
    %c0_i32 = arith.constant 0 : i32
    %c0_i32_0 = arith.constant 0 : i32
    %c0_i32_1 = arith.constant 0 : i32
    return %c0_i32, %c0_i32_0 : i32, i32
  }
  func.func @transform_5(%arg0: i32, %arg1: i32) -> (i32, i32) {
    %c0_i32 = arith.constant 0 : i32
    %c0_i32_0 = arith.constant 0 : i32
    %c0_i32_1 = arith.constant 0 : i32
    return %c0_i32, %c0_i32_0 : i32, i32
  }
  func.func @transform_6(%arg0: i32, %arg1: i32) -> i32 {
    %c0_i32 = arith.constant 0 : i32
    %c0_i32_0 = arith.constant 0 : i32
    return %c0_i32 : i32
  }
  func.func @transform_7(%arg0: i32, %arg1: i32) -> i32 {
    %c0_i32 = arith.constant 0 : i32
    %c0_i32_0 = arith.constant 0 : i32
    return %c0_i32 : i32
  }
  func.func @transform_8(%arg0: i32, %arg1: i32) -> i32 {
    %c0_i32 = arith.constant 0 : i32
    %c0_i32_0 = arith.constant 0 : i32
    return %c0_i32 : i32
  }
  func.func @transform_9(%arg0: i32, %arg1: i32) -> (i32, i32) {
    %c0_i32 = arith.constant 0 : i32
    %c0_i32_0 = arith.constant 0 : i32
    %c0_i32_1 = arith.constant 0 : i32
    return %c0_i32, %c0_i32_0 : i32, i32
  }
  func.func @transform_10(%arg0: i32, %arg1: i32) -> (i32, i32) {
    %c0_i32 = arith.constant 0 : i32
    %c0_i32_0 = arith.constant 0 : i32
    %c0_i32_1 = arith.constant 0 : i32
    return %c0_i32, %c0_i32_0 : i32, i32
  }
  func.func @transform_11(%arg0: i32, %arg1: i32) -> (i32, i32) {
    %c0_i32 = arith.constant 0 : i32
    %c0_i32_0 = arith.constant 0 : i32
    %c0_i32_1 = arith.constant 0 : i32
    return %c0_i32, %c0_i32_0 : i32, i32
  }
  func.func @transform_12(%arg0: i32, %arg1: i32) -> (i32, i32) {
    %c0_i32 = arith.constant 0 : i32
    %c0_i32_0 = arith.constant 0 : i32
    %c0_i32_1 = arith.constant 0 : i32
    return %c0_i32, %c0_i32_0 : i32, i32
  }
  func.func @transform_13(%arg0: i32, %arg1: i32) -> (i32, i32) {
    %c0_i32 = arith.constant 0 : i32
    %c0_i32_0 = arith.constant 0 : i32
    %c0_i32_1 = arith.constant 0 : i32
    return %c0_i32, %c0_i32_0 : i32, i32
  }
  func.func @transform_14(%arg0: i32, %arg1: i32) -> (i32, i32) {
    %c0_i32 = arith.constant 0 : i32
    %c0_i32_0 = arith.constant 0 : i32
    %c0_i32_1 = arith.constant 0 : i32
    return %c0_i32, %c0_i32_0 : i32, i32
  }
  func.func @transform_15(%arg0: i32, %arg1: i32) -> (i32, i32) {
    %c0_i32 = arith.constant 0 : i32
    %c0_i32_0 = arith.constant 0 : i32
    %c0_i32_1 = arith.constant 0 : i32
    return %c0_i32, %c0_i32_0 : i32, i32
  }
  func.func @transform_16(%arg0: i32, %arg1: i32) -> (i32, i32) {
    %c0_i32 = arith.constant 0 : i32
    %c0_i32_0 = arith.constant 0 : i32
    %c0_i32_1 = arith.constant 0 : i32
    return %c0_i32, %c0_i32_0 : i32, i32
  }
  func.func @transform_17(%arg0: i32, %arg1: i32) -> (i32, i32, i32) {
    %c0_i32 = arith.constant 0 : i32
    %c0_i32_0 = arith.constant 0 : i32
    return %arg0, %arg1, %c0_i32 : i32, i32, i32
  }
}

</mosaic_0001>

<llo_original>
// kernel: tpu_custom_call.1
$region0: #{tpu_custom_call.1}
  #allocation0 [shape = 'u32[]', space=smem, size = 0x4, offset = 0x4, fixed_abs, tag = 'smem constant byte address 0x4 - core index']
  #allocation1 [shape = 'u32[72,128]{1,0:T(1,128)}', space=vmem, size = 0x9000, scoped, tag = 'internal scratch']
  #allocation2 [shape = 'f32[4,8,8]{2,1,0:T(8,128)}', space=vmem, size = 0x4000, scoped, tag = 'scratch operand']
  %s0 = inlined_call_operand.vmem [shape: f32[2,8,32], index: 0, kind: input, shape index: {}]
  %s1 = inlined_call_operand.vmem [shape: f32[2,8,32], index: 1, kind: input, shape index: {}]
  %s2 = inlined_call_operand.vmem [shape: f32[1,32], index: 2, kind: input, shape index: {}]
  %s3 = inlined_call_operand.vmem [shape: f32[1,32], index: 3, kind: input, shape index: {}]
  %s4 = inlined_call_operand.vmem [shape: bf16[32,32], index: 4, kind: input, shape index: {}]
  %s5 = inlined_call_operand.hbm [shape: bf16[32,64], index: 5, kind: input, shape index: {}]
  %s6 = inlined_call_operand.vmem [shape: f32[16], index: 6, kind: input, shape index: {}]
  %s7 = inlined_call_operand.vmem [shape: f32[4], index: 7, kind: input, shape index: {}]
  %s8 = inlined_call_operand.vmem [shape: f32[4], index: 8, kind: input, shape index: {}]
  %s9 = inlined_call_operand.hbm [shape: bf16[32,32], index: 9, kind: input, shape index: {}]
  %s10 = inlined_call_operand.vmem [shape: f32[1,32], index: 10, kind: input, shape index: {}]
  %s11 = inlined_call_operand.vmem [shape: f32[1,32], index: 11, kind: input, shape index: {}]
  %s12 = inlined_call_operand.vmem [shape: f32[1,32], index: 12, kind: input, shape index: {}]
  %s13 = inlined_call_operand.hbm [shape: bf16[32,64], index: 13, kind: input, shape index: {}]
  %s14 = inlined_call_operand.vmem [shape: f32[1,64], index: 14, kind: input, shape index: {}]
  %s15 = inlined_call_operand.vmem [shape: bf16[64,32], index: 15, kind: input, shape index: {}]
  %s16 = inlined_call_operand.vmem [shape: f32[1,32], index: 16, kind: input, shape index: {}]
  %s17 = inlined_call_operand.hbm [shape: f32[2,8,32], index: 17, kind: output, shape index: {}]
  %s18 = sld [smem:[#allocation0]]
  $region125: #{tpu_custom_call.1} parent=0
    _
  %s20 = ssub.s32 1, %s18
  %s21 = scalar_select 0, %s20, %s18
  $region1: #{tpu_custom_call.1} parent=0
    #allocation3 [shape = 'u8[8192]{0}', space=vmem, size = 0x2000, scoped, tag = 'input window, operand 5, single buffered']
    #allocation4 [shape = 's32[2]{0}', space=sflag, size = 0x8, scoped, tag = 'scoped memory for tpu_custom_call.1']
    #allocation5 [shape = 's32[2]{0}', space=sflag, size = 0x8, scoped, tag = 'scoped memory for tpu_custom_call.1']
    #allocation6 [shape = 's32[2]{0}', space=sflag, size = 0x8, scoped, tag = 'scoped memory for tpu_custom_call.1']
    #allocation7 [shape = 'u8[512]{0}', space=smem, size = 0x200, scoped, tag = 'input window, operand 6, single buffered']
    #allocation8 [shape = 'u8[512]{0}', space=smem, size = 0x200, scoped, tag = 'input window, operand 7, single buffered']
    #allocation9 [shape = 's32[1]{0}', space=sflag, size = 0x4, scoped, tag = 'scoped memory for tpu_custom_call.1']
    #allocation10 [shape = 'u8[512]{0}', space=smem, size = 0x200, scoped, tag = 'input window, operand 8, single buffered']
    #allocation11 [shape = 'u8[8192]{0}', space=vmem, size = 0x2000, scoped, tag = 'input window, operand 9, single buffered']
    #allocation12 [shape = 's32[1]{0}', space=sflag, size = 0x4, scoped, tag = 'scoped memory for tpu_custom_call.1']
    #allocation13 [shape = 'u8[8192]{0}', space=vmem, size = 0x2000, scoped, tag = 'input window, operand 13, single buffered']
    #allocation14 [shape = 'u8[8192]{0}', space=vmem, size = 0x2000, scoped, tag = 'output window, operand 0']
    %22 = vsyncpa [#allocation4], 0
    %23 = vsyncpa [#allocation6], 0
    %24 = vsyncpa [#allocation9], 0
    %25 = vsyncpa [#allocation12], 0
    %26 = vsyncpa [#allocation5], 0
    %s27 = scalar_lea.sflag [#allocation5], 1
    %28 = vsyncpa %s27, 0
    loop: start=0, step=1, limit=4
    $region2: #{tpu_custom_call.1} parent=1 // loop_pre_header
      _
    $region3: #{tpu_custom_call.1} parent=1 // loop_header
      %s30 = sphi 0, %s34
      %p31 = scmp.ge.s32.totalorder %s30, 4
      %s37 = sphi 0, %s49
      %s38 = sphi 0, %s45
      %s39 = sphi 0, %s37
      %s40 = sphi 0, %s38
      %s41 = sphi 0, %s39
      %s42 = sphi 0, %s40
      %s54 = sphi 0, %s56
      %s57 = sphi 0, %s54
      %s58 = sphi 0, %s57
      %s74 = sphi 0, %s58
      %s80 = sphi 0, %s82
      %s83 = sphi 0, %s80
      %s84 = sphi 0, %s83
      %s100 = sphi 0, %s84
      %s104 = sphi 0, %s104
      %s106 = sphi 0, %s104
      %s107 = sphi 0, %s106
      %s121 = sphi 0, %s107
      %s125 = sphi 0, %s125
      %s127 = sphi 0, %s125
      %s128 = sphi 0, %s127
      %s142 = sphi 0, %s128
      %s146 = sphi 0, %s146
      %s148 = sphi 0, %s146
      %s149 = sphi 0, %s148
      %s163 = sphi 0, %s149
      %s167 = sphi 0, %s167
      %s169 = sphi 0, %s167
      %s170 = sphi 0, %s169
      %s184 = sphi 0, %s170
      %s188 = sphi 0, %s188
      %s190 = sphi 0, %s188
      %s191 = sphi 0, %s190
      %s205 = sphi 0, %s191
      %s209 = sphi 0, %s209
      %s211 = sphi 0, %s209
      %s212 = sphi 0, %s211
      %s226 = sphi 0, %s212
      %s230 = sphi 0, %s230
      %s232 = sphi 0, %s230
      %s233 = sphi 0, %s232
      %s247 = sphi 0, %s233
      %s251 = sphi 0, %s251
      %s253 = sphi 0, %s251
      %s254 = sphi 0, %s253
      %s268 = sphi 0, %s254
      %s272 = sphi 0, %s272
      %s274 = sphi 0, %s272
      %s275 = sphi 0, %s274
      %s289 = sphi 0, %s275
      %s293 = sphi 0, %s293
      %s295 = sphi 0, %s293
      %s296 = sphi 0, %s295
      %s310 = sphi 0, %s296
      %s314 = sphi 0, %s314
      %s316 = sphi 0, %s314
      %s317 = sphi 0, %s316
      %s331 = sphi 0, %s317
      %s335 = sphi 0, %s335
      %s337 = sphi 0, %s335
      %s338 = sphi 0, %s337
      %s352 = sphi 0, %s338
      %s356 = sphi 0, %s356
      %s358 = sphi 0, %s356
      %s359 = sphi 0, %s358
      %s373 = sphi 0, %s359
      %s377 = sphi 0, %s377
      %s379 = sphi 0, %s377
      %s380 = sphi 0, %s379
      %s394 = sphi 0, %s380
      %s398 = sphi 0, %s398
      %s400 = sphi 0, %s398
      %s401 = sphi 0, %s400
      %s415 = sphi 0, %s401
      %s423 = sphi 0, %s425
      %s426 = sphi 0, %s423
      %s427 = sphi 0, %s426
      %s443 = sphi 0, %s427
    $region4: #{tpu_custom_call.1} parent=1 // loop_header_branch
      %33 = sbr.rel (%p31) target = $region8
    $region5: #{tpu_custom_call.1} parent=1 // loop_body
      %s35 = ssub.s32 %s30, 1
      %s36 = ssub.s32 %s30, 2
      %s43 = sadd.s32 1, %s38
      %p44 = scmp.ge.s32.totalorder %s43, 1
      %s45 = scalar_select %p44, 0, %s43
      %s46 = sadd.s32 1, %s37
      %s47 = scalar_select %p44, %s46, %s37
      %p48 = scmp.ge.s32.totalorder %s47, 2
      %s49 = scalar_select %p48, 0, %s47
      %s50 = ssub.s32 %s37, %s49
      %s51 = ssub.s32 %s38, %s45
      %s52 = sor.u32 %s50, %s51
      %p53 = scmp.eq.s32.totalorder %s52, 0
      %s55 = sadd.s32 %s54, 1
      %s56 = scalar_select %p53, %s54, %s55
      %p59 = pneg %p53
      %p60 = scmp.eq.s32.totalorder %s30, 1
      %p61 = por %p59, %p60
      %p62 = scmp.ne.s32.totalorder %s54, %s57
      %p63 = scmp.eq.s32.totalorder %s30, 0
      %p64 = por %p62, %p63
      %p65 = scmp.ne.s32.totalorder %s54, %s57
      %p66 = scmp.eq.s32.totalorder %s35, 1
      %p67 = por %p65, %p66
      %p68 = scmp.ne.s32.totalorder %s57, %s58
      %p69 = scmp.eq.s32.totalorder %s35, 0
      %p70 = por %p68, %p69
      %p71 = scmp.ne.s32.totalorder %s57, %s58
      %p72 = scmp.eq.s32.totalorder %s36, 1
      %p73 = por %p71, %p72
      %p75 = scmp.ne.s32.totalorder %s58, %s74
      %p76 = scmp.eq.s32.totalorder %s36, 0
      %p77 = por %p75, %p76
      %s78 = ssub.s32 %s37, %s49
      %p79 = scmp.eq.s32.totalorder %s78, 0
      %s81 = sadd.s32 %s80, 1
      %s82 = scalar_select %p79, %s80, %s81
      %p85 = pneg %p79
      %p86 = scmp.eq.s32.totalorder %s30, 1
      %p87 = por %p85, %p86
      %p88 = scmp.ne.s32.totalorder %s80, %s83
      %p89 = scmp.eq.s32.totalorder %s30, 0
      %p90 = por %p88, %p89
      %p91 = scmp.ne.s32.totalorder %s80, %s83
      %p92 = scmp.eq.s32.totalorder %s35, 1
      %p93 = por %p91, %p92
      %p94 = scmp.ne.s32.totalorder %s83, %s84
      %p95 = scmp.eq.s32.totalorder %s35, 0
      %p96 = por %p94, %p95
      %p97 = scmp.ne.s32.totalorder %s83, %s84
      %p98 = scmp.eq.s32.totalorder %s36, 1
      %p99 = por %p97, %p98
      %p101 = scmp.ne.s32.totalorder %s84, %s100
      %p102 = scmp.eq.s32.totalorder %s36, 0
      %p103 = por %p101, %p102
      %s105 = sadd.s32 %s104, 1
      %p108 = scmp.eq.s32.totalorder %s30, 1
      %p109 = scmp.ne.s32.totalorder %s104, %s106
      %p110 = scmp.eq.s32.totalorder %s30, 0
      %p111 = por %p109, %p110
      %p112 = scmp.ne.s32.totalorder %s104, %s106
      %p113 = scmp.eq.s32.totalorder %s35, 1
      %p114 = por %p112, %p113
      %p115 = scmp.ne.s32.totalorder %s106, %s107
      %p116 = scmp.eq.s32.totalorder %s35, 0
      %p117 = por %p115, %p116
      %p118 = scmp.ne.s32.totalorder %s106, %s107
      %p119 = scmp.eq.s32.totalorder %s36, 1
      %p120 = por %p118, %p119
      %p122 = scmp.ne.s32.totalorder %s107, %s121
      %p123 = scmp.eq.s32.totalorder %s36, 0
      %p124 = por %p122, %p123
      %s126 = sadd.s32 %s125, 1
      %p129 = scmp.eq.s32.totalorder %s30, 1
      %p130 = scmp.ne.s32.totalorder %s125, %s127
      %p131 = scmp.eq.s32.totalorder %s30, 0
      %p132 = por %p130, %p131
      %p133 = scmp.ne.s32.totalorder %s125, %s127
      %p134 = scmp.eq.s32.totalorder %s35, 1
      %p135 = por %p133, %p134
      %p136 = scmp.ne.s32.totalorder %s127, %s128
      %p137 = scmp.eq.s32.totalorder %s35, 0
      %p138 = por %p136, %p137
      %p139 = scmp.ne.s32.totalorder %s127, %s128
      %p140 = scmp.eq.s32.totalorder %s36, 1
      %p141 = por %p139, %p140
      %p143 = scmp.ne.s32.totalorder %s128, %s142
      %p144 = scmp.eq.s32.totalorder %s36, 0
      %p145 = por %p143, %p144
      %s147 = sadd.s32 %s146, 1
      %p150 = scmp.eq.s32.totalorder %s30, 1
      %p151 = scmp.ne.s32.totalorder %s146, %s148
      %p152 = scmp.eq.s32.totalorder %s30, 0
      %p153 = por %p151, %p152
      %p154 = scmp.ne.s32.totalorder %s146, %s148
      %p155 = scmp.eq.s32.totalorder %s35, 1
      %p156 = por %p154, %p155
      %p157 = scmp.ne.s32.totalorder %s148, %s149
      %p158 = scmp.eq.s32.totalorder %s35, 0
      %p159 = por %p157, %p158
      %p160 = scmp.ne.s32.totalorder %s148, %s149
      %p161 = scmp.eq.s32.totalorder %s36, 1
      %p162 = por %p160, %p161
      %p164 = scmp.ne.s32.totalorder %s149, %s163
      %p165 = scmp.eq.s32.totalorder %s36, 0
      %p166 = por %p164, %p165
      %s168 = sadd.s32 %s167, 1
      %p171 = scmp.eq.s32.totalorder %s30, 1
      %p172 = scmp.ne.s32.totalorder %s167, %s169
      %p173 = scmp.eq.s32.totalorder %s30, 0
      %p174 = por %p172, %p173
      %p175 = scmp.ne.s32.totalorder %s167, %s169
      %p176 = scmp.eq.s32.totalorder %s35, 1
      %p177 = por %p175, %p176
      %p178 = scmp.ne.s32.totalorder %s169, %s170
      %p179 = scmp.eq.s32.totalorder %s35, 0
      %p180 = por %p178, %p179
      %p181 = scmp.ne.s32.totalorder %s169, %s170
      %p182 = scmp.eq.s32.totalorder %s36, 1
      %p183 = por %p181, %p182
      %p185 = scmp.ne.s32.totalorder %s170, %s184
      %p186 = scmp.eq.s32.totalorder %s36, 0
      %p187 = por %p185, %p186
      %s189 = sadd.s32 %s188, 1
      %p192 = scmp.eq.s32.totalorder %s30, 1
      %p193 = scmp.ne.s32.totalorder %s188, %s190
      %p194 = scmp.eq.s32.totalorder %s30, 0
      %p195 = por %p193, %p194
      %p196 = scmp.ne.s32.totalorder %s188, %s190
      %p197 = scmp.eq.s32.totalorder %s35, 1
      %p198 = por %p196, %p197
      %p199 = scmp.ne.s32.totalorder %s190, %s191
      %p200 = scmp.eq.s32.totalorder %s35, 0
      %p201 = por %p199, %p200
      %p202 = scmp.ne.s32.totalorder %s190, %s191
      %p203 = scmp.eq.s32.totalorder %s36, 1
      %p204 = por %p202, %p203
      %p206 = scmp.ne.s32.totalorder %s191, %s205
      %p207 = scmp.eq.s32.totalorder %s36, 0
      %p208 = por %p206, %p207
      %s210 = sadd.s32 %s209, 1
      %p213 = scmp.eq.s32.totalorder %s30, 1
      %p214 = scmp.ne.s32.totalorder %s209, %s211
      %p215 = scmp.eq.s32.totalorder %s30, 0
      %p216 = por %p214, %p215
      %p217 = scmp.ne.s32.totalorder %s209, %s211
      %p218 = scmp.eq.s32.totalorder %s35, 1
      %p219 = por %p217, %p218
      %p220 = scmp.ne.s32.totalorder %s211, %s212
      %p221 = scmp.eq.s32.totalorder %s35, 0
      %p222 = por %p220, %p221
      %p223 = scmp.ne.s32.totalorder %s211, %s212
      %p224 = scmp.eq.s32.totalorder %s36, 1
      %p225 = por %p223, %p224
      %p227 = scmp.ne.s32.totalorder %s212, %s226
      %p228 = scmp.eq.s32.totalorder %s36, 0
      %p229 = por %p227, %p228
      %s231 = sadd.s32 %s230, 1
      %p234 = scmp.eq.s32.totalorder %s30, 1
      %p235 = scmp.ne.s32.totalorder %s230, %s232
      %p236 = scmp.eq.s32.totalorder %s30, 0
      %p237 = por %p235, %p236
      %p238 = scmp.ne.s32.totalorder %s230, %s232
      %p239 = scmp.eq.s32.totalorder %s35, 1
      %p240 = por %p238, %p239
      %p241 = scmp.ne.s32.totalorder %s232, %s233
      %p242 = scmp.eq.s32.totalorder %s35, 0
      %p243 = por %p241, %p242
      %p244 = scmp.ne.s32.totalorder %s232, %s233
      %p245 = scmp.eq.s32.totalorder %s36, 1
      %p246 = por %p244, %p245
      %p248 = scmp.ne.s32.totalorder %s233, %s247
      %p249 = scmp.eq.s32.totalorder %s36, 0
      %p250 = por %p248, %p249
      %s252 = sadd.s32 %s251, 1
      %p255 = scmp.eq.s32.totalorder %s30, 1
      %p256 = scmp.ne.s32.totalorder %s251, %s253
      %p257 = scmp.eq.s32.totalorder %s30, 0
      %p258 = por %p256, %p257
      %p259 = scmp.ne.s32.totalorder %s251, %s253
      %p260 = scmp.eq.s32.totalorder %s35, 1
      %p261 = por %p259, %p260
      %p262 = scmp.ne.s32.totalorder %s253, %s254
      %p263 = scmp.eq.s32.totalorder %s35, 0
      %p264 = por %p262, %p263
      %p265 = scmp.ne.s32.totalorder %s253, %s254
      %p266 = scmp.eq.s32.totalorder %s36, 1
      %p267 = por %p265, %p266
      %p269 = scmp.ne.s32.totalorder %s254, %s268
      %p270 = scmp.eq.s32.totalorder %s36, 0
      %p271 = por %p269, %p270
      %s273 = sadd.s32 %s272, 1
      %p276 = scmp.eq.s32.totalorder %s30, 1
      %p277 = scmp.ne.s32.totalorder %s272, %s274
      %p278 = scmp.eq.s32.totalorder %s30, 0
      %p279 = por %p277, %p278
      %p280 = scmp.ne.s32.totalorder %s272, %s274
      %p281 = scmp.eq.s32.totalorder %s35, 1
      %p282 = por %p280, %p281
      %p283 = scmp.ne.s32.totalorder %s274, %s275
      %p284 = scmp.eq.s32.totalorder %s35, 0
      %p285 = por %p283, %p284
      %p286 = scmp.ne.s32.totalorder %s274, %s275
      %p287 = scmp.eq.s32.totalorder %s36, 1
      %p288 = por %p286, %p287
      %p290 = scmp.ne.s32.totalorder %s275, %s289
      %p291 = scmp.eq.s32.totalorder %s36, 0
      %p292 = por %p290, %p291
      %s294 = sadd.s32 %s293, 1
      %p297 = scmp.eq.s32.totalorder %s30, 1
      %p298 = scmp.ne.s32.totalorder %s293, %s295
      %p299 = scmp.eq.s32.totalorder %s30, 0
      %p300 = por %p298, %p299
      %p301 = scmp.ne.s32.totalorder %s293, %s295
      %p302 = scmp.eq.s32.totalorder %s35, 1
      %p303 = por %p301, %p302
      %p304 = scmp.ne.s32.totalorder %s295, %s296
      %p305 = scmp.eq.s32.totalorder %s35, 0
      %p306 = por %p304, %p305
      %p307 = scmp.ne.s32.totalorder %s295, %s296
      %p308 = scmp.eq.s32.totalorder %s36, 1
      %p309 = por %p307, %p308
      %p311 = scmp.ne.s32.totalorder %s296, %s310
      %p312 = scmp.eq.s32.totalorder %s36, 0
      %p313 = por %p311, %p312
      %s315 = sadd.s32 %s314, 1
      %p318 = scmp.eq.s32.totalorder %s30, 1
      %p319 = scmp.ne.s32.totalorder %s314, %s316
      %p320 = scmp.eq.s32.totalorder %s30, 0
      %p321 = por %p319, %p320
      %p322 = scmp.ne.s32.totalorder %s314, %s316
      %p323 = scmp.eq.s32.totalorder %s35, 1
      %p324 = por %p322, %p323
      %p325 = scmp.ne.s32.totalorder %s316, %s317
      %p326 = scmp.eq.s32.totalorder %s35, 0
      %p327 = por %p325, %p326
      %p328 = scmp.ne.s32.totalorder %s316, %s317
      %p329 = scmp.eq.s32.totalorder %s36, 1
      %p330 = por %p328, %p329
      %p332 = scmp.ne.s32.totalorder %s317, %s331
      %p333 = scmp.eq.s32.totalorder %s36, 0
      %p334 = por %p332, %p333
      %s336 = sadd.s32 %s335, 1
      %p339 = scmp.eq.s32.totalorder %s30, 1
      %p340 = scmp.ne.s32.totalorder %s335, %s337
      %p341 = scmp.eq.s32.totalorder %s30, 0
      %p342 = por %p340, %p341
      %p343 = scmp.ne.s32.totalorder %s335, %s337
      %p344 = scmp.eq.s32.totalorder %s35, 1
      %p345 = por %p343, %p344
      %p346 = scmp.ne.s32.totalorder %s337, %s338
      %p347 = scmp.eq.s32.totalorder %s35, 0
      %p348 = por %p346, %p347
      %p349 = scmp.ne.s32.totalorder %s337, %s338
      %p350 = scmp.eq.s32.totalorder %s36, 1
      %p351 = por %p349, %p350
      %p353 = scmp.ne.s32.totalorder %s338, %s352
      %p354 = scmp.eq.s32.totalorder %s36, 0
      %p355 = por %p353, %p354
      %s357 = sadd.s32 %s356, 1
      %p360 = scmp.eq.s32.totalorder %s30, 1
      %p361 = scmp.ne.s32.totalorder %s356, %s358
      %p362 = scmp.eq.s32.totalorder %s30, 0
      %p363 = por %p361, %p362
      %p364 = scmp.ne.s32.totalorder %s356, %s358
      %p365 = scmp.eq.s32.totalorder %s35, 1
      %p366 = por %p364, %p365
      %p367 = scmp.ne.s32.totalorder %s358, %s359
      %p368 = scmp.eq.s32.totalorder %s35, 0
      %p369 = por %p367, %p368
      %p370 = scmp.ne.s32.totalorder %s358, %s359
      %p371 = scmp.eq.s32.totalorder %s36, 1
      %p372 = por %p370, %p371
      %p374 = scmp.ne.s32.totalorder %s359, %s373
      %p375 = scmp.eq.s32.totalorder %s36, 0
      %p376 = por %p374, %p375
      %s378 = sadd.s32 %s377, 1
      %p381 = scmp.eq.s32.totalorder %s30, 1
      %p382 = scmp.ne.s32.totalorder %s377, %s379
      %p383 = scmp.eq.s32.totalorder %s30, 0
      %p384 = por %p382, %p383
      %p385 = scmp.ne.s32.totalorder %s377, %s379
      %p386 = scmp.eq.s32.totalorder %s35, 1
      %p387 = por %p385, %p386
      %p388 = scmp.ne.s32.totalorder %s379, %s380
      %p389 = scmp.eq.s32.totalorder %s35, 0
      %p390 = por %p388, %p389
      %p391 = scmp.ne.s32.totalorder %s379, %s380
      %p392 = scmp.eq.s32.totalorder %s36, 1
      %p393 = por %p391, %p392
      %p395 = scmp.ne.s32.totalorder %s380, %s394
      %p396 = scmp.eq.s32.totalorder %s36, 0
      %p397 = por %p395, %p396
      %s399 = sadd.s32 %s398, 1
      %p402 = scmp.eq.s32.totalorder %s30, 1
      %p403 = scmp.ne.s32.totalorder %s398, %s400
      %p404 = scmp.eq.s32.totalorder %s30, 0
      %p405 = por %p403, %p404
      %p406 = scmp.ne.s32.totalorder %s398, %s400
      %p407 = scmp.eq.s32.totalorder %s35, 1
      %p408 = por %p406, %p407
      %p409 = scmp.ne.s32.totalorder %s400, %s401
      %p410 = scmp.eq.s32.totalorder %s35, 0
      %p411 = por %p409, %p410
      %p412 = scmp.ne.s32.totalorder %s400, %s401
      %p413 = scmp.eq.s32.totalorder %s36, 1
      %p414 = por %p412, %p413
      %p416 = scmp.ne.s32.totalorder %s401, %s415
      %p417 = scmp.eq.s32.totalorder %s36, 0
      %p418 = por %p416, %p417
      %s419 = ssub.s32 %s37, %s49
      %s420 = ssub.s32 %s38, %s45
      %s421 = sor.u32 %s419, %s420
      %p422 = scmp.eq.s32.totalorder %s421, 0
      %s424 = sadd.s32 %s423, 1
      %s425 = scalar_select %p422, %s423, %s424
      %p428 = pneg %p422
      %p429 = scmp.eq.s32.totalorder %s30, 1
      %p430 = por %p428, %p429
      %p431 = scmp.ne.s32.totalorder %s423, %s426
      %p432 = scmp.eq.s32.totalorder %s30, 0
      %p433 = por %p431, %p432
      %p434 = scmp.ne.s32.totalorder %s423, %s426
      %p435 = scmp.eq.s32.totalorder %s35, 1
      %p436 = por %p434, %p435
      %p437 = scmp.ne.s32.totalorder %s426, %s427
      %p438 = scmp.eq.s32.totalorder %s35, 0
      %p439 = por %p437, %p438
      %p440 = scmp.ne.s32.totalorder %s426, %s427
      %p441 = scmp.eq.s32.totalorder %s36, 1
      %p442 = por %p440, %p441
      %p444 = scmp.ne.s32.totalorder %s427, %s443
      %p445 = scmp.eq.s32.totalorder %s36, 0
      %p446 = por %p444, %p445
      %p447 = scmp.le.s32.totalorder 1, %s30
      %p448 = scmp.lt.s32.totalorder %s30, 3
      %p449 = pnand %p447, %p448
      %p450 = pneg %p449
      // Predicated region
      $region9: #{tpu_custom_call.1} parent=5 // pred_check
        _
      $region10: #{tpu_custom_call.1} parent=5 // pred_check_branch
        %452 = sbr.rel (%p449) target = $region12
      $region11: #{tpu_custom_call.1} parent=5 // pred_region
        %s453 = ssub.s32 %s30, 1
        // Predicated region
        $region13: #{tpu_custom_call.1} parent=11 // pred_check
          %p454 = pneg %p117
        $region14: #{tpu_custom_call.1} parent=11 // pred_check_branch
          %456 = sbr.rel (%p454) target = $region16
        $region15: #{tpu_custom_call.1} parent=11 // pred_region
          _
        $region16: #{tpu_custom_call.1} parent=11 // pred_fallthru
          _
        // Predicated region
        $region17: #{tpu_custom_call.1} parent=11 // pred_check
          %p457 = pneg %p138
        $region18: #{tpu_custom_call.1} parent=11 // pred_check_branch
          %459 = sbr.rel (%p457) target = $region20
        $region19: #{tpu_custom_call.1} parent=11 // pred_region
          _
        $region20: #{tpu_custom_call.1} parent=11 // pred_fallthru
          _
        // Predicated region
        $region21: #{tpu_custom_call.1} parent=11 // pred_check
          %p460 = pneg %p159
        $region22: #{tpu_custom_call.1} parent=11 // pred_check_branch
          %462 = sbr.rel (%p460) target = $region24
        $region23: #{tpu_custom_call.1} parent=11 // pred_region
          _
        $region24: #{tpu_custom_call.1} parent=11 // pred_fallthru
          _
        // Predicated region
        $region25: #{tpu_custom_call.1} parent=11 // pred_check
          %p463 = pneg %p180
        $region26: #{tpu_custom_call.1} parent=11 // pred_check_branch
          %465 = sbr.rel (%p463) target = $region28
        $region27: #{tpu_custom_call.1} parent=11 // pred_region
          %467 = vsyncadd [#allocation4], 0
          %s468 = sshll.u32 %s5, 4
          %s469 = int_to_ptr.hbm [resolvable:$true] %s468
          %s470 = sshll.u32 [#allocation3], 4
          %s471 = int_to_ptr.vmem [resolvable:$true] %s470
          %476 = dma.hbm_to_vmem [thread:$0]  %s469, 256, %s471, [#allocation4], 64, 64, 4
        $region28: #{tpu_custom_call.1} parent=11 // pred_fallthru
          _
        // Predicated region
        $region29: #{tpu_custom_call.1} parent=11 // pred_check
          %p477 = pneg %p201
        $region30: #{tpu_custom_call.1} parent=11 // pred_check_branch
          %479 = sbr.rel (%p477) target = $region32
        $region31: #{tpu_custom_call.1} parent=11 // pred_region
          %481 = vsyncadd [#allocation6], 0
          %s483 = sshll.u32 %s6, 4
          %s484 = int_to_ptr.vmem [resolvable:$true] %s483
          %486 = dma.vmem_to_smem %s484, 16, [#allocation7], [#allocation6]
        $region32: #{tpu_custom_call.1} parent=11 // pred_fallthru
          _
        // Predicated region
        $region33: #{tpu_custom_call.1} parent=11 // pred_check
          %p487 = pneg %p222
        $region34: #{tpu_custom_call.1} parent=11 // pred_check_branch
          %489 = sbr.rel (%p487) target = $region36
        $region35: #{tpu_custom_call.1} parent=11 // pred_region
          %491 = vsyncadd [#allocation9], 0
          %s493 = sshll.u32 %s7, 4
          %s494 = int_to_ptr.vmem [resolvable:$true] %s493
          %496 = dma.vmem_to_smem %s494, 16, [#allocation8], [#allocation9]
        $region36: #{tpu_custom_call.1} parent=11 // pred_fallthru
          _
        // Predicated region
        $region37: #{tpu_custom_call.1} parent=11 // pred_check
          %p497 = pneg %p243
        $region38: #{tpu_custom_call.1} parent=11 // pred_check_branch
          %499 = sbr.rel (%p497) target = $region40
        $region39: #{tpu_custom_call.1} parent=11 // pred_region
          %501 = vsyncadd [#allocation9], 0
          %s503 = sshll.u32 %s8, 4
          %s504 = int_to_ptr.vmem [resolvable:$true] %s503
          %506 = dma.vmem_to_smem %s504, 16, [#allocation10], [#allocation9]
        $region40: #{tpu_custom_call.1} parent=11 // pred_fallthru
          _
        // Predicated region
        $region41: #{tpu_custom_call.1} parent=11 // pred_check
          %p507 = pneg %p264
        $region42: #{tpu_custom_call.1} parent=11 // pred_check_branch
          %509 = sbr.rel (%p507) target = $region44
        $region43: #{tpu_custom_call.1} parent=11 // pred_region
          %511 = vsyncadd [#allocation12], 0
          %s512 = sshll.u32 %s9, 4
          %s513 = int_to_ptr.hbm [resolvable:$true] %s512
          %s514 = sshll.u32 [#allocation11], 4
          %s515 = int_to_ptr.vmem [resolvable:$true] %s514
          %520 = dma.hbm_to_vmem [thread:$0]  %s513, 256, %s515, [#allocation12], 64, 64, 4
        $region44: #{tpu_custom_call.1} parent=11 // pred_fallthru
          _
        // Predicated region
        $region45: #{tpu_custom_call.1} parent=11 // pred_check
          %p521 = pneg %p285
        $region46: #{tpu_custom_call.1} parent=11 // pred_check_branch
          %523 = sbr.rel (%p521) target = $region48
        $region47: #{tpu_custom_call.1} parent=11 // pred_region
          _
        $region48: #{tpu_custom_call.1} parent=11 // pred_fallthru
          _
        // Predicated region
        $region49: #{tpu_custom_call.1} parent=11 // pred_check
          %p524 = pneg %p306
        $region50: #{tpu_custom_call.1} parent=11 // pred_check_branch
          %526 = sbr.rel (%p524) target = $region52
        $region51: #{tpu_custom_call.1} parent=11 // pred_region
          _
        $region52: #{tpu_custom_call.1} parent=11 // pred_fallthru
          _
        // Predicated region
        $region53: #{tpu_custom_call.1} parent=11 // pred_check
          %p527 = pneg %p327
        $region54: #{tpu_custom_call.1} parent=11 // pred_check_branch
          %529 = sbr.rel (%p527) target = $region56
        $region55: #{tpu_custom_call.1} parent=11 // pred_region
          _
        $region56: #{tpu_custom_call.1} parent=11 // pred_fallthru
          _
        // Predicated region
        $region57: #{tpu_custom_call.1} parent=11 // pred_check
          %p530 = pneg %p348
        $region58: #{tpu_custom_call.1} parent=11 // pred_check_branch
          %532 = sbr.rel (%p530) target = $region60
        $region59: #{tpu_custom_call.1} parent=11 // pred_region
          %534 = vsyncadd [#allocation12], 0
          %s535 = sshll.u32 %s13, 4
          %s536 = int_to_ptr.hbm [resolvable:$true] %s535
          %s537 = sshll.u32 [#allocation13], 4
          %s538 = int_to_ptr.vmem [resolvable:$true] %s537
          %543 = dma.hbm_to_vmem [thread:$0]  %s536, 256, %s538, [#allocation12], 64, 64, 4
        $region60: #{tpu_custom_call.1} parent=11 // pred_fallthru
          _
        // Predicated region
        $region61: #{tpu_custom_call.1} parent=11 // pred_check
          %p544 = pneg %p369
        $region62: #{tpu_custom_call.1} parent=11 // pred_check_branch
          %546 = sbr.rel (%p544) target = $region64
        $region63: #{tpu_custom_call.1} parent=11 // pred_region
          _
        $region64: #{tpu_custom_call.1} parent=11 // pred_fallthru
          _
        // Predicated region
        $region65: #{tpu_custom_call.1} parent=11 // pred_check
          %p547 = pneg %p390
        $region66: #{tpu_custom_call.1} parent=11 // pred_check_branch
          %549 = sbr.rel (%p547) target = $region68
        $region67: #{tpu_custom_call.1} parent=11 // pred_region
          _
        $region68: #{tpu_custom_call.1} parent=11 // pred_fallthru
          _
        // Predicated region
        $region69: #{tpu_custom_call.1} parent=11 // pred_check
          %p550 = pneg %p411
        $region70: #{tpu_custom_call.1} parent=11 // pred_check_branch
          %552 = sbr.rel (%p550) target = $region72
        $region71: #{tpu_custom_call.1} parent=11 // pred_region
          _
        $region72: #{tpu_custom_call.1} parent=11 // pred_fallthru
          _
      $region12: #{tpu_custom_call.1} parent=5 // pred_fallthru
        _
      %p553 = scmp.lt.s32.totalorder %s30, 2
      // Predicated region
      $region73: #{tpu_custom_call.1} parent=5 // pred_check
        %p554 = pneg %p553
      $region74: #{tpu_custom_call.1} parent=5 // pred_check_branch
        %556 = sbr.rel (%p554) target = $region76
      $region75: #{tpu_custom_call.1} parent=5 // pred_region
        // Predicated region
        $region77: #{tpu_custom_call.1} parent=75 // pred_check
          %p557 = pneg %p64
        $region78: #{tpu_custom_call.1} parent=75 // pred_check_branch
          %559 = sbr.rel (%p557) target = $region80
        $region79: #{tpu_custom_call.1} parent=75 // pred_region
          %p560 = scmp.lt.s32.totalorder %s37, 1
          %s561 = scalar_select %p560, %s37, 1
          %p562 = scmp.lt.s32.totalorder %s38, 0
          %s563 = scalar_select %p562, %s38, 0
          %s564 = sadd.s32 %s563, %s561
          %s565 = smul.addr %s564, 8
          %s566 = scalar_lea.vmem %s0, %s565
        $region80: #{tpu_custom_call.1} parent=75 // pred_fallthru
          _
        // Predicated region
        $region81: #{tpu_custom_call.1} parent=75 // pred_check
          %p567 = pneg %p90
        $region82: #{tpu_custom_call.1} parent=75 // pred_check_branch
          %569 = sbr.rel (%p567) target = $region84
        $region83: #{tpu_custom_call.1} parent=75 // pred_region
          %p570 = scmp.lt.s32.totalorder %s37, 1
          %s571 = scalar_select %p570, %s37, 1
          %s572 = smul.addr %s571, 8
          %s573 = scalar_lea.vmem %s1, %s572
        $region84: #{tpu_custom_call.1} parent=75 // pred_fallthru
          _
      $region76: #{tpu_custom_call.1} parent=5 // pred_fallthru
        _
      %p574 = scmp.le.s32.totalorder 1, %s30
      %p575 = scmp.lt.s32.totalorder %s30, 3
      %p576 = pnand %p574, %p575
      %p577 = pneg %p576
      // Predicated region
      $region85: #{tpu_custom_call.1} parent=5 // pred_check
        _
      $region86: #{tpu_custom_call.1} parent=5 // pred_check_branch
        %579 = sbr.rel (%p576) target = $region88
      $region87: #{tpu_custom_call.1} parent=5 // pred_region
        %s580 = ssub.s32 %s30, 1
        // Predicated region
        $region89: #{tpu_custom_call.1} parent=87 // pred_check
          %p581 = pneg %p180
        $region90: #{tpu_custom_call.1} parent=87 // pred_check_branch
          %583 = sbr.rel (%p581) target = $region92
        $region91: #{tpu_custom_call.1} parent=87 // pred_region
          %585 = dma.done [#allocation4], 256
        $region92: #{tpu_custom_call.1} parent=87 // pred_fallthru
          _
        // Predicated region
        $region93: #{tpu_custom_call.1} parent=87 // pred_check
          %p586 = pneg %p201
        $region94: #{tpu_custom_call.1} parent=87 // pred_check_branch
          %588 = sbr.rel (%p586) target = $region96
        $region95: #{tpu_custom_call.1} parent=87 // pred_region
          %590 = dma.done [#allocation6], 16
        $region96: #{tpu_custom_call.1} parent=87 // pred_fallthru
          _
        // Predicated region
        $region97: #{tpu_custom_call.1} parent=87 // pred_check
          %p591 = pneg %p222
        $region98: #{tpu_custom_call.1} parent=87 // pred_check_branch
          %593 = sbr.rel (%p591) target = $region100
        $region99: #{tpu_custom_call.1} parent=87 // pred_region
          %595 = dma.done [#allocation9], 16
        $region100: #{tpu_custom_call.1} parent=87 // pred_fallthru
          _
        // Predicated region
        $region101: #{tpu_custom_call.1} parent=87 // pred_check
          %p596 = pneg %p243
        $region102: #{tpu_custom_call.1} parent=87 // pred_check_branch
          %598 = sbr.rel (%p596) target = $region104
        $region103: #{tpu_custom_call.1} parent=87 // pred_region
          %600 = dma.done [#allocation9], 16
        $region104: #{tpu_custom_call.1} parent=87 // pred_fallthru
          _
        // Predicated region
        $region105: #{tpu_custom_call.1} parent=87 // pred_check
          %p601 = pneg %p264
        $region106: #{tpu_custom_call.1} parent=87 // pred_check_branch
          %603 = sbr.rel (%p601) target = $region108
        $region107: #{tpu_custom_call.1} parent=87 // pred_region
          %605 = dma.done [#allocation12], 256
        $region108: #{tpu_custom_call.1} parent=87 // pred_fallthru
          _
        // Predicated region
        $region109: #{tpu_custom_call.1} parent=87 // pred_check
          %p606 = pneg %p348
        $region110: #{tpu_custom_call.1} parent=87 // pred_check_branch
          %608 = sbr.rel (%p606) target = $region112
        $region111: #{tpu_custom_call.1} parent=87 // pred_region
          %610 = dma.done [#allocation12], 256
        $region112: #{tpu_custom_call.1} parent=87 // pred_fallthru
          _
        %611 = sfence
        %p612 = scmp.lt.s32.totalorder %s39, 1
        %s613 = scalar_select %p612, %s39, 1
        %p614 = scmp.lt.s32.totalorder %s40, 0
        %s615 = scalar_select %p614, %s40, 0
        %s616 = sadd.s32 %s615, %s613
        %s617 = smul.addr %s616, 8
        %s618 = scalar_lea.vmem %s0, %s617
        %p619 = pneg %p70
        %p620 = pneg %p67
        %p621 = scmp.lt.s32.totalorder %s39, 1
        %s622 = scalar_select %p621, %s39, 1
        %s623 = smul.addr %s622, 8
        %s624 = scalar_lea.vmem %s1, %s623
        %p625 = pneg %p96
        %p626 = pneg %p93
        %p627 = pneg %p117
        %p628 = pneg %p114
        %p629 = pneg %p138
        %p630 = pneg %p135
        %p631 = pneg %p159
        %p632 = pneg %p156
        %p633 = pneg %p180
        %p634 = pneg %p177
        %p635 = pneg %p201
        %p636 = pneg %p198
        %p637 = pneg %p222
        %p638 = pneg %p219
        %p639 = pneg %p243
        %p640 = pneg %p240
        %p641 = pneg %p264
        %p642 = pneg %p261
        %p643 = pneg %p285
        %p644 = pneg %p282
        %p645 = pneg %p306
        %p646 = pneg %p303
        %p647 = pneg %p327
        %p648 = pneg %p324
        %p649 = pneg %p348
        %p650 = pneg %p345
        %p651 = pneg %p369
        %p652 = pneg %p366
        %p653 = pneg %p390
        %p654 = pneg %p387
        %p655 = pneg %p411
        %p656 = pneg %p408
        %p657 = pneg %p439
        %p658 = pneg %p436
        %s659 = sand.u32 %s426, 1
        %s660 = scalar_lea.sflag [#allocation5], %s659
        %s661 = sand.u32 %s426, 1
        %s662 = smul.addr %s661, 8
        %s663 = scalar_lea.vmem [#allocation14], %s662
        %p664 = scmp.lt.s32.totalorder %s39, 1
        %s665 = scalar_select %p664, %s39, 1
        %p666 = scmp.lt.s32.totalorder %s40, 0
        %s667 = scalar_select %p666, %s40, 0
        %s668 = sadd.s32 %s667, %s665
        %s669 = smul.addr %s668, 8
        %s670 = scalar_lea.vmem %s0, %s669
        %p671 = scmp.lt.s32.totalorder %s39, 1
        %s672 = scalar_select %p671, %s39, 1
        %s673 = smul.addr %s672, 8
        %s674 = scalar_lea.vmem %s1, %s673
        %v676 = vld [vmem:[%s670] sm:$0xff]
        %v677 = vld [vmem:[%s674] sm:$0xff]
        %v678 = vld [vmem:[%s2] sm:$0x1]
        %v679 = vld [vmem:[%s3] sm:$0x1]
        %vm680 = vcmask 261120
        %v681 = vsel %vm680, %v676, 0.0
        %682 = vadd.xlane.f32.xlu0 %v681
        %v683 = vpop.xlane.xlu0 %682
        %v684 = vrcp.pop 32.0
        %v685 = vmul.f32 32.0, %v684
        %v686 = vsub.f32 1.0, %v685
        %v687 = vmul.f32 %v684, %v686
        %v688 = vadd.f32 %v684, %v687
        %vm689 = vweird.f32 %v684
        %v690 = vsel %vm689, %v684, %v688
        %v691 = vmul.f32 %v683, %v690
        %v692 = vsub.f32 %v676, %v691
        %v693 = vmul.f32 %v692, %v692
        %v694 = vsel %vm680, %v693, 0.0
        %695 = vadd.xlane.f32.xlu0 %v694
        %v696 = vpop.xlane.xlu0 %695
        %v697 = vmul.f32 %v696, %v690
        %v698 = vadd.f32 %v697, 1e-05
        %v699 = vrsqrt.pop %v698
        %v700 = vmul.f32 %v699, %v698
        %v701 = vmul.f32 %v700, %v699
        %v702 = vmul.f32 0.5, %v701
        %v703 = vsub.f32 1.5, %v702
        %v704 = vmul.f32 %v699, %v703
        %vm705 = vweird.f32 %v698
        %vm706 = vweird.f32 %v699
        %vm707 = vmor %vm705, %vm706
        %v708 = vsel %vm707, %v699, %v704
        %v709 = vmul.f32 %v692, %v708
        %v711 = vperm.slane %v678, 0
        %v713 = vmul.f32 %v709, %v711
        %v715 = vperm.slane %v679, 0
        %v717 = vadd.f32 %v713, %v715
        %v718 = vsel %vm680, %v677, 0.0
        %719 = vadd.xlane.f32.xlu0 %v718
        %v720 = vpop.xlane.xlu0 %719
        %v721 = vmul.f32 %v720, %v690
        %v722 = vsub.f32 %v677, %v721
        %v723 = vmul.f32 %v722, %v722
        %v724 = vsel %vm680, %v723, 0.0
        %725 = vadd.xlane.f32.xlu0 %v724
        %v726 = vpop.xlane.xlu0 %725
        %v727 = vmul.f32 %v726, %v690
        %v728 = vadd.f32 %v727, 1e-05
        %v729 = vrsqrt.pop %v728
        %v730 = vmul.f32 %v729, %v728
        %v731 = vmul.f32 %v730, %v729
        %v732 = vmul.f32 0.5, %v731
        %v733 = vsub.f32 1.5, %v732
        %v734 = vmul.f32 %v729, %v733
        %vm735 = vweird.f32 %v728
        %vm736 = vweird.f32 %v729
        %vm737 = vmor %vm735, %vm736
        %v738 = vsel %vm737, %v729, %v734
        %v739 = vmul.f32 %v722, %v738
        %v740 = vmul.f32 %v739, %v711
        %v741 = vadd.f32 %v740, %v715
        %v742 = vpack.c.bf16 %v717, %v717
        %v743 = vld [vmem:[%s4] sm:$0xf]
        %v744 = vld [vmem:[%s4 + $0x4] sm:$0xf]
        %v745 = vld [vmem:[%s4 + $0x8] sm:$0xf]
        %v746 = vld [vmem:[%s4 + $0xc] sm:$0xf]
        %v751 = vunpack.c.l.b16 %v743
        %v752 = vunpack.c.l.b16 %v744
        %v753 = vunpack.c.l.b16 %v745
        %v754 = vunpack.c.l.b16 %v746
        %v755 = vpack.c.b16 %v752, %v751
        %v756 = vpack.c.b16 %v754, %v753
        %v760 = vsel %vm680, %v742, 0
        %762 = vmatpush.bf16.msra.mxu0 0
        %763 = vmatpush.bf16.msra.mxu0 0
        %764 = vmatpush.bf16.msra.mxu0 0
        %765 = vmatpush.bf16.msra.mxu0 0
        %766 = vmatpush.bf16.msra.mxu0 0
        %767 = vmatpush.bf16.msra.mxu0 0
        %768 = vmatpush.bf16.msra.mxu0 %v756
        %769 = vmatpush.bf16.msra.mxu0 %v755
        %770 = vmatmul.bf16.gmra.mxu0 %v760
        %v771 = vpop.f32.mrf.mxu0
        %v772 = vadd.f32 0.0, %v771
        %v773 = vpop.f32.mrf.mxu0
        %774 = vdwg.mxu0
        %v775 = vpack.c.bf16 %v772, %v772
        %v776 = vpack.c.bf16 %v741, %v741
        %v777 = vld [vmem:[#allocation3] sm:$0xf]
        %v778 = vld [vmem:[#allocation3 + $0x4] sm:$0xf]
        %v779 = vld [vmem:[#allocation3 + $0x8] sm:$0xf]
        %v780 = vld [vmem:[#allocation3 + $0xc] sm:$0xf]
        %v785 = vunpack.c.l.b16 %v777
        %v786 = vunpack.c.l.b16 %v778
        %v787 = vunpack.c.l.b16 %v779
        %v788 = vunpack.c.l.b16 %v780
        %v789 = vpack.c.b16 %v786, %v785
        %v790 = vpack.c.b16 %v788, %v787
        %v794 = vsel %vm680, %v776, 0
        %796 = vmatpush.bf16.msra.mxu0 0
        %797 = vmatpush.bf16.msra.mxu0 0
        %798 = vmatpush.bf16.msra.mxu0 0
        %799 = vmatpush.bf16.msra.mxu0 0
        %800 = vmatpush.bf16.msra.mxu0 0
        %801 = vmatpush.bf16.msra.mxu0 0
        %802 = vmatpush.bf16.msra.mxu0 %v790
        %803 = vmatpush.bf16.msra.mxu0 %v789
        %804 = vmatmul.bf16.gmra.mxu0 %v794
        %v805 = vpop.f32.mrf.mxu0
        %v806 = vadd.f32 0.0, %v805
        %v807 = vpop.f32.mrf.mxu0
        %808 = vdwg.mxu0
        %v809 = vpack.c.bf16 %v806, %v806
        %s810 = sld [smem:[#allocation7]]
        %s811 = sld [smem:[#allocation7 + $0x1]]
        %s812 = sld [smem:[#allocation7 + $0x2]]
        %s813 = sld [smem:[#allocation7 + $0x3]]
        %s814 = sld [smem:[#allocation7 + $0x4]]
        %s815 = sld [smem:[#allocation7 + $0x5]]
        %s816 = sld [smem:[#allocation7 + $0x6]]
        %s817 = sld [smem:[#allocation7 + $0x7]]
        %s818 = sld [smem:[#allocation7 + $0x8]]
        %s819 = sld [smem:[#allocation7 + $0x9]]
        %s820 = sld [smem:[#allocation7 + $0xa]]
        %s821 = sld [smem:[#allocation7 + $0xb]]
        %s822 = sld [smem:[#allocation7 + $0xc]]
        %s823 = sld [smem:[#allocation7 + $0xd]]
        %s824 = sld [smem:[#allocation7 + $0xe]]
        %s825 = sld [smem:[#allocation7 + $0xf]]
        %s826 = sadd.f32 %s810, 0.0
        %s827 = sadd.f32 %s826, %s811
        %s828 = sadd.f32 %s827, %s812
        %s829 = sadd.f32 %s828, %s813
        %s830 = smul.f32 %s829, 0.25
        %s831 = sadd.f32 %s814, 0.0
        %s832 = sadd.f32 %s831, %s815
        %s833 = sadd.f32 %s832, %s816
        %s834 = sadd.f32 %s833, %s817
        %s835 = smul.f32 %s834, 0.25
        %s836 = sadd.f32 %s818, 0.0
        %s837 = sadd.f32 %s836, %s819
        %s838 = sadd.f32 %s837, %s820
        %s839 = sadd.f32 %s838, %s821
        %s840 = smul.f32 %s839, 0.25
        %s841 = sadd.f32 %s822, 0.0
        %s842 = sadd.f32 %s841, %s823
        %s843 = sadd.f32 %s842, %s824
        %s844 = sadd.f32 %s843, %s825
        %s845 = smul.f32 %s844, 0.25
        %s846 = sld [smem:[#allocation8]]
        %s847 = sld [smem:[#allocation8 + $0x1]]
        %s848 = sld [smem:[#allocation8 + $0x2]]
        %s849 = sld [smem:[#allocation8 + $0x3]]
        %s850 = sld [smem:[#allocation10]]
        %s851 = sld [smem:[#allocation10 + $0x1]]
        %s852 = sld [smem:[#allocation10 + $0x2]]
        %s853 = sld [smem:[#allocation10 + $0x3]]
        %vm854 = vcmask 64512
        %v856 = vsel %vm854, %v775, 0
        %v859 = vsel %vm854, %v809, 0
        %861 = vmatpush.bf16.xpose.msra.mxu0 0
        %862 = vmatpush.bf16.xpose.msra.mxu0 0
        %863 = vmatpush.bf16.xpose.msra.mxu0 0
        %864 = vmatpush.bf16.xpose.msra.mxu0 0
        %865 = vmatpush.bf16.xpose.msra.mxu0 0
        %866 = vmatpush.bf16.xpose.msra.mxu0 0
        %867 = vmatpush.bf16.xpose.msra.mxu0 0
        %868 = vmatpush.bf16.xpose.msra.mxu0 %v859
        %869 = vmatmul.bf16.gmra.mxu0 %v856
        %v870 = vpop.f32.mrf.mxu0
        %v871 = vadd.f32 0.0, %v870
        %v872 = vpop.f32.mrf.mxu0
        %873 = vdwg.mxu0
        %v874 = vsel %vm854, %v871, -inf
        %875 = vmax.xlane.f32.xlu0 %v874
        %v876 = vpop.xlane.xlu0 %875
        %v877 = vsub.f32 %v871, %v876
        %v878 = vmul.f32 %v877, 1.442695
        %v879 = vpow.pop %v878
        %v880 = vsel %vm854, %v879, 0.0
        %881 = vadd.xlane.f32.xlu0 %v880
        %v882 = vpop.xlane.xlu0 %881
        %v883 = vrcp.pop %v882
        %v884 = vmul.f32 %v879, %v883
        %v885 = vstv %s830
        %v886 = vmul.f32 %v884, %v885
        %v887 = vstv %s810
        %v888 = vmul.f32 %v887, %v884
        %889 = vst.msk [vmem:[#allocation2] sm:$0xff] %vm854, %v888
        %v890 = vstv %s811
        %v891 = vmul.f32 %v890, %v884
        %s892 = scalar_lea.vmem [#allocation2], 8
        %893 = vst.msk [vmem:[%s892] sm:$0xff] %vm854, %v891
        %v894 = vstv %s812
        %v895 = vmul.f32 %v894, %v884
        %s896 = scalar_lea.vmem [#allocation2], 16
        %897 = vst.msk [vmem:[%s896] sm:$0xff] %vm854, %v895
        %v898 = vstv %s813
        %v899 = vmul.f32 %v898, %v884
        %s900 = scalar_lea.vmem [#allocation2], 24
        %901 = vst.msk [vmem:[%s900] sm:$0xff] %vm854, %v899
        %v903 = vunpack.c.l.b16 %v775
        %v904 = vpack.c.b16 %v903, %v903
        %905 = vrot.lane.b32.xlu0 %v904, 120
        %v906 = vpop.permute.xlu0 %905
        %v908 = vunpack.c.l.b16 %v809
        %v909 = vpack.c.b16 %v908, %v908
        %910 = vrot.lane.b32.xlu0 %v909, 120
        %v911 = vpop.permute.xlu0 %910
        %v913 = vsel %vm854, %v906, 0
        %v916 = vsel %vm854, %v911, 0
        %918 = vmatpush.bf16.xpose.msra.mxu0 0
        %919 = vmatpush.bf16.xpose.msra.mxu0 0
        %920 = vmatpush.bf16.xpose.msra.mxu0 0
        %921 = vmatpush.bf16.xpose.msra.mxu0 0
        %922 = vmatpush.bf16.xpose.msra.mxu0 0
        %923 = vmatpush.bf16.xpose.msra.mxu0 0
        %924 = vmatpush.bf16.xpose.msra.mxu0 0
        %925 = vmatpush.bf16.xpose.msra.mxu0 %v916
        %926 = vmatmul.bf16.gmra.mxu0 %v913
        %v927 = vpop.f32.mrf.mxu0
        %v928 = vadd.f32 0.0, %v927
        %v929 = vpop.f32.mrf.mxu0
        %930 = vdwg.mxu0
        %v931 = vsel %vm854, %v928, -inf
        %932 = vmax.xlane.f32.xlu0 %v931
        %v933 = vpop.xlane.xlu0 %932
        %v934 = vsub.f32 %v928, %v933
        %v935 = vmul.f32 %v934, 1.442695
        %v936 = vpow.pop %v935
        %v937 = vsel %vm854, %v936, 0.0
        %938 = vadd.xlane.f32.xlu0 %v937
        %v939 = vpop.xlane.xlu0 %938
        %v940 = vrcp.pop %v939
        %v941 = vmul.f32 %v936, %v940
        %v942 = vstv %s835
        %v943 = vmul.f32 %v941, %v942
        %v944 = vadd.f32 %v886, %v943
        %v945 = vld [vmem:[#allocation2] sm:$0xff]
        %v946 = vstv %s814
        %v947 = vmul.f32 %v946, %v941
        %v948 = vadd.f32 %v945, %v947
        %949 = vst.msk [vmem:[#allocation2] sm:$0xff] %vm854, %v948
        %v950 = vld [vmem:[%s892] sm:$0xff]
        %v951 = vstv %s815
        %v952 = vmul.f32 %v951, %v941
        %v953 = vadd.f32 %v950, %v952
        %954 = vst.msk [vmem:[%s892] sm:$0xff] %vm854, %v953
        %v955 = vld [vmem:[%s896] sm:$0xff]
        %v956 = vstv %s816
        %v957 = vmul.f32 %v956, %v941
        %v958 = vadd.f32 %v955, %v957
        %959 = vst.msk [vmem:[%s896] sm:$0xff] %vm854, %v958
        %v960 = vld [vmem:[%s900] sm:$0xff]
        %v961 = vstv %s817
        %v962 = vmul.f32 %v961, %v941
        %v963 = vadd.f32 %v960, %v962
        %964 = vst.msk [vmem:[%s900] sm:$0xff] %vm854, %v963
        %965 = vrot.lane.b32.xlu0 %v904, 112
        %v966 = vpop.permute.xlu0 %965
        %967 = vrot.lane.b32.xlu0 %v909, 112
        %v968 = vpop.permute.xlu0 %967
        %v970 = vsel %vm854, %v966, 0
        %v973 = vsel %vm854, %v968, 0
        %975 = vmatpush.bf16.xpose.msra.mxu0 0
        %976 = vmatpush.bf16.xpose.msra.mxu0 0
        %977 = vmatpush.bf16.xpose.msra.mxu0 0
        %978 = vmatpush.bf16.xpose.msra.mxu0 0
        %979 = vmatpush.bf16.xpose.msra.mxu0 0
        %980 = vmatpush.bf16.xpose.msra.mxu0 0
        %981 = vmatpush.bf16.xpose.msra.mxu0 0
        %982 = vmatpush.bf16.xpose.msra.mxu0 %v973
        %983 = vmatmul.bf16.gmra.mxu0 %v970
        %v984 = vpop.f32.mrf.mxu0
        %v985 = vadd.f32 0.0, %v984
        %v986 = vpop.f32.mrf.mxu0
        %987 = vdwg.mxu0
        %v988 = vsel %vm854, %v985, -inf
        %989 = vmax.xlane.f32.xlu0 %v988
        %v990 = vpop.xlane.xlu0 %989
        %v991 = vsub.f32 %v985, %v990
        %v992 = vmul.f32 %v991, 1.442695
        %v993 = vpow.pop %v992
        %v994 = vsel %vm854, %v993, 0.0
        %995 = vadd.xlane.f32.xlu0 %v994
        %v996 = vpop.xlane.xlu0 %995
        %v997 = vrcp.pop %v996
        %v998 = vmul.f32 %v993, %v997
        %v999 = vstv %s840
        %v1000 = vmul.f32 %v998, %v999
        %v1001 = vadd.f32 %v944, %v1000
        %v1002 = vld [vmem:[#allocation2] sm:$0xff]
        %v1003 = vstv %s818
        %v1004 = vmul.f32 %v1003, %v998
        %v1005 = vadd.f32 %v1002, %v1004
        %1006 = vst.msk [vmem:[#allocation2] sm:$0xff] %vm854, %v1005
        %v1007 = vld [vmem:[%s892] sm:$0xff]
        %v1008 = vstv %s819
        %v1009 = vmul.f32 %v1008, %v998
        %v1010 = vadd.f32 %v1007, %v1009
        %1011 = vst.msk [vmem:[%s892] sm:$0xff] %vm854, %v1010
        %v1012 = vld [vmem:[%s896] sm:$0xff]
        %v1013 = vstv %s820
        %v1014 = vmul.f32 %v1013, %v998
        %v1015 = vadd.f32 %v1012, %v1014
        %1016 = vst.msk [vmem:[%s896] sm:$0xff] %vm854, %v1015
        %v1017 = vld [vmem:[%s900] sm:$0xff]
        %v1018 = vstv %s821
        %v1019 = vmul.f32 %v1018, %v998
        %v1020 = vadd.f32 %v1017, %v1019
        %1021 = vst.msk [vmem:[%s900] sm:$0xff] %vm854, %v1020
        %1022 = vrot.lane.b32.xlu0 %v904, 104
        %v1023 = vpop.permute.xlu0 %1022
        %1024 = vrot.lane.b32.xlu0 %v909, 104
        %v1025 = vpop.permute.xlu0 %1024
        %v1027 = vsel %vm854, %v1023, 0
        %v1030 = vsel %vm854, %v1025, 0
        %1032 = vmatpush.bf16.xpose.msra.mxu0 0
        %1033 = vmatpush.bf16.xpose.msra.mxu0 0
        %1034 = vmatpush.bf16.xpose.msra.mxu0 0
        %1035 = vmatpush.bf16.xpose.msra.mxu0 0
        %1036 = vmatpush.bf16.xpose.msra.mxu0 0
        %1037 = vmatpush.bf16.xpose.msra.mxu0 0
        %1038 = vmatpush.bf16.xpose.msra.mxu0 0
        %1039 = vmatpush.bf16.xpose.msra.mxu0 %v1030
        %1040 = vmatmul.bf16.gmra.mxu0 %v1027
        %v1041 = vpop.f32.mrf.mxu0
        %v1042 = vadd.f32 0.0, %v1041
        %v1043 = vpop.f32.mrf.mxu0
        %1044 = vdwg.mxu0
        %v1045 = vsel %vm854, %v1042, -inf
        %1046 = vmax.xlane.f32.xlu0 %v1045
        %v1047 = vpop.xlane.xlu0 %1046
        %v1048 = vsub.f32 %v1042, %v1047
        %v1049 = vmul.f32 %v1048, 1.442695
        %v1050 = vpow.pop %v1049
        %v1051 = vsel %vm854, %v1050, 0.0
        %1052 = vadd.xlane.f32.xlu0 %v1051
        %v1053 = vpop.xlane.xlu0 %1052
        %v1054 = vrcp.pop %v1053
        %v1055 = vmul.f32 %v1050, %v1054
        %v1056 = vstv %s845
        %v1057 = vmul.f32 %v1055, %v1056
        %v1058 = vadd.f32 %v1001, %v1057
        %v1059 = vld [vmem:[#allocation2] sm:$0xff]
        %v1060 = vstv %s822
        %v1061 = vmul.f32 %v1060, %v1055
        %v1062 = vadd.f32 %v1059, %v1061
        %1063 = vst.msk [vmem:[#allocation2] sm:$0xff] %vm854, %v1062
        %v1064 = vld [vmem:[%s892] sm:$0xff]
        %v1065 = vstv %s823
        %v1066 = vmul.f32 %v1065, %v1055
        %v1067 = vadd.f32 %v1064, %v1066
        %1068 = vst.msk [vmem:[%s892] sm:$0xff] %vm854, %v1067
        %v1069 = vld [vmem:[%s896] sm:$0xff]
        %v1070 = vstv %s824
        %v1071 = vmul.f32 %v1070, %v1055
        %v1072 = vadd.f32 %v1069, %v1071
        %1073 = vst.msk [vmem:[%s896] sm:$0xff] %vm854, %v1072
        %v1074 = vld [vmem:[%s900] sm:$0xff]
        %v1075 = vstv %s825
        %v1076 = vmul.f32 %v1075, %v1055
        %v1077 = vadd.f32 %v1074, %v1076
        %1078 = vst.msk [vmem:[%s900] sm:$0xff] %vm854, %v1077
        %v1079 = vld [vmem:[#allocation2] sm:$0xff]
        %v1080 = vsub.f32 %v1079, %v1058
        %v1081 = vmul.f32 %v1080, %v1080
        %v1082 = vld [vmem:[%s892] sm:$0xff]
        %v1083 = vsub.f32 %v1082, %v1058
        %v1084 = vmul.f32 %v1083, %v1083
        %v1085 = vadd.f32 %v1081, %v1084
        %v1086 = vld [vmem:[%s896] sm:$0xff]
        %v1087 = vsub.f32 %v1086, %v1058
        %v1088 = vmul.f32 %v1087, %v1087
        %v1089 = vadd.f32 %v1085, %v1088
        %v1090 = vld [vmem:[%s900] sm:$0xff]
        %v1091 = vsub.f32 %v1090, %v1058
        %v1092 = vmul.f32 %v1091, %v1091
        %v1093 = vadd.f32 %v1089, %v1092
        %v1094 = vmul.f32 %v1093, 0.25
        %v1095 = vadd.f32 %v1094, 1e-05
        %v1096 = vrsqrt.pop %v1095
        %v1097 = vmul.f32 %v1096, %v1095
        %v1098 = vmul.f32 %v1097, %v1096
        %v1099 = vmul.f32 0.5, %v1098
        %v1100 = vsub.f32 1.5, %v1099
        %v1101 = vmul.f32 %v1096, %v1100
        %vm1102 = vweird.f32 %v1095
        %vm1103 = vweird.f32 %v1096
        %vm1104 = vmor %vm1102, %vm1103
        %v1105 = vsel %vm1104, %v1096, %v1101
        %v1106 = vstv %s846
        %v1107 = vmul.f32 %v1105, %v1106
        %v1108 = vmul.f32 %v1080, %v1107
        %v1109 = vstv %s850
        %v1110 = vadd.f32 %v1108, %v1109
        %v1111 = vpack.c.bf16 %v1110, %v1110
        %1112 = vrot.lane.b32.xlu0 %v909, 96
        %v1113 = vpop.permute.xlu0 %1112
        %v1115 = vsel %vm854, %v1111, 0
        %vm1117 = vcmask 1043456
        %v1119 = vsel %vm1117, %v1113, 0
        %1121 = vmatpush.bf16.msra.mxu0 0
        %1122 = vmatpush.bf16.msra.mxu0 0
        %1123 = vmatpush.bf16.msra.mxu0 0
        %1124 = vmatpush.bf16.msra.mxu0 0
        %1125 = vmatpush.bf16.msra.mxu0 0
        %1126 = vmatpush.bf16.msra.mxu0 0
        %1127 = vmatpush.bf16.msra.mxu0 0
        %1128 = vmatpush.bf16.msra.mxu0 %v1119
        %1129 = vmatmul.bf16.gmra.mxu0 %v1115
        %v1130 = vpop.f32.mrf.mxu0
        %v1131 = vadd.f32 0.0, %v1130
        %v1132 = vpop.f32.mrf.mxu0
        %1133 = vdwg.mxu0
        %v1134 = vpack.c.bf16 %v1131, %v1131
        %v1135 = vld [vmem:[#allocation11] sm:$0xf]
        %v1136 = vstv %s847
        %v1137 = vmul.f32 %v1105, %v1136
        %v1138 = vmul.f32 %v1083, %v1137
        %v1139 = vstv %s851
        %v1140 = vadd.f32 %v1138, %v1139
        %v1141 = vpack.c.bf16 %v1140, %v1140
        %1142 = vrot.lane.b32.xlu0 %v909, 88
        %v1143 = vpop.permute.xlu0 %1142
        %v1145 = vsel %vm854, %v1141, 0
        %v1148 = vsel %vm1117, %v1143, 0
        %1150 = vmatpush.bf16.msra.mxu0 0
        %1151 = vmatpush.bf16.msra.mxu0 0
        %1152 = vmatpush.bf16.msra.mxu0 0
        %1153 = vmatpush.bf16.msra.mxu0 0
        %1154 = vmatpush.bf16.msra.mxu0 0
        %1155 = vmatpush.bf16.msra.mxu0 0
        %1156 = vmatpush.bf16.msra.mxu0 0
        %1157 = vmatpush.bf16.msra.mxu0 %v1148
        %1158 = vmatmul.bf16.gmra.mxu0 %v1145
        %v1159 = vpop.f32.mrf.mxu0
        %v1160 = vadd.f32 0.0, %v1159
        %v1161 = vpop.f32.mrf.mxu0
        %1162 = vdwg.mxu0
        %v1163 = vpack.c.bf16 %v1160, %v1160
        %v1164 = vld [vmem:[#allocation11 + $0x4] sm:$0xf]
        %v1166 = vsel %vm854, %v1163, 0
        %v1169 = vsel %vm1117, %v1164, 0
        %1171 = vmatpush.bf16.msra.mxu0 0
        %1172 = vmatpush.bf16.msra.mxu0 0
        %1173 = vmatpush.bf16.msra.mxu0 0
        %1174 = vmatpush.bf16.msra.mxu0 0
        %1175 = vmatpush.bf16.msra.mxu0 0
        %1176 = vmatpush.bf16.msra.mxu0 0
        %1177 = vmatpush.bf16.msra.mxu0 0
        %1178 = vmatpush.bf16.msra.mxu0 %v1169
        %1179 = vmatmul.bf16.gmra.mxu0 %v1166
        %v1180 = vpop.f32.mrf.mxu0
        %v1181 = vadd.f32 0.0, %v1180
        %v1182 = vpop.f32.mrf.mxu0
        %1183 = vdwg.mxu0
        %v1185 = vsel %vm854, %v1134, 0
        %v1188 = vsel %vm1117, %v1135, 0
        %1190 = vmatpush.bf16.msra.mxu0 0
        %1191 = vmatpush.bf16.msra.mxu0 0
        %1192 = vmatpush.bf16.msra.mxu0 0
        %1193 = vmatpush.bf16.msra.mxu0 0
        %1194 = vmatpush.bf16.msra.mxu0 0
        %1195 = vmatpush.bf16.msra.mxu0 0
        %1196 = vmatpush.bf16.msra.mxu0 0
        %1197 = vmatpush.bf16.msra.mxu0 %v1188
        %1198 = vmatmul.bf16.gmra.mxu0 %v1185
        %v1199 = vpop.f32.mrf.mxu0
        %v1200 = vadd.f32 %v1181, %v1199
        %v1201 = vpop.f32.mrf.mxu0
        %1202 = vdwg.mxu0
        %v1203 = vstv %s848
        %v1204 = vmul.f32 %v1105, %v1203
        %v1205 = vmul.f32 %v1087, %v1204
        %v1206 = vstv %s852
        %v1207 = vadd.f32 %v1205, %v1206
        %v1208 = vpack.c.bf16 %v1207, %v1207
        %1209 = vrot.lane.b32.xlu0 %v909, 80
        %v1210 = vpop.permute.xlu0 %1209
        %v1212 = vsel %vm854, %v1208, 0
        %v1215 = vsel %vm1117, %v1210, 0
        %1217 = vmatpush.bf16.msra.mxu0 0
        %1218 = vmatpush.bf16.msra.mxu0 0
        %1219 = vmatpush.bf16.msra.mxu0 0
        %1220 = vmatpush.bf16.msra.mxu0 0
        %1221 = vmatpush.bf16.msra.mxu0 0
        %1222 = vmatpush.bf16.msra.mxu0 0
        %1223 = vmatpush.bf16.msra.mxu0 0
        %1224 = vmatpush.bf16.msra.mxu0 %v1215
        %1225 = vmatmul.bf16.gmra.mxu0 %v1212
        %v1226 = vpop.f32.mrf.mxu0
        %v1227 = vadd.f32 0.0, %v1226
        %v1228 = vpop.f32.mrf.mxu0
        %1229 = vdwg.mxu0
        %v1230 = vpack.c.bf16 %v1227, %v1227
        %v1231 = vld [vmem:[#allocation11 + $0x8] sm:$0xf]
        %v1233 = vsel %vm854, %v1230, 0
        %v1236 = vsel %vm1117, %v1231, 0
        %1238 = vmatpush.bf16.msra.mxu0 0
        %1239 = vmatpush.bf16.msra.mxu0 0
        %1240 = vmatpush.bf16.msra.mxu0 0
        %1241 = vmatpush.bf16.msra.mxu0 0
        %1242 = vmatpush.bf16.msra.mxu0 0
        %1243 = vmatpush.bf16.msra.mxu0 0
        %1244 = vmatpush.bf16.msra.mxu0 0
        %1245 = vmatpush.bf16.msra.mxu0 %v1236
        %1246 = vmatmul.bf16.gmra.mxu0 %v1233
        %v1247 = vpop.f32.mrf.mxu0
        %v1248 = vadd.f32 0.0, %v1247
        %v1249 = vpop.f32.mrf.mxu0
        %1250 = vdwg.mxu0
        %v1251 = vadd.f32 %v1200, %v1248
        %v1252 = vstv %s849
        %v1253 = vmul.f32 %v1105, %v1252
        %v1254 = vmul.f32 %v1091, %v1253
        %v1255 = vstv %s853
        %v1256 = vadd.f32 %v1254, %v1255
        %v1257 = vpack.c.bf16 %v1256, %v1256
        %1258 = vrot.lane.b32.xlu0 %v909, 72
        %v1259 = vpop.permute.xlu0 %1258
        %v1261 = vsel %vm854, %v1257, 0
        %v1264 = vsel %vm1117, %v1259, 0
        %1266 = vmatpush.bf16.msra.mxu0 0
        %1267 = vmatpush.bf16.msra.mxu0 0
        %1268 = vmatpush.bf16.msra.mxu0 0
        %1269 = vmatpush.bf16.msra.mxu0 0
        %1270 = vmatpush.bf16.msra.mxu0 0
        %1271 = vmatpush.bf16.msra.mxu0 0
        %1272 = vmatpush.bf16.msra.mxu0 0
        %1273 = vmatpush.bf16.msra.mxu0 %v1264
        %1274 = vmatmul.bf16.gmra.mxu0 %v1261
        %v1275 = vpop.f32.mrf.mxu0
        %v1276 = vadd.f32 0.0, %v1275
        %v1277 = vpop.f32.mrf.mxu0
        %1278 = vdwg.mxu0
        %v1279 = vpack.c.bf16 %v1276, %v1276
        %v1280 = vld [vmem:[#allocation11 + $0xc] sm:$0xf]
        %v1282 = vsel %vm854, %v1279, 0
        %v1285 = vsel %vm1117, %v1280, 0
        %1287 = vmatpush.bf16.msra.mxu0 0
        %1288 = vmatpush.bf16.msra.mxu0 0
        %1289 = vmatpush.bf16.msra.mxu0 0
        %1290 = vmatpush.bf16.msra.mxu0 0
        %1291 = vmatpush.bf16.msra.mxu0 0
        %1292 = vmatpush.bf16.msra.mxu0 0
        %1293 = vmatpush.bf16.msra.mxu0 0
        %1294 = vmatpush.bf16.msra.mxu0 %v1285
        %1295 = vmatmul.bf16.gmra.mxu0 %v1282
        %v1296 = vpop.f32.mrf.mxu0
        %v1297 = vadd.f32 0.0, %v1296
        %v1298 = vpop.f32.mrf.mxu0
        %1299 = vdwg.mxu0
        %v1300 = vadd.f32 %v1251, %v1297
        %v1301 = vld [vmem:[%s10] sm:$0x1]
        %v1303 = vperm.slane %v1301, 0
        %v1305 = vadd.f32 %v1300, %v1303
        %v1306 = vadd.f32 %v1305, %v676
        %v1307 = vld [vmem:[%s11] sm:$0x1]
        %v1308 = vld [vmem:[%s12] sm:$0x1]
        %v1309 = vsel %vm680, %v1306, 0.0
        %1310 = vadd.xlane.f32.xlu0 %v1309
        %v1311 = vpop.xlane.xlu0 %1310
        %v1312 = vmul.f32 %v1311, %v690
        %v1313 = vsub.f32 %v1306, %v1312
        %v1314 = vmul.f32 %v1313, %v1313
        %v1315 = vsel %vm680, %v1314, 0.0
        %1316 = vadd.xlane.f32.xlu0 %v1315
        %v1317 = vpop.xlane.xlu0 %1316
        %v1318 = vmul.f32 %v1317, %v690
        %v1319 = vadd.f32 %v1318, 1e-05
        %v1320 = vrsqrt.pop %v1319
        %v1321 = vmul.f32 %v1320, %v1319
        %v1322 = vmul.f32 %v1321, %v1320
        %v1323 = vmul.f32 0.5, %v1322
        %v1324 = vsub.f32 1.5, %v1323
        %v1325 = vmul.f32 %v1320, %v1324
        %vm1326 = vweird.f32 %v1319
        %vm1327 = vweird.f32 %v1320
        %vm1328 = vmor %vm1326, %vm1327
        %v1329 = vsel %vm1328, %v1320, %v1325
        %v1330 = vmul.f32 %v1313, %v1329
        %v1332 = vperm.slane %v1307, 0
        %v1334 = vmul.f32 %v1330, %v1332
        %v1336 = vperm.slane %v1308, 0
        %v1338 = vadd.f32 %v1334, %v1336
        %v1339 = vpack.c.bf16 %v1338, %v1338
        %v1340 = vld [vmem:[#allocation13] sm:$0xf]
        %v1341 = vld [vmem:[#allocation13 + $0x4] sm:$0xf]
        %v1342 = vld [vmem:[#allocation13 + $0x8] sm:$0xf]
        %v1343 = vld [vmem:[#allocation13 + $0xc] sm:$0xf]
        %v1344 = vld [vmem:[%s14] sm:$0x1]
        %v1346 = vperm.slane %v1344, 0
        %v1352 = vunpack.c.l.b16 %v1340
        %v1353 = vunpack.c.l.b16 %v1341
        %v1354 = vunpack.c.l.b16 %v1342
        %v1355 = vunpack.c.l.b16 %v1343
        %v1356 = vpack.c.b16 %v1353, %v1352
        %v1357 = vpack.c.b16 %v1355, %v1354
        %v1361 = vsel %vm680, %v1339, 0
        %1363 = vmatpush.bf16.msra.mxu0 0
        %1364 = vmatpush.bf16.msra.mxu0 0
        %1365 = vmatpush.bf16.msra.mxu0 0
        %1366 = vmatpush.bf16.msra.mxu0 0
        %1367 = vmatpush.bf16.msra.mxu0 0
        %1368 = vmatpush.bf16.msra.mxu0 0
        %1369 = vmatpush.bf16.msra.mxu0 %v1357
        %1370 = vmatpush.bf16.msra.mxu0 %v1356
        %1371 = vmatmul.bf16.gmra.mxu0 %v1361
        %v1372 = vpop.f32.mrf.mxu0
        %v1373 = vadd.f32 %v1346, %v1372
        %v1374 = vpop.f32.mrf.mxu0
        %1375 = vdwg.mxu0
        %v1376 = vmul.f32 %v1373, 0.5
        %v1377 = vmul.f32 %v1373, 0.70710677
        %v1378 = vand.u32 2147483647, %v1377
        %v1379 = vmul.f32 %v1378, 0.3275911
        %v1380 = vadd.f32 %v1379, 1.0
        %v1381 = vrcp.pop %v1380
        %v1382 = vmul.f32 %v1381, 1.0614054
        %v1383 = vadd.f32 %v1382, -1.4531521
        %v1384 = vmul.f32 %v1383, %v1381
        %v1385 = vadd.f32 %v1384, 1.4214138
        %v1386 = vmul.f32 %v1385, %v1381
        %v1387 = vadd.f32 %v1386, -0.28449672
        %v1388 = vmul.f32 %v1387, %v1381
        %v1389 = vadd.f32 %v1388, 0.2548296
        %v1390 = vmul.f32 %v1389, %v1381
        %v1391 = vsub.f32 0.0, %v1378
        %v1392 = vmul.f32 %v1391, %v1378
        %v1393 = vmul.f32 %v1392, 1.442695
        %v1394 = vpow.pop %v1393
        %v1395 = vmul.f32 %v1390, %v1394
        %v1396 = vsub.f32 1.0, %v1395
        %vm1397 = vcmp.ge.f32.partialorder %v1377, 0.0
        %v1398 = vsub.f32 0.0, %v1396
        %v1399 = vsel %vm1397, %v1396, %v1398
        %v1400 = vadd.f32 %v1399, 1.0
        %v1401 = vmul.f32 %v1376, %v1400
        %v1402 = vpack.c.bf16 %v1401, %v1401
        %v1403 = vld [vmem:[%s15] sm:$0xf]
        %v1404 = vld [vmem:[%s15 + $0x4] sm:$0xf]
        %v1405 = vld [vmem:[%s15 + $0x8] sm:$0xf]
        %v1406 = vld [vmem:[%s15 + $0xc] sm:$0xf]
        %v1407 = vld [vmem:[%s15 + $0x10] sm:$0xf]
        %v1408 = vld [vmem:[%s15 + $0x14] sm:$0xf]
        %v1409 = vld [vmem:[%s15 + $0x18] sm:$0xf]
        %v1410 = vld [vmem:[%s15 + $0x1c] sm:$0xf]
        %v1411 = vld [vmem:[%s16] sm:$0x1]
        %v1413 = vperm.slane %v1411, 0
        %v1423 = vunpack.c.l.b16 %v1403
        %v1424 = vunpack.c.l.b16 %v1404
        %v1425 = vunpack.c.l.b16 %v1405
        %v1426 = vunpack.c.l.b16 %v1406
        %v1427 = vunpack.c.l.b16 %v1407
        %v1428 = vunpack.c.l.b16 %v1408
        %v1429 = vunpack.c.l.b16 %v1409
        %v1430 = vunpack.c.l.b16 %v1410
        %v1431 = vpack.c.b16 %v1424, %v1423
        %v1432 = vpack.c.b16 %v1426, %v1425
        %v1433 = vpack.c.b16 %v1428, %v1427
        %v1434 = vpack.c.b16 %v1430, %v1429
        %vm1439 = vcmask 523264
        %v1441 = vsel %vm1439, %v1402, 0
        %1443 = vmatpush.bf16.msra.mxu0 0
        %1444 = vmatpush.bf16.msra.mxu0 0
        %1445 = vmatpush.bf16.msra.mxu0 0
        %1446 = vmatpush.bf16.msra.mxu0 0
        %1447 = vmatpush.bf16.msra.mxu0 %v1434
        %1448 = vmatpush.bf16.msra.mxu0 %v1433
        %1449 = vmatpush.bf16.msra.mxu0 %v1432
        %1450 = vmatpush.bf16.msra.mxu0 %v1431
        %1451 = vmatmul.bf16.gmra.mxu0 %v1441
        %v1452 = vpop.f32.mrf.mxu0
        %v1453 = vadd.f32 %v1413, %v1452
        %v1454 = vpop.f32.mrf.mxu0
        %1455 = vdwg.mxu0
        %v1456 = vadd.f32 %v1453, %v1306
        %1457 = vst.msk [vmem:[%s663] sm:$0xff] %vm680, %v1456
        %s1458 = sand.u32 %s426, 1
        %s1459 = scalar_lea.sflag [#allocation5], %s1458
        %s1460 = sand.u32 %s426, 1
        %s1461 = smul.addr %s1460, 8
        %s1462 = scalar_lea.vmem [#allocation14], %s1461
        // Predicated region
        $region113: #{tpu_custom_call.1} parent=87 // pred_check
          %p1463 = pneg %p436
        $region114: #{tpu_custom_call.1} parent=87 // pred_check_branch
          %1465 = sbr.rel (%p1463) target = $region116
        $region115: #{tpu_custom_call.1} parent=87 // pred_region
          %1467 = vsyncadd %s1459, 0
          %s1468 = sadd.s32 %s40, %s39
          %s1469 = smul.addr %s1468, 8
          %s1470 = scalar_lea.hbm %s17, %s1469
          %s1472 = sshll.u32 %s1462, 4
          %s1473 = int_to_ptr.vmem [resolvable:$true] %s1472
          %s1474 = sshll.u32 %s1470, 4
          %s1475 = int_to_ptr.hbm [resolvable:$true] %s1474
          %1477 = dma.vmem_to_hbm [thread:$0]  %s1473, 128, %s1475, %s1459
        $region116: #{tpu_custom_call.1} parent=87 // pred_fallthru
          _
      $region88: #{tpu_custom_call.1} parent=5 // pred_fallthru
        _
      %p1478 = scmp.le.s32.totalorder 2, %s30
      // Predicated region
      $region117: #{tpu_custom_call.1} parent=5 // pred_check
        %p1479 = pneg %p1478
      $region118: #{tpu_custom_call.1} parent=5 // pred_check_branch
        %1481 = sbr.rel (%p1479) target = $region120
      $region119: #{tpu_custom_call.1} parent=5 // pred_region
        %s1482 = ssub.s32 %s30, 2
        // Predicated region
        $region121: #{tpu_custom_call.1} parent=119 // pred_check
          %p1483 = pneg %p442
        $region122: #{tpu_custom_call.1} parent=119 // pred_check_branch
          %1485 = sbr.rel (%p1483) target = $region124
        $region123: #{tpu_custom_call.1} parent=119 // pred_region
          %s1486 = sand.u32 %s427, 1
          %s1487 = scalar_lea.sflag [#allocation5], %s1486
          %s1488 = sand.u32 %s427, 1
          %s1489 = smul.addr %s1488, 8
          %s1490 = scalar_lea.vmem [#allocation14], %s1489
          %1492 = dma.done %s1487, 128
        $region124: #{tpu_custom_call.1} parent=119 // pred_fallthru
          _
      $region120: #{tpu_custom_call.1} parent=5 // pred_fallthru
        _
    $region6: #{tpu_custom_call.1} parent=1 // loop_footer
      %s34 = sadd.s32 1, %s30
    $region7: #{tpu_custom_call.1} parent=1 // loop_footer_branch
      %29 = sbr.rel target = $region3
    $region8: #{tpu_custom_call.1} parent=1 // loop_exit
      _
    %1493 = vsyncpa [#allocation4], 1
    %s1494 = scalar_lea.sflag [#allocation4], 1
    %1495 = vsyncpa %s1494, 1
    %1496 = vsyncpa [#allocation12], 1
    %1497 = vsyncpa [#allocation5], 1
    %s1498 = scalar_lea.sflag [#allocation5], 1
    %1499 = vsyncpa %s1498, 1
    %1500 = vsyncpa [#allocation6], 1
    %s1501 = scalar_lea.sflag [#allocation6], 1
    %1502 = vsyncpa %s1501, 1
    %1503 = vsyncpa [#allocation9], 1

// kernel: tpu_custom_call.1
$region0: #{tpu_custom_call.1}
  #allocation0 [shape = 'u32[]', space=smem, size = 0x4, offset = 0x4, fixed_abs, tag = 'smem constant byte address 0x4 - core index']
  #allocation1 [shape = 'u32[72,128]{1,0:T(1,128)}', space=vmem, size = 0x9000, scoped, tag = 'internal scratch']
  #allocation2 [shape = 'f32[4,8,8]{2,1,0:T(8,128)}', space=vmem, size = 0x4000, scoped, tag = 'scratch operand']
  %s0 = inlined_call_operand.vmem [shape: f32[2,8,32], index: 0, kind: input, shape index: {}]
  %s1 = inlined_call_operand.vmem [shape: f32[2,8,32], index: 1, kind: input, shape index: {}]
  %s2 = inlined_call_operand.vmem [shape: f32[1,32], index: 2, kind: input, shape index: {}]
  %s3 = inlined_call_operand.vmem [shape: f32[1,32], index: 3, kind: input, shape index: {}]
  %s4 = inlined_call_operand.vmem [shape: bf16[32,32], index: 4, kind: input, shape index: {}]
  %s5 = inlined_call_operand.hbm [shape: bf16[32,64], index: 5, kind: input, shape index: {}]
  %s6 = inlined_call_operand.vmem [shape: f32[16], index: 6, kind: input, shape index: {}]
  %s7 = inlined_call_operand.vmem [shape: f32[4], index: 7, kind: input, shape index: {}]
  %s8 = inlined_call_operand.vmem [shape: f32[4], index: 8, kind: input, shape index: {}]
  %s9 = inlined_call_operand.hbm [shape: bf16[32,32], index: 9, kind: input, shape index: {}]
  %s10 = inlined_call_operand.vmem [shape: f32[1,32], index: 10, kind: input, shape index: {}]
  %s11 = inlined_call_operand.vmem [shape: f32[1,32], index: 11, kind: input, shape index: {}]
  %s12 = inlined_call_operand.vmem [shape: f32[1,32], index: 12, kind: input, shape index: {}]
  %s13 = inlined_call_operand.hbm [shape: bf16[32,64], index: 13, kind: input, shape index: {}]
  %s14 = inlined_call_operand.vmem [shape: f32[1,64], index: 14, kind: input, shape index: {}]
  %s15 = inlined_call_operand.vmem [shape: bf16[64,32], index: 15, kind: input, shape index: {}]
  %s16 = inlined_call_operand.vmem [shape: f32[1,32], index: 16, kind: input, shape index: {}]
  %s17 = inlined_call_operand.hbm [shape: f32[2,8,32], index: 17, kind: output, shape index: {}]
  %s18 = sld [smem:[#allocation0]]
  $region125: #{tpu_custom_call.1} parent=0
    _
  %s20 = ssub.s32 1, %s18
  %s21 = scalar_select 0, %s20, %s18
  $region1: #{tpu_custom_call.1} parent=0
    #allocation3 [shape = 'u8[8192]{0}', space=vmem, size = 0x2000, scoped, tag = 'input window, operand 5, single buffered']
    #allocation4 [shape = 's32[2]{0}', space=sflag, size = 0x8, scoped, tag = 'scoped memory for tpu_custom_call.1']
    #allocation5 [shape = 's32[2]{0}', space=sflag, size = 0x8, scoped, tag = 'scoped memory for tpu_custom_call.1']
    #allocation6 [shape = 's32[2]{0}', space=sflag, size = 0x8, scoped, tag = 'scoped memory for tpu_custom_call.1']
    #allocation7 [shape = 'u8[512]{0}', space=smem, size = 0x200, scoped, tag = 'input window, operand 6, single buffered']
    #allocation8 [shape = 'u8[512]{0}', space=smem, size = 0x200, scoped, tag = 'input window, operand 7, single buffered']
    #allocation9 [shape = 's32[1]{0}', space=sflag, size = 0x4, scoped, tag = 'scoped memory for tpu_custom_call.1']
    #allocation10 [shape = 'u8[512]{0}', space=smem, size = 0x200, scoped, tag = 'input window, operand 8, single buffered']
    #allocation11 [shape = 'u8[8192]{0}', space=vmem, size = 0x2000, scoped, tag = 'input window, operand 9, single buffered']
    #allocation12 [shape = 's32[1]{0}', space=sflag, size = 0x4, scoped, tag = 'scoped memory for tpu_custom_call.1']
    #allocation13 [shape = 'u8[8192]{0}', space=vmem, size = 0x2000, scoped, tag = 'input window, operand 13, single buffered']
    #allocation14 [shape = 'u8[8192]{0}', space=vmem, size = 0x2000, scoped, tag = 'output window, operand 0']
    %22 = vsyncpa [#allocation4], 0
    %23 = vsyncpa [#allocation6], 0
    %24 = vsyncpa [#allocation9], 0
    %25 = vsyncpa [#allocation12], 0
    %26 = vsyncpa [#allocation5], 0
    %s27 = scalar_lea.sflag [#allocation5], 1
    %28 = vsyncpa %s27, 0
    loop: start=0, step=1, limit=4
    $region2: #{tpu_custom_call.1} parent=1 // loop_pre_header
      _
    $region3: #{tpu_custom_call.1} parent=1 // loop_header
      %s30 = sphi 0, %s34
      %p31 = scmp.ge.s32.totalorder %s30, 4
      %s37 = sphi 0, %s49
      %s38 = sphi 0, %s45
      %s39 = sphi 0, %s37
      %s40 = sphi 0, %s38
      %s41 = sphi 0, %s39
      %s42 = sphi 0, %s40
      %s54 = sphi 0, %s56
      %s57 = sphi 0, %s54
      %s58 = sphi 0, %s57
      %s74 = sphi 0, %s58
      %s80 = sphi 0, %s82
      %s83 = sphi 0, %s80
      %s84 = sphi 0, %s83
      %s100 = sphi 0, %s84
      %s104 = sphi 0, %s104
      %s106 = sphi 0, %s104
      %s107 = sphi 0, %s106
      %s121 = sphi 0, %s107
      %s125 = sphi 0, %s125
      %s127 = sphi 0, %s125
      %s128 = sphi 0, %s127
      %s142 = sphi 0, %s128
      %s146 = sphi 0, %s146
      %s148 = sphi 0, %s146
      %s149 = sphi 0, %s148
      %s163 = sphi 0, %s149
      %s167 = sphi 0, %s167
      %s169 = sphi 0, %s167
      %s170 = sphi 0, %s169
      %s184 = sphi 0, %s170
      %s188 = sphi 0, %s188
      %s190 = sphi 0, %s188
      %s191 = sphi 0, %s190
      %s205 = sphi 0, %s191
      %s209 = sphi 0, %s209
      %s211 = sphi 0, %s209
      %s212 = sphi 0, %s211
      %s226 = sphi 0, %s212
      %s230 = sphi 0, %s230
      %s232 = sphi 0, %s230
      %s233 = sphi 0, %s232
      %s247 = sphi 0, %s233
      %s251 = sphi 0, %s251
      %s253 = sphi 0, %s251
      %s254 = sphi 0, %s253
      %s268 = sphi 0, %s254
      %s272 = sphi 0, %s272
      %s274 = sphi 0, %s272
      %s275 = sphi 0, %s274
      %s289 = sphi 0, %s275
      %s293 = sphi 0, %s293
      %s295 = sphi 0, %s293
      %s296 = sphi 0, %s295
      %s310 = sphi 0, %s296
      %s314 = sphi 0, %s314
      %s316 = sphi 0, %s314
      %s317 = sphi 0, %s316
      %s331 = sphi 0, %s317
      %s335 = sphi 0, %s335
      %s337 = sphi 0, %s335
      %s338 = sphi 0, %s337
      %s352 = sphi 0, %s338
      %s356 = sphi 0, %s356
      %s358 = sphi 0, %s356
      %s359 = sphi 0, %s358
      %s373 = sphi 0, %s359
      %s377 = sphi 0, %s377
      %s379 = sphi 0, %s377
      %s380 = sphi 0, %s379
      %s394 = sphi 0, %s380
      %s398 = sphi 0, %s398
      %s400 = sphi 0, %s398
      %s401 = sphi 0, %s400
      %s415 = sphi 0, %s401
      %s423 = sphi 0, %s425
      %s426 = sphi 0, %s423
      %s427 = sphi 0, %s426
      %s443 = sphi 0, %s427
    $region4: #{tpu_custom_call.1} parent=1 // loop_header_branch
      %33 = sbr.rel (%p31) target = $region8
    $region5: #{tpu_custom_call.1} parent=1 // loop_body
      %s35 = ssub.s32 %s30, 1
      %s36 = ssub.s32 %s30, 2
      %s43 = sadd.s32 1, %s38
      %p44 = scmp.ge.s32.totalorder %s43, 1
      %s45 = scalar_select %p44, 0, %s43
      %s46 = sadd.s32 1, %s37
      %s47 = scalar_select %p44, %s46, %s37
      %p48 = scmp.ge.s32.totalorder %s47, 2
      %s49 = scalar_select %p48, 0, %s47
      %s50 = ssub.s32 %s37, %s49
      %s51 = ssub.s32 %s38, %s45
      %s52 = sor.u32 %s50, %s51
      %p53 = scmp.eq.s32.totalorder %s52, 0
      %s55 = sadd.s32 %s54, 1
      %s56 = scalar_select %p53, %s54, %s55
      %p59 = pneg %p53
      %p60 = scmp.eq.s32.totalorder %s30, 1
      %p61 = por %p59, %p60
      %p62 = scmp.ne.s32.totalorder %s54, %s57
      %p63 = scmp.eq.s32.totalorder %s30, 0
      %p64 = por %p62, %p63
      %p65 = scmp.ne.s32.totalorder %s54, %s57
      %p66 = scmp.eq.s32.totalorder %s35, 1
      %p67 = por %p65, %p66
      %p68 = scmp.ne.s32.totalorder %s57, %s58
      %p69 = scmp.eq.s32.totalorder %s35, 0
      %p70 = por %p68, %p69
      %p71 = scmp.ne.s32.totalorder %s57, %s58
      %p72 = scmp.eq.s32.totalorder %s36, 1
      %p73 = por %p71, %p72
      %p75 = scmp.ne.s32.totalorder %s58, %s74
      %p76 = scmp.eq.s32.totalorder %s36, 0
      %p77 = por %p75, %p76
      %s78 = ssub.s32 %s37, %s49
      %p79 = scmp.eq.s32.totalorder %s78, 0
      %s81 = sadd.s32 %s80, 1
      %s82 = scalar_select %p79, %s80, %s81
      %p85 = pneg %p79
      %p86 = scmp.eq.s32.totalorder %s30, 1
      %p87 = por %p85, %p86
      %p88 = scmp.ne.s32.totalorder %s80, %s83
      %p89 = scmp.eq.s32.totalorder %s30, 0
      %p90 = por %p88, %p89
      %p91 = scmp.ne.s32.totalorder %s80, %s83
      %p92 = scmp.eq.s32.totalorder %s35, 1
      %p93 = por %p91, %p92
      %p94 = scmp.ne.s32.totalorder %s83, %s84
      %p95 = scmp.eq.s32.totalorder %s35, 0
      %p96 = por %p94, %p95
      %p97 = scmp.ne.s32.totalorder %s83, %s84
      %p98 = scmp.eq.s32.totalorder %s36, 1
      %p99 = por %p97, %p98
      %p101 = scmp.ne.s32.totalorder %s84, %s100
      %p102 = scmp.eq.s32.totalorder %s36, 0
      %p103 = por %p101, %p102
      %s105 = sadd.s32 %s104, 1
      %p108 = scmp.eq.s32.totalorder %s30, 1
      %p109 = scmp.ne.s32.totalorder %s104, %s106
      %p110 = scmp.eq.s32.totalorder %s30, 0
      %p111 = por %p109, %p110
      %p112 = scmp.ne.s32.totalorder %s104, %s106
      %p113 = scmp.eq.s32.totalorder %s35, 1
      %p114 = por %p112, %p113
      %p115 = scmp.ne.s32.totalorder %s106, %s107
      %p116 = scmp.eq.s32.totalorder %s35, 0
      %p117 = por %p115, %p116
      %p118 = scmp.ne.s32.totalorder %s106, %s107
      %p119 = scmp.eq.s32.totalorder %s36, 1
      %p120 = por %p118, %p119
      %p122 = scmp.ne.s32.totalorder %s107, %s121
      %p123 = scmp.eq.s32.totalorder %s36, 0
      %p124 = por %p122, %p123
      %s126 = sadd.s32 %s125, 1
      %p129 = scmp.eq.s32.totalorder %s30, 1
      %p130 = scmp.ne.s32.totalorder %s125, %s127
      %p131 = scmp.eq.s32.totalorder %s30, 0
      %p132 = por %p130, %p131
      %p133 = scmp.ne.s32.totalorder %s125, %s127
      %p134 = scmp.eq.s32.totalorder %s35, 1
      %p135 = por %p133, %p134
      %p136 = scmp.ne.s32.totalorder %s127, %s128
      %p137 = scmp.eq.s32.totalorder %s35, 0
      %p138 = por %p136, %p137
      %p139 = scmp.ne.s32.totalorder %s127, %s128
      %p140 = scmp.eq.s32.totalorder %s36, 1
      %p141 = por %p139, %p140
      %p143 = scmp.ne.s32.totalorder %s128, %s142
      %p144 = scmp.eq.s32.totalorder %s36, 0
      %p145 = por %p143, %p144
      %s147 = sadd.s32 %s146, 1
      %p150 = scmp.eq.s32.totalorder %s30, 1
      %p151 = scmp.ne.s32.totalorder %s146, %s148
      %p152 = scmp.eq.s32.totalorder %s30, 0
      %p153 = por %p151, %p152
      %p154 = scmp.ne.s32.totalorder %s146, %s148
      %p155 = scmp.eq.s32.totalorder %s35, 1
      %p156 = por %p154, %p155
      %p157 = scmp.ne.s32.totalorder %s148, %s149
      %p158 = scmp.eq.s32.totalorder %s35, 0
      %p159 = por %p157, %p158
      %p160 = scmp.ne.s32.totalorder %s148, %s149
      %p161 = scmp.eq.s32.totalorder %s36, 1
      %p162 = por %p160, %p161
      %p164 = scmp.ne.s32.totalorder %s149, %s163
      %p165 = scmp.eq.s32.totalorder %s36, 0
      %p166 = por %p164, %p165
      %s168 = sadd.s32 %s167, 1
      %p171 = scmp.eq.s32.totalorder %s30, 1
      %p172 = scmp.ne.s32.totalorder %s167, %s169
      %p173 = scmp.eq.s32.totalorder %s30, 0
      %p174 = por %p172, %p173
      %p175 = scmp.ne.s32.totalorder %s167, %s169
      %p176 = scmp.eq.s32.totalorder %s35, 1
      %p177 = por %p175, %p176
      %p178 = scmp.ne.s32.totalorder %s169, %s170
      %p179 = scmp.eq.s32.totalorder %s35, 0
      %p180 = por %p178, %p179
      %p181 = scmp.ne.s32.totalorder %s169, %s170
      %p182 = scmp.eq.s32.totalorder %s36, 1
      %p183 = por %p181, %p182
      %p185 = scmp.ne.s32.totalorder %s170, %s184
      %p186 = scmp.eq.s32.totalorder %s36, 0
      %p187 = por %p185, %p186
      %s189 = sadd.s32 %s188, 1
      %p192 = scmp.eq.s32.totalorder %s30, 1
      %p193 = scmp.ne.s32.totalorder %s188, %s190
      %p194 = scmp.eq.s32.totalorder %s30, 0
      %p195 = por %p193, %p194
      %p196 = scmp.ne.s32.totalorder %s188, %s190
      %p197 = scmp.eq.s32.totalorder %s35, 1
      %p198 = por %p196, %p197
      %p199 = scmp.ne.s32.totalorder %s190, %s191
      %p200 = scmp.eq.s32.totalorder %s35, 0
      %p201 = por %p199, %p200
      %p202 = scmp.ne.s32.totalorder %s190, %s191
      %p203 = scmp.eq.s32.totalorder %s36, 1
      %p204 = por %p202, %p203
      %p206 = scmp.ne.s32.totalorder %s191, %s205
      %p207 = scmp.eq.s32.totalorder %s36, 0
      %p208 = por %p206, %p207
      %s210 = sadd.s32 %s209, 1
      %p213 = scmp.eq.s32.totalorder %s30, 1
      %p214 = scmp.ne.s32.totalorder %s209, %s211
      %p215 = scmp.eq.s32.totalorder %s30, 0
      %p216 = por %p214, %p215
      %p217 = scmp.ne.s32.totalorder %s209, %s211
      %p218 = scmp.eq.s32.totalorder %s35, 1
      %p219 = por %p217, %p218
      %p220 = scmp.ne.s32.totalorder %s211, %s212
      %p221 = scmp.eq.s32.totalorder %s35, 0
      %p222 = por %p220, %p221
      %p223 = scmp.ne.s32.totalorder %s211, %s212
      %p224 = scmp.eq.s32.totalorder %s36, 1
      %p225 = por %p223, %p224
      %p227 = scmp.ne.s32.totalorder %s212, %s226
      %p228 = scmp.eq.s32.totalorder %s36, 0
      %p229 = por %p227, %p228
      %s231 = sadd.s32 %s230, 1
      %p234 = scmp.eq.s32.totalorder %s30, 1
      %p235 = scmp.ne.s32.totalorder %s230, %s232
      %p236 = scmp.eq.s32.totalorder %s30, 0
      %p237 = por %p235, %p236
      %p238 = scmp.ne.s32.totalorder %s230, %s232
      %p239 = scmp.eq.s32.totalorder %s35, 1
      %p240 = por %p238, %p239
      %p241 = scmp.ne.s32.totalorder %s232, %s233
      %p242 = scmp.eq.s32.totalorder %s35, 0
      %p243 = por %p241, %p242
      %p244 = scmp.ne.s32.totalorder %s232, %s233
      %p245 = scmp.eq.s32.totalorder %s36, 1
      %p246 = por %p244, %p245
      %p248 = scmp.ne.s32.totalorder %s233, %s247
      %p249 = scmp.eq.s32.totalorder %s36, 0
      %p250 = por %p248, %p249
      %s252 = sadd.s32 %s251, 1
      %p255 = scmp.eq.s32.totalorder %s30, 1
      %p256 = scmp.ne.s32.totalorder %s251, %s253
      %p257 = scmp.eq.s32.totalorder %s30, 0
      %p258 = por %p256, %p257
      %p259 = scmp.ne.s32.totalorder %s251, %s253
      %p260 = scmp.eq.s32.totalorder %s35, 1
      %p261 = por %p259, %p260
      %p262 = scmp.ne.s32.totalorder %s253, %s254
      %p263 = scmp.eq.s32.totalorder %s35, 0
      %p264 = por %p262, %p263
      %p265 = scmp.ne.s32.totalorder %s253, %s254
      %p266 = scmp.eq.s32.totalorder %s36, 1
      %p267 = por %p265, %p266
      %p269 = scmp.ne.s32.totalorder %s254, %s268
      %p270 = scmp.eq.s32.totalorder %s36, 0
      %p271 = por %p269, %p270
      %s273 = sadd.s32 %s272, 1
      %p276 = scmp.eq.s32.totalorder %s30, 1
      %p277 = scmp.ne.s32.totalorder %s272, %s274
      %p278 = scmp.eq.s32.totalorder %s30, 0
      %p279 = por %p277, %p278
      %p280 = scmp.ne.s32.totalorder %s272, %s274
      %p281 = scmp.eq.s32.totalorder %s35, 1
      %p282 = por %p280, %p281
      %p283 = scmp.ne.s32.totalorder %s274, %s275
      %p284 = scmp.eq.s32.totalorder %s35, 0
      %p285 = por %p283, %p284
      %p286 = scmp.ne.s32.totalorder %s274, %s275
      %p287 = scmp.eq.s32.totalorder %s36, 1
      %p288 = por %p286, %p287
      %p290 = scmp.ne.s32.totalorder %s275, %s289
      %p291 = scmp.eq.s32.totalorder %s36, 0
      %p292 = por %p290, %p291
      %s294 = sadd.s32 %s293, 1
      %p297 = scmp.eq.s32.totalorder %s30, 1
      %p298 = scmp.ne.s32.totalorder %s293, %s295
      %p299 = scmp.eq.s32.totalorder %s30, 0
      %p300 = por %p298, %p299
      %p301 = scmp.ne.s32.totalorder %s293, %s295
      %p302 = scmp.eq.s32.totalorder %s35, 1
      %p303 = por %p301, %p302
      %p304 = scmp.ne.s32.totalorder %s295, %s296
      %p305 = scmp.eq.s32.totalorder %s35, 0
      %p306 = por %p304, %p305
      %p307 = scmp.ne.s32.totalorder %s295, %s296
      %p308 = scmp.eq.s32.totalorder %s36, 1
      %p309 = por %p307, %p308
      %p311 = scmp.ne.s32.totalorder %s296, %s310
      %p312 = scmp.eq.s32.totalorder %s36, 0
      %p313 = por %p311, %p312
      %s315 = sadd.s32 %s314, 1
      %p318 = scmp.eq.s32.totalorder %s30, 1
      %p319 = scmp.ne.s32.totalorder %s314, %s316
      %p320 = scmp.eq.s32.totalorder %s30, 0
      %p321 = por %p319, %p320
      %p322 = scmp.ne.s32.totalorder %s314, %s316
      %p323 = scmp.eq.s32.totalorder %s35, 1
      %p324 = por %p322, %p323
      %p325 = scmp.ne.s32.totalorder %s316, %s317
      %p326 = scmp.eq.s32.totalorder %s35, 0
      %p327 = por %p325, %p326
      %p328 = scmp.ne.s32.totalorder %s316, %s317
      %p329 = scmp.eq.s32.totalorder %s36, 1
      %p330 = por %p328, %p329
      %p332 = scmp.ne.s32.totalorder %s317, %s331
      %p333 = scmp.eq.s32.totalorder %s36, 0
      %p334 = por %p332, %p333
      %s336 = sadd.s32 %s335, 1
      %p339 = scmp.eq.s32.totalorder %s30, 1
      %p340 = scmp.ne.s32.totalorder %s335, %s337
      %p341 = scmp.eq.s32.totalorder %s30, 0
      %p342 = por %p340, %p341
      %p343 = scmp.ne.s32.totalorder %s335, %s337
      %p344 = scmp.eq.s32.totalorder %s35, 1
      %p345 = por %p343, %p344
      %p346 = scmp.ne.s32.totalorder %s337, %s338
      %p347 = scmp.eq.s32.totalorder %s35, 0
      %p348 = por %p346, %p347
      %p349 = scmp.ne.s32.totalorder %s337, %s338
      %p350 = scmp.eq.s32.totalorder %s36, 1
      %p351 = por %p349, %p350
      %p353 = scmp.ne.s32.totalorder %s338, %s352
      %p354 = scmp.eq.s32.totalorder %s36, 0
      %p355 = por %p353, %p354
      %s357 = sadd.s32 %s356, 1
      %p360 = scmp.eq.s32.totalorder %s30, 1
      %p361 = scmp.ne.s32.totalorder %s356, %s358
      %p362 = scmp.eq.s32.totalorder %s30, 0
      %p363 = por %p361, %p362
      %p364 = scmp.ne.s32.totalorder %s356, %s358
      %p365 = scmp.eq.s32.totalorder %s35, 1
      %p366 = por %p364, %p365
      %p367 = scmp.ne.s32.totalorder %s358, %s359
      %p368 = scmp.eq.s32.totalorder %s35, 0
      %p369 = por %p367, %p368
      %p370 = scmp.ne.s32.totalorder %s358, %s359
      %p371 = scmp.eq.s32.totalorder %s36, 1
      %p372 = por %p370, %p371
      %p374 = scmp.ne.s32.totalorder %s359, %s373
      %p375 = scmp.eq.s32.totalorder %s36, 0
      %p376 = por %p374, %p375
      %s378 = sadd.s32 %s377, 1
      %p381 = scmp.eq.s32.totalorder %s30, 1
      %p382 = scmp.ne.s32.totalorder %s377, %s379
      %p383 = scmp.eq.s32.totalorder %s30, 0
      %p384 = por %p382, %p383
      %p385 = scmp.ne.s32.totalorder %s377, %s379
      %p386 = scmp.eq.s32.totalorder %s35, 1
      %p387 = por %p385, %p386
      %p388 = scmp.ne.s32.totalorder %s379, %s380
      %p389 = scmp.eq.s32.totalorder %s35, 0
      %p390 = por %p388, %p389
      %p391 = scmp.ne.s32.totalorder %s379, %s380
      %p392 = scmp.eq.s32.totalorder %s36, 1
      %p393 = por %p391, %p392
      %p395 = scmp.ne.s32.totalorder %s380, %s394
      %p396 = scmp.eq.s32.totalorder %s36, 0
      %p397 = por %p395, %p396
      %s399 = sadd.s32 %s398, 1
      %p402 = scmp.eq.s32.totalorder %s30, 1
      %p403 = scmp.ne.s32.totalorder %s398, %s400
      %p404 = scmp.eq.s32.totalorder %s30, 0
      %p405 = por %p403, %p404
      %p406 = scmp.ne.s32.totalorder %s398, %s400
      %p407 = scmp.eq.s32.totalorder %s35, 1
      %p408 = por %p406, %p407
      %p409 = scmp.ne.s32.totalorder %s400, %s401
      %p410 = scmp.eq.s32.totalorder %s35, 0
      %p411 = por %p409, %p410
      %p412 = scmp.ne.s32.totalorder %s400, %s401
      %p413 = scmp.eq.s32.totalorder %s36, 1
      %p414 = por %p412, %p413
      %p416 = scmp.ne.s32.totalorder %s401, %s415
      %p417 = scmp.eq.s32.totalorder %s36, 0
      %p418 = por %p416, %p417
      %s419 = ssub.s32 %s37, %s49
      %s420 = ssub.s32 %s38, %s45
      %s421 = sor.u32 %s419, %s420
      %p422 = scmp.eq.s32.totalorder %s421, 0
      %s424 = sadd.s32 %s423, 1
      %s425 = scalar_select %p422, %s423, %s424
      %p428 = pneg %p422
      %p429 = scmp.eq.s32.totalorder %s30, 1
      %p430 = por %p428, %p429
      %p431 = scmp.ne.s32.totalorder %s423, %s426
      %p432 = scmp.eq.s32.totalorder %s30, 0
      %p433 = por %p431, %p432
      %p434 = scmp.ne.s32.totalorder %s423, %s426
      %p435 = scmp.eq.s32.totalorder %s35, 1
      %p436 = por %p434, %p435
      %p437 = scmp.ne.s32.totalorder %s426, %s427
      %p438 = scmp.eq.s32.totalorder %s35, 0
      %p439 = por %p437, %p438
      %p440 = scmp.ne.s32.totalorder %s426, %s427
      %p441 = scmp.eq.s32.totalorder %s36, 1
      %p442 = por %p440, %p441
      %p444 = scmp.ne.s32.totalorder %s427, %s443
      %p445 = scmp.eq.s32.totalorder %s36, 0
      %p446 = por %p444, %p445
      %p447 = scmp.le.s32.totalorder 1, %s30
      %p448 = scmp.lt.s32.totalorder %s30, 3
      %p449 = pnand %p447, %p448
      %p450 = pneg %p449
      // Predicated region
      $region9: #{tpu_custom_call.1} parent=5 // pred_check
        _
      $region10: #{tpu_custom_call.1} parent=5 // pred_check_branch
        %452 = sbr.rel (%p449) target = $region12
      $region11: #{tpu_custom_call.1} parent=5 // pred_region
        %s453 = ssub.s32 %s30, 1
        // Predicated region
        $region13: #{tpu_custom_call.1} parent=11 // pred_check
          %p454 = pneg %p117
        $region14: #{tpu_custom_call.1} parent=11 // pred_check_branch
          %456 = sbr.rel (%p454) target = $region16
        $region15: #{tpu_custom_call.1} parent=11 // pred_region
          _
        $region16: #{tpu_custom_call.1} parent=11 // pred_fallthru
          _
        // Predicated region
        $region17: #{tpu_custom_call.1} parent=11 // pred_check
          %p457 = pneg %p138
        $region18: #{tpu_custom_call.1} parent=11 // pred_check_branch
          %459 = sbr.rel (%p457) target = $region20
        $region19: #{tpu_custom_call.1} parent=11 // pred_region
          _
        $region20: #{tpu_custom_call.1} parent=11 // pred_fallthru
          _
        // Predicated region
        $region21: #{tpu_custom_call.1} parent=11 // pred_check
          %p460 = pneg %p159
        $region22: #{tpu_custom_call.1} parent=11 // pred_check_branch
          %462 = sbr.rel (%p460) target = $region24
        $region23: #{tpu_custom_call.1} parent=11 // pred_region
          _
        $region24: #{tpu_custom_call.1} parent=11 // pred_fallthru
          _
        // Predicated region
        $region25: #{tpu_custom_call.1} parent=11 // pred_check
          %p463 = pneg %p180
        $region26: #{tpu_custom_call.1} parent=11 // pred_check_branch
          %465 = sbr.rel (%p463) target = $region28
        $region27: #{tpu_custom_call.1} parent=11 // pred_region
          %467 = vsyncadd [#allocation4], 0
          %s468 = sshll.u32 %s5, 4
          %s469 = int_to_ptr.hbm [resolvable:$true] %s468
          %s470 = sshll.u32 [#allocation3], 4
          %s471 = int_to_ptr.vmem [resolvable:$true] %s470
          %476 = dma.hbm_to_vmem [thread:$0]  %s469, 256, %s471, [#allocation4], 64, 64, 4
        $region28: #{tpu_custom_call.1} parent=11 // pred_fallthru
          _
        // Predicated region
        $region29: #{tpu_custom_call.1} parent=11 // pred_check
          %p477 = pneg %p201
        $region30: #{tpu_custom_call.1} parent=11 // pred_check_branch
          %479 = sbr.rel (%p477) target = $region32
        $region31: #{tpu_custom_call.1} parent=11 // pred_region
          %481 = vsyncadd [#allocation6], 0
          %s483 = sshll.u32 %s6, 4
          %s484 = int_to_ptr.vmem [resolvable:$true] %s483
          %486 = dma.vmem_to_smem %s484, 16, [#allocation7], [#allocation6]
        $region32: #{tpu_custom_call.1} parent=11 // pred_fallthru
          _
        // Predicated region
        $region33: #{tpu_custom_call.1} parent=11 // pred_check
          %p487 = pneg %p222
        $region34: #{tpu_custom_call.1} parent=11 // pred_check_branch
          %489 = sbr.rel (%p487) target = $region36
        $region35: #{tpu_custom_call.1} parent=11 // pred_region
          %491 = vsyncadd [#allocation9], 0
          %s493 = sshll.u32 %s7, 4
          %s494 = int_to_ptr.vmem [resolvable:$true] %s493
          %496 = dma.vmem_to_smem %s494, 16, [#allocation8], [#allocation9]
        $region36: #{tpu_custom_call.1} parent=11 // pred_fallthru
          _
        // Predicated region
        $region37: #{tpu_custom_call.1} parent=11 // pred_check
          %p497 = pneg %p243
        $region38: #{tpu_custom_call.1} parent=11 // pred_check_branch
          %499 = sbr.rel (%p497) target = $region40
        $region39: #{tpu_custom_call.1} parent=11 // pred_region
          %501 = vsyncadd [#allocation9], 0
          %s503 = sshll.u32 %s8, 4
          %s504 = int_to_ptr.vmem [resolvable:$true] %s503
          %506 = dma.vmem_to_smem %s504, 16, [#allocation10], [#allocation9]
        $region40: #{tpu_custom_call.1} parent=11 // pred_fallthru
          _
        // Predicated region
        $region41: #{tpu_custom_call.1} parent=11 // pred_check
          %p507 = pneg %p264
        $region42: #{tpu_custom_call.1} parent=11 // pred_check_branch
          %509 = sbr.rel (%p507) target = $region44
        $region43: #{tpu_custom_call.1} parent=11 // pred_region
          %511 = vsyncadd [#allocation12], 0
          %s512 = sshll.u32 %s9, 4
          %s513 = int_to_ptr.hbm [resolvable:$true] %s512
          %s514 = sshll.u32 [#allocation11], 4
          %s515 = int_to_ptr.vmem [resolvable:$true] %s514
          %520 = dma.hbm_to_vmem [thread:$0]  %s513, 256, %s515, [#allocation12], 64, 64, 4
        $region44: #{tpu_custom_call.1} parent=11 // pred_fallthru
          _
        // Predicated region
        $region45: #{tpu_custom_call.1} parent=11 // pred_check
          %p521 = pneg %p285
        $region46: #{tpu_custom_call.1} parent=11 // pred_check_branch
          %523 = sbr.rel (%p521) target = $region48
        $region47: #{tpu_custom_call.1} parent=11 // pred_region
          _
        $region48: #{tpu_custom_call.1} parent=11 // pred_fallthru
          _
        // Predicated region
        $region49: #{tpu_custom_call.1} parent=11 // pred_check
          %p524 = pneg %p306
        $region50: #{tpu_custom_call.1} parent=11 // pred_check_branch
          %526 = sbr.rel (%p524) target = $region52
        $region51: #{tpu_custom_call.1} parent=11 // pred_region
          _
        $region52: #{tpu_custom_call.1} parent=11 // pred_fallthru
          _
        // Predicated region
        $region53: #{tpu_custom_call.1} parent=11 // pred_check
          %p527 = pneg %p327
        $region54: #{tpu_custom_call.1} parent=11 // pred_check_branch
          %529 = sbr.rel (%p527) target = $region56
        $region55: #{tpu_custom_call.1} parent=11 // pred_region
          _
        $region56: #{tpu_custom_call.1} parent=11 // pred_fallthru
          _
        // Predicated region
        $region57: #{tpu_custom_call.1} parent=11 // pred_check
          %p530 = pneg %p348
        $region58: #{tpu_custom_call.1} parent=11 // pred_check_branch
          %532 = sbr.rel (%p530) target = $region60
        $region59: #{tpu_custom_call.1} parent=11 // pred_region
          %534 = vsyncadd [#allocation12], 0
          %s535 = sshll.u32 %s13, 4
          %s536 = int_to_ptr.hbm [resolvable:$true] %s535
          %s537 = sshll.u32 [#allocation13], 4
          %s538 = int_to_ptr.vmem [resolvable:$true] %s537
          %543 = dma.hbm_to_vmem [thread:$0]  %s536, 256, %s538, [#allocation12], 64, 64, 4
        $region60: #{tpu_custom_call.1} parent=11 // pred_fallthru
          _
        // Predicated region
        $region61: #{tpu_custom_call.1} parent=11 // pred_check
          %p544 = pneg %p369
        $region62: #{tpu_custom_call.1} parent=11 // pred_check_branch
          %546 = sbr.rel (%p544) target = $region64
        $region63: #{tpu_custom_call.1} parent=11 // pred_region
          _
        $region64: #{tpu_custom_call.1} parent=11 // pred_fallthru
          _
        // Predicated region
        $region65: #{tpu_custom_call.1} parent=11 // pred_check
          %p547 = pneg %p390
        $region66: #{tpu_custom_call.1} parent=11 // pred_check_branch
          %549 = sbr.rel (%p547) target = $region68
        $region67: #{tpu_custom_call.1} parent=11 // pred_region
          _
        $region68: #{tpu_custom_call.1} parent=11 // pred_fallthru
          _
        // Predicated region
        $region69: #{tpu_custom_call.1} parent=11 // pred_check
          %p550 = pneg %p411
        $region70: #{tpu_custom_call.1} parent=11 // pred_check_branch
          %552 = sbr.rel (%p550) target = $region72
        $region71: #{tpu_custom_call.1} parent=11 // pred_region
          _
        $region72: #{tpu_custom_call.1} parent=11 // pred_fallthru
          _
      $region12: #{tpu_custom_call.1} parent=5 // pred_fallthru
        _
      %p553 = scmp.lt.s32.totalorder %s30, 2
      // Predicated region
      $region73: #{tpu_custom_call.1} parent=5 // pred_check
        %p554 = pneg %p553
      $region74: #{tpu_custom_call.1} parent=5 // pred_check_branch
        %556 = sbr.rel (%p554) target = $region76
      $region75: #{tpu_custom_call.1} parent=5 // pred_region
        // Predicated region
        $region77: #{tpu_custom_call.1} parent=75 // pred_check
          %p557 = pneg %p64
        $region78: #{tpu_custom_call.1} parent=75 // pred_check_branch
          %559 = sbr.rel (%p557) target = $region80
        $region79: #{tpu_custom_call.1} parent=75 // pred_region
          %p560 = scmp.lt.s32.totalorder %s37, 1
          %s561 = scalar_select %p560, %s37, 1
          %p562 = scmp.lt.s32.totalorder %s38, 0
          %s563 = scalar_select %p562, %s38, 0
          %s564 = sadd.s32 %s563, %s561
          %s565 = smul.addr %s564, 8
          %s566 = scalar_lea.vmem %s0, %s565
        $region80: #{tpu_custom_call.1} parent=75 // pred_fallthru
          _
        // Predicated region
        $region81: #{tpu_custom_call.1} parent=75 // pred_check
          %p567 = pneg %p90
        $region82: #{tpu_custom_call.1} parent=75 // pred_check_branch
          %569 = sbr.rel (%p567) target = $region84
        $region83: #{tpu_custom_call.1} parent=75 // pred_region
          %p570 = scmp.lt.s32.totalorder %s37, 1
          %s571 = scalar_select %p570, %s37, 1
          %s572 = smul.addr %s571, 8
          %s573 = scalar_lea.vmem %s1, %s572
        $region84: #{tpu_custom_call.1} parent=75 // pred_fallthru
          _
      $region76: #{tpu_custom_call.1} parent=5 // pred_fallthru
        _
      %p574 = scmp.le.s32.totalorder 1, %s30
      %p575 = scmp.lt.s32.totalorder %s30, 3
      %p576 = pnand %p574, %p575
      %p577 = pneg %p576
      // Predicated region
      $region85: #{tpu_custom_call.1} parent=5 // pred_check
        _
      $region86: #{tpu_custom_call.1} parent=5 // pred_check_branch
        %579 = sbr.rel (%p576) target = $region88
      $region87: #{tpu_custom_call.1} parent=5 // pred_region
        %s580 = ssub.s32 %s30, 1
        // Predicated region
        $region89: #{tpu_custom_call.1} parent=87 // pred_check
          %p581 = pneg %p180
        $region90: #{tpu_custom_call.1} parent=87 // pred_check_branch
          %583 = sbr.rel (%p581) target = $region92
        $region91: #{tpu_custom_call.1} parent=87 // pred_region
          %585 = dma.done [#allocation4], 256
        $region92: #{tpu_custom_call.1} parent=87 // pred_fallthru
          _
        // Predicated region
        $region93: #{tpu_custom_call.1} parent=87 // pred_check
          %p586 = pneg %p201
        $region94: #{tpu_custom_call.1} parent=87 // pred_check_branch
          %588 = sbr.rel (%p586) target = $region96
        $region95: #{tpu_custom_call.1} parent=87 // pred_region
          %590 = dma.done [#allocation6], 16
        $region96: #{tpu_custom_call.1} parent=87 // pred_fallthru
          _
        // Predicated region
        $region97: #{tpu_custom_call.1} parent=87 // pred_check
          %p591 = pneg %p222
        $region98: #{tpu_custom_call.1} parent=87 // pred_check_branch
          %593 = sbr.rel (%p591) target = $region100
        $region99: #{tpu_custom_call.1} parent=87 // pred_region
          %595 = dma.done [#allocation9], 16
        $region100: #{tpu_custom_call.1} parent=87 // pred_fallthru
          _
        // Predicated region
        $region101: #{tpu_custom_call.1} parent=87 // pred_check
          %p596 = pneg %p243
        $region102: #{tpu_custom_call.1} parent=87 // pred_check_branch
          %598 = sbr.rel (%p596) target = $region104
        $region103: #{tpu_custom_call.1} parent=87 // pred_region
          %600 = dma.done [#allocation9], 16
        $region104: #{tpu_custom_call.1} parent=87 // pred_fallthru
          _
        // Predicated region
        $region105: #{tpu_custom_call.1} parent=87 // pred_check
          %p601 = pneg %p264
        $region106: #{tpu_custom_call.1} parent=87 // pred_check_branch
          %603 = sbr.rel (%p601) target = $region108
        $region107: #{tpu_custom_call.1} parent=87 // pred_region
          %605 = dma.done [#allocation12], 256
        $region108: #{tpu_custom_call.1} parent=87 // pred_fallthru
          _
        // Predicated region
        $region109: #{tpu_custom_call.1} parent=87 // pred_check
          %p606 = pneg %p348
        $region110: #{tpu_custom_call.1} parent=87 // pred_check_branch
          %608 = sbr.rel (%p606) target = $region112
        $region111: #{tpu_custom_call.1} parent=87 // pred_region
          %610 = dma.done [#allocation12], 256
        $region112: #{tpu_custom_call.1} parent=87 // pred_fallthru
          _
        %611 = sfence
        %p612 = scmp.lt.s32.totalorder %s39, 1
        %s613 = scalar_select %p612, %s39, 1
        %p614 = scmp.lt.s32.totalorder %s40, 0
        %s615 = scalar_select %p614, %s40, 0
        %s616 = sadd.s32 %s615, %s613
        %s617 = smul.addr %s616, 8
        %s618 = scalar_lea.vmem %s0, %s617
        %p619 = pneg %p70
        %p620 = pneg %p67
        %p621 = scmp.lt.s32.totalorder %s39, 1
        %s622 = scalar_select %p621, %s39, 1
        %s623 = smul.addr %s622, 8
        %s624 = scalar_lea.vmem %s1, %s623
        %p625 = pneg %p96
        %p626 = pneg %p93
        %p627 = pneg %p117
        %p628 = pneg %p114
        %p629 = pneg %p138
        %p630 = pneg %p135
        %p631 = pneg %p159
        %p632 = pneg %p156
        %p633 = pneg %p180
        %p634 = pneg %p177
        %p635 = pneg %p201
        %p636 = pneg %p198
        %p637 = pneg %p222
        %p638 = pneg %p219
        %p639 = pneg %p243
        %p640 = pneg %p240
        %p641 = pneg %p264
        %p642 = pneg %p261
        %p643 = pneg %p285
        %p644 = pneg %p282
        %p645 = pneg %p306
        %p646 = pneg %p303
        %p647 = pneg %p327
        %p648 = pneg %p324
        %p649 = pneg %p348
        %p650 = pneg %p345
        %p651 = pneg %p369
        %p652 = pneg %p366
        %p653 = pneg %p390
        %p654 = pneg %p387
        %p655 = pneg %p411
        %p656 = pneg %p408
        %p657 = pneg %p439
        %p658 = pneg %p436
        %s659 = sand.u32 %s426, 1
        %s660 = scalar_lea.sflag [#allocation5], %s659
        %s661 = sand.u32 %s426, 1
        %s662 = smul.addr %s661, 8
        %s663 = scalar_lea.vmem [#allocation14], %s662
        %p664 = scmp.lt.s32.totalorder %s39, 1
        %s665 = scalar_select %p664, %s39, 1
        %p666 = scmp.lt.s32.totalorder %s40, 0
        %s667 = scalar_select %p666, %s40, 0
        %s668 = sadd.s32 %s667, %s665
        %s669 = smul.addr %s668, 8
        %s670 = scalar_lea.vmem %s0, %s669
        %p671 = scmp.lt.s32.totalorder %s39, 1
        %s672 = scalar_select %p671, %s39, 1
        %s673 = smul.addr %s672, 8
        %s674 = scalar_lea.vmem %s1, %s673
        %v676 = vld [vmem:[%s670] sm:$0xff]
        %v677 = vld [vmem:[%s674] sm:$0xff]
        %v678 = vld [vmem:[%s2] sm:$0x1]
        %v679 = vld [vmem:[%s3] sm:$0x1]
        %vm680 = vcmask 261120
        %v681 = vsel %vm680, %v676, 0.0
        %682 = vadd.xlane.f32.xlu0 %v681
        %v683 = vpop.xlane.xlu0 %682
        %v684 = vrcp.pop 32.0
        %v685 = vmul.f32 32.0, %v684
        %v686 = vsub.f32 1.0, %v685
        %v687 = vmul.f32 %v684, %v686
        %v688 = vadd.f32 %v684, %v687
        %vm689 = vweird.f32 %v684
        %v690 = vsel %vm689, %v684, %v688
        %v691 = vmul.f32 %v683, %v690
        %v692 = vsub.f32 %v676, %v691
        %v693 = vmul.f32 %v692, %v692
        %v694 = vsel %vm680, %v693, 0.0
        %695 = vadd.xlane.f32.xlu0 %v694
        %v696 = vpop.xlane.xlu0 %695
        %v697 = vmul.f32 %v696, %v690
        %v698 = vadd.f32 %v697, 1e-05
        %v699 = vrsqrt.pop %v698
        %v700 = vmul.f32 %v699, %v698
        %v701 = vmul.f32 %v700, %v699
        %v702 = vmul.f32 0.5, %v701
        %v703 = vsub.f32 1.5, %v702
        %v704 = vmul.f32 %v699, %v703
        %vm705 = vweird.f32 %v698
        %vm706 = vweird.f32 %v699
        %vm707 = vmor %vm705, %vm706
        %v708 = vsel %vm707, %v699, %v704
        %v709 = vmul.f32 %v692, %v708
        %v711 = vperm.slane %v678, 0
        %v713 = vmul.f32 %v709, %v711
        %v715 = vperm.slane %v679, 0
        %v717 = vadd.f32 %v713, %v715
        %v718 = vsel %vm680, %v677, 0.0
        %719 = vadd.xlane.f32.xlu0 %v718
        %v720 = vpop.xlane.xlu0 %719
        %v721 = vmul.f32 %v720, %v690
        %v722 = vsub.f32 %v677, %v721
        %v723 = vmul.f32 %v722, %v722
        %v724 = vsel %vm680, %v723, 0.0
        %725 = vadd.xlane.f32.xlu0 %v724
        %v726 = vpop.xlane.xlu0 %725
        %v727 = vmul.f32 %v726, %v690
        %v728 = vadd.f32 %v727, 1e-05
        %v729 = vrsqrt.pop %v728
        %v730 = vmul.f32 %v729, %v728
        %v731 = vmul.f32 %v730, %v729
        %v732 = vmul.f32 0.5, %v731
        %v733 = vsub.f32 1.5, %v732
        %v734 = vmul.f32 %v729, %v733
        %vm735 = vweird.f32 %v728
        %vm736 = vweird.f32 %v729
        %vm737 = vmor %vm735, %vm736
        %v738 = vsel %vm737, %v729, %v734
        %v739 = vmul.f32 %v722, %v738
        %v740 = vmul.f32 %v739, %v711
        %v741 = vadd.f32 %v740, %v715
        %v742 = vpack.c.bf16 %v717, %v717
        %v743 = vld [vmem:[%s4] sm:$0xf]
        %v744 = vld [vmem:[%s4 + $0x4] sm:$0xf]
        %v745 = vld [vmem:[%s4 + $0x8] sm:$0xf]
        %v746 = vld [vmem:[%s4 + $0xc] sm:$0xf]
        %v751 = vunpack.c.l.b16 %v743
        %v752 = vunpack.c.l.b16 %v744
        %v753 = vunpack.c.l.b16 %v745
        %v754 = vunpack.c.l.b16 %v746
        %v755 = vpack.c.b16 %v752, %v751
        %v756 = vpack.c.b16 %v754, %v753
        %v760 = vsel %vm680, %v742, 0
        %762 = vmatpush.bf16.msra.mxu0 0
        %763 = vmatpush.bf16.msra.mxu0 0
        %764 = vmatpush.bf16.msra.mxu0 0
        %765 = vmatpush.bf16.msra.mxu0 0
        %766 = vmatpush.bf16.msra.mxu0 0
        %767 = vmatpush.bf16.msra.mxu0 0
        %768 = vmatpush.bf16.msra.mxu0 %v756
        %769 = vmatpush.bf16.msra.mxu0 %v755
        %770 = vmatmul.bf16.gmra.mxu0 %v760
        %v771 = vpop.f32.mrf.mxu0
        %v772 = vadd.f32 0.0, %v771
        %v773 = vpop.f32.mrf.mxu0
        %774 = vdwg.mxu0
        %v775 = vpack.c.bf16 %v772, %v772
        %v776 = vpack.c.bf16 %v741, %v741
        %v777 = vld [vmem:[#allocation3] sm:$0xf]
        %v778 = vld [vmem:[#allocation3 + $0x4] sm:$0xf]
        %v779 = vld [vmem:[#allocation3 + $0x8] sm:$0xf]
        %v780 = vld [vmem:[#allocation3 + $0xc] sm:$0xf]
        %v785 = vunpack.c.l.b16 %v777
        %v786 = vunpack.c.l.b16 %v778
        %v787 = vunpack.c.l.b16 %v779
        %v788 = vunpack.c.l.b16 %v780
        %v789 = vpack.c.b16 %v786, %v785
        %v790 = vpack.c.b16 %v788, %v787
        %v794 = vsel %vm680, %v776, 0
        %796 = vmatpush.bf16.msra.mxu0 0
        %797 = vmatpush.bf16.msra.mxu0 0
        %798 = vmatpush.bf16.msra.mxu0 0
        %799 = vmatpush.bf16.msra.mxu0 0
        %800 = vmatpush.bf16.msra.mxu0 0
        %801 = vmatpush.bf16.msra.mxu0 0
        %802 = vmatpush.bf16.msra.mxu0 %v790
        %803 = vmatpush.bf16.msra.mxu0 %v789
        %804 = vmatmul.bf16.gmra.mxu0 %v794
        %v805 = vpop.f32.mrf.mxu0
        %v806 = vadd.f32 0.0, %v805
        %v807 = vpop.f32.mrf.mxu0
        %808 = vdwg.mxu0
        %v809 = vpack.c.bf16 %v806, %v806
        %s810 = sld [smem:[#allocation7]]
        %s811 = sld [smem:[#allocation7 + $0x1]]
        %s812 = sld [smem:[#allocation7 + $0x2]]
        %s813 = sld [smem:[#allocation7 + $0x3]]
        %s814 = sld [smem:[#allocation7 + $0x4]]
        %s815 = sld [smem:[#allocation7 + $0x5]]
        %s816 = sld [smem:[#allocation7 + $0x6]]
        %s817 = sld [smem:[#allocation7 + $0x7]]
        %s818 = sld [smem:[#allocation7 + $0x8]]
        %s819 = sld [smem:[#allocation7 + $0x9]]
        %s820 = sld [smem:[#allocation7 + $0xa]]
        %s821 = sld [smem:[#allocation7 + $0xb]]
        %s822 = sld [smem:[#allocation7 + $0xc]]
        %s823 = sld [smem:[#allocation7 + $0xd]]
        %s824 = sld [smem:[#allocation7 + $0xe]]
        %s825 = sld [smem:[#allocation7 + $0xf]]
        %s826 = sadd.f32 %s810, 0.0
        %s827 = sadd.f32 %s826, %s811
        %s828 = sadd.f32 %s827, %s812
        %s829 = sadd.f32 %s828, %s813
        %s830 = smul.f32 %s829, 0.25
        %s831 = sadd.f32 %s814, 0.0
        %s832 = sadd.f32 %s831, %s815
        %s833 = sadd.f32 %s832, %s816
        %s834 = sadd.f32 %s833, %s817
        %s835 = smul.f32 %s834, 0.25
        %s836 = sadd.f32 %s818, 0.0
        %s837 = sadd.f32 %s836, %s819
        %s838 = sadd.f32 %s837, %s820
        %s839 = sadd.f32 %s838, %s821
        %s840 = smul.f32 %s839, 0.25
        %s841 = sadd.f32 %s822, 0.0
        %s842 = sadd.f32 %s841, %s823
        %s843 = sadd.f32 %s842, %s824
        %s844 = sadd.f32 %s843, %s825
        %s845 = smul.f32 %s844, 0.25
        %s846 = sld [smem:[#allocation8]]
        %s847 = sld [smem:[#allocation8 + $0x1]]
        %s848 = sld [smem:[#allocation8 + $0x2]]
        %s849 = sld [smem:[#allocation8 + $0x3]]
        %s850 = sld [smem:[#allocation10]]
        %s851 = sld [smem:[#allocation10 + $0x1]]
        %s852 = sld [smem:[#allocation10 + $0x2]]
        %s853 = sld [smem:[#allocation10 + $0x3]]
        %vm854 = vcmask 64512
        %v856 = vsel %vm854, %v775, 0
        %v859 = vsel %vm854, %v809, 0
        %861 = vmatpush.bf16.xpose.msra.mxu0 0
        %862 = vmatpush.bf16.xpose.msra.mxu0 0
        %863 = vmatpush.bf16.xpose.msra.mxu0 0
        %864 = vmatpush.bf16.xpose.msra.mxu0 0
        %865 = vmatpush.bf16.xpose.msra.mxu0 0
        %866 = vmatpush.bf16.xpose.msra.mxu0 0
        %867 = vmatpush.bf16.xpose.msra.mxu0 0
        %868 = vmatpush.bf16.xpose.msra.mxu0 %v859
        %869 = vmatmul.bf16.gmra.mxu0 %v856
        %v870 = vpop.f32.mrf.mxu0
        %v871 = vadd.f32 0.0, %v870
        %v872 = vpop.f32.mrf.mxu0
        %873 = vdwg.mxu0
        %v874 = vsel %vm854, %v871, -inf
        %875 = vmax.xlane.f32.xlu0 %v874
        %v876 = vpop.xlane.xlu0 %875
        %v877 = vsub.f32 %v871, %v876
        %v878 = vmul.f32 %v877, 1.442695
        %v879 = vpow.pop %v878
        %v880 = vsel %vm854, %v879, 0.0
        %881 = vadd.xlane.f32.xlu0 %v880
        %v882 = vpop.xlane.xlu0 %881
        %v883 = vrcp.pop %v882
        %v884 = vmul.f32 %v879, %v883
        %v885 = vstv %s830
        %v886 = vmul.f32 %v884, %v885
        %v887 = vstv %s810
        %v888 = vmul.f32 %v887, %v884
        %889 = vst.msk [vmem:[#allocation2] sm:$0xff] %vm854, %v888
        %v890 = vstv %s811
        %v891 = vmul.f32 %v890, %v884
        %s892 = scalar_lea.vmem [#allocation2], 8
        %893 = vst.msk [vmem:[%s892] sm:$0xff] %vm854, %v891
        %v894 = vstv %s812
        %v895 = vmul.f32 %v894, %v884
        %s896 = scalar_lea.vmem [#allocation2], 16
        %897 = vst.msk [vmem:[%s896] sm:$0xff] %vm854, %v895
        %v898 = vstv %s813
        %v899 = vmul.f32 %v898, %v884
        %s900 = scalar_lea.vmem [#allocation2], 24
        %901 = vst.msk [vmem:[%s900] sm:$0xff] %vm854, %v899
        %v903 = vunpack.c.l.b16 %v775
        %v904 = vpack.c.b16 %v903, %v903
        %905 = vrot.lane.b32.xlu0 %v904, 120
        %v906 = vpop.permute.xlu0 %905
        %v908 = vunpack.c.l.b16 %v809
        %v909 = vpack.c.b16 %v908, %v908
        %910 = vrot.lane.b32.xlu0 %v909, 120
        %v911 = vpop.permute.xlu0 %910
        %v913 = vsel %vm854, %v906, 0
        %v916 = vsel %vm854, %v911, 0
        %918 = vmatpush.bf16.xpose.msra.mxu0 0
        %919 = vmatpush.bf16.xpose.msra.mxu0 0
        %920 = vmatpush.bf16.xpose.msra.mxu0 0
        %921 = vmatpush.bf16.xpose.msra.mxu0 0
        %922 = vmatpush.bf16.xpose.msra.mxu0 0
        %923 = vmatpush.bf16.xpose.msra.mxu0 0
        %924 = vmatpush.bf16.xpose.msra.mxu0 0
        %925 = vmatpush.bf16.xpose.msra.mxu0 %v916
        %926 = vmatmul.bf16.gmra.mxu0 %v913
        %v927 = vpop.f32.mrf.mxu0
        %v928 = vadd.f32 0.0, %v927
        %v929 = vpop.f32.mrf.mxu0
        %930 = vdwg.mxu0
        %v931 = vsel %vm854, %v928, -inf
        %932 = vmax.xlane.f32.xlu0 %v931
        %v933 = vpop.xlane.xlu0 %932
        %v934 = vsub.f32 %v928, %v933
        %v935 = vmul.f32 %v934, 1.442695
        %v936 = vpow.pop %v935
        %v937 = vsel %vm854, %v936, 0.0
        %938 = vadd.xlane.f32.xlu0 %v937
        %v939 = vpop.xlane.xlu0 %938
        %v940 = vrcp.pop %v939
        %v941 = vmul.f32 %v936, %v940
        %v942 = vstv %s835
        %v943 = vmul.f32 %v941, %v942
        %v944 = vadd.f32 %v886, %v943
        %v945 = vld [vmem:[#allocation2] sm:$0xff]
        %v946 = vstv %s814
        %v947 = vmul.f32 %v946, %v941
        %v948 = vadd.f32 %v945, %v947
        %949 = vst.msk [vmem:[#allocation2] sm:$0xff] %vm854, %v948
        %v950 = vld [vmem:[%s892] sm:$0xff]
        %v951 = vstv %s815
        %v952 = vmul.f32 %v951, %v941
        %v953 = vadd.f32 %v950, %v952
        %954 = vst.msk [vmem:[%s892] sm:$0xff] %vm854, %v953
        %v955 = vld [vmem:[%s896] sm:$0xff]
        %v956 = vstv %s816
        %v957 = vmul.f32 %v956, %v941
        %v958 = vadd.f32 %v955, %v957
        %959 = vst.msk [vmem:[%s896] sm:$0xff] %vm854, %v958
        %v960 = vld [vmem:[%s900] sm:$0xff]
        %v961 = vstv %s817
        %v962 = vmul.f32 %v961, %v941
        %v963 = vadd.f32 %v960, %v962
        %964 = vst.msk [vmem:[%s900] sm:$0xff] %vm854, %v963
        %965 = vrot.lane.b32.xlu0 %v904, 112
        %v966 = vpop.permute.xlu0 %965
        %967 = vrot.lane.b32.xlu0 %v909, 112
        %v968 = vpop.permute.xlu0 %967
        %v970 = vsel %vm854, %v966, 0
        %v973 = vsel %vm854, %v968, 0
        %975 = vmatpush.bf16.xpose.msra.mxu0 0
        %976 = vmatpush.bf16.xpose.msra.mxu0 0
        %977 = vmatpush.bf16.xpose.msra.mxu0 0
        %978 = vmatpush.bf16.xpose.msra.mxu0 0
        %979 = vmatpush.bf16.xpose.msra.mxu0 0
        %980 = vmatpush.bf16.xpose.msra.mxu0 0
        %981 = vmatpush.bf16.xpose.msra.mxu0 0
        %982 = vmatpush.bf16.xpose.msra.mxu0 %v973
        %983 = vmatmul.bf16.gmra.mxu0 %v970
        %v984 = vpop.f32.mrf.mxu0
        %v985 = vadd.f32 0.0, %v984
        %v986 = vpop.f32.mrf.mxu0
        %987 = vdwg.mxu0
        %v988 = vsel %vm854, %v985, -inf
        %989 = vmax.xlane.f32.xlu0 %v988
        %v990 = vpop.xlane.xlu0 %989
        %v991 = vsub.f32 %v985, %v990
        %v992 = vmul.f32 %v991, 1.442695
        %v993 = vpow.pop %v992
        %v994 = vsel %vm854, %v993, 0.0
        %995 = vadd.xlane.f32.xlu0 %v994
        %v996 = vpop.xlane.xlu0 %995
        %v997 = vrcp.pop %v996
        %v998 = vmul.f32 %v993, %v997
        %v999 = vstv %s840
        %v1000 = vmul.f32 %v998, %v999
        %v1001 = vadd.f32 %v944, %v1000
        %v1002 = vld [vmem:[#allocation2] sm:$0xff]
        %v1003 = vstv %s818
        %v1004 = vmul.f32 %v1003, %v998
        %v1005 = vadd.f32 %v1002, %v1004
        %1006 = vst.msk [vmem:[#allocation2] sm:$0xff] %vm854, %v1005
        %v1007 = vld [vmem:[%s892] sm:$0xff]
        %v1008 = vstv %s819
        %v1009 = vmul.f32 %v1008, %v998
        %v1010 = vadd.f32 %v1007, %v1009
        %1011 = vst.msk [vmem:[%s892] sm:$0xff] %vm854, %v1010
        %v1012 = vld [vmem:[%s896] sm:$0xff]
        %v1013 = vstv %s820
        %v1014 = vmul.f32 %v1013, %v998
        %v1015 = vadd.f32 %v1012, %v1014
        %1016 = vst.msk [vmem:[%s896] sm:$0xff] %vm854, %v1015
        %v1017 = vld [vmem:[%s900] sm:$0xff]
        %v1018 = vstv %s821
        %v1019 = vmul.f32 %v1018, %v998
        %v1020 = vadd.f32 %v1017, %v1019
        %1021 = vst.msk [vmem:[%s900] sm:$0xff] %vm854, %v1020
        %1022 = vrot.lane.b32.xlu0 %v904, 104
        %v1023 = vpop.permute.xlu0 %1022
        %1024 = vrot.lane.b32.xlu0 %v909, 104
        %v1025 = vpop.permute.xlu0 %1024
        %v1027 = vsel %vm854, %v1023, 0
        %v1030 = vsel %vm854, %v1025, 0
        %1032 = vmatpush.bf16.xpose.msra.mxu0 0
        %1033 = vmatpush.bf16.xpose.msra.mxu0 0
        %1034 = vmatpush.bf16.xpose.msra.mxu0 0
        %1035 = vmatpush.bf16.xpose.msra.mxu0 0
        %1036 = vmatpush.bf16.xpose.msra.mxu0 0
        %1037 = vmatpush.bf16.xpose.msra.mxu0 0
        %1038 = vmatpush.bf16.xpose.msra.mxu0 0
        %1039 = vmatpush.bf16.xpose.msra.mxu0 %v1030
        %1040 = vmatmul.bf16.gmra.mxu0 %v1027
        %v1041 = vpop.f32.mrf.mxu0
        %v1042 = vadd.f32 0.0, %v1041
        %v1043 = vpop.f32.mrf.mxu0
        %1044 = vdwg.mxu0
        %v1045 = vsel %vm854, %v1042, -inf
        %1046 = vmax.xlane.f32.xlu0 %v1045
        %v1047 = vpop.xlane.xlu0 %1046
        %v1048 = vsub.f32 %v1042, %v1047
        %v1049 = vmul.f32 %v1048, 1.442695
        %v1050 = vpow.pop %v1049
        %v1051 = vsel %vm854, %v1050, 0.0
        %1052 = vadd.xlane.f32.xlu0 %v1051
        %v1053 = vpop.xlane.xlu0 %1052
        %v1054 = vrcp.pop %v1053
        %v1055 = vmul.f32 %v1050, %v1054
        %v1056 = vstv %s845
        %v1057 = vmul.f32 %v1055, %v1056
        %v1058 = vadd.f32 %v1001, %v1057
        %v1059 = vld [vmem:[#allocation2] sm:$0xff]
        %v1060 = vstv %s822
        %v1061 = vmul.f32 %v1060, %v1055
        %v1062 = vadd.f32 %v1059, %v1061
        %1063 = vst.msk [vmem:[#allocation2] sm:$0xff] %vm854, %v1062
        %v1064 = vld [vmem:[%s892] sm:$0xff]
        %v1065 = vstv %s823
        %v1066 = vmul.f32 %v1065, %v1055
        %v1067 = vadd.f32 %v1064, %v1066
        %1068 = vst.msk [vmem:[%s892] sm:$0xff] %vm854, %v1067
        %v1069 = vld [vmem:[%s896] sm:$0xff]
        %v1070 = vstv %s824
        %v1071 = vmul.f32 %v1070, %v1055
        %v1072 = vadd.f32 %v1069, %v1071
        %1073 = vst.msk [vmem:[%s896] sm:$0xff] %vm854, %v1072
        %v1074 = vld [vmem:[%s900] sm:$0xff]
        %v1075 = vstv %s825
        %v1076 = vmul.f32 %v1075, %v1055
        %v1077 = vadd.f32 %v1074, %v1076
        %1078 = vst.msk [vmem:[%s900] sm:$0xff] %vm854, %v1077
        %v1079 = vld [vmem:[#allocation2] sm:$0xff]
        %v1080 = vsub.f32 %v1079, %v1058
        %v1081 = vmul.f32 %v1080, %v1080
        %v1082 = vld [vmem:[%s892] sm:$0xff]
        %v1083 = vsub.f32 %v1082, %v1058
        %v1084 = vmul.f32 %v1083, %v1083
        %v1085 = vadd.f32 %v1081, %v1084
        %v1086 = vld [vmem:[%s896] sm:$0xff]
        %v1087 = vsub.f32 %v1086, %v1058
        %v1088 = vmul.f32 %v1087, %v1087
        %v1089 = vadd.f32 %v1085, %v1088
        %v1090 = vld [vmem:[%s900] sm:$0xff]
        %v1091 = vsub.f32 %v1090, %v1058
        %v1092 = vmul.f32 %v1091, %v1091
        %v1093 = vadd.f32 %v1089, %v1092
        %v1094 = vmul.f32 %v1093, 0.25
        %v1095 = vadd.f32 %v1094, 1e-05
        %v1096 = vrsqrt.pop %v1095
        %v1097 = vmul.f32 %v1096, %v1095
        %v1098 = vmul.f32 %v1097, %v1096
        %v1099 = vmul.f32 0.5, %v1098
        %v1100 = vsub.f32 1.5, %v1099
        %v1101 = vmul.f32 %v1096, %v1100
        %vm1102 = vweird.f32 %v1095
        %vm1103 = vweird.f32 %v1096
        %vm1104 = vmor %vm1102, %vm1103
        %v1105 = vsel %vm1104, %v1096, %v1101
        %v1106 = vstv %s846
        %v1107 = vmul.f32 %v1105, %v1106
        %v1108 = vmul.f32 %v1080, %v1107
        %v1109 = vstv %s850
        %v1110 = vadd.f32 %v1108, %v1109
        %v1111 = vpack.c.bf16 %v1110, %v1110
        %1112 = vrot.lane.b32.xlu0 %v909, 96
        %v1113 = vpop.permute.xlu0 %1112
        %v1115 = vsel %vm854, %v1111, 0
        %vm1117 = vcmask 1043456
        %v1119 = vsel %vm1117, %v1113, 0
        %1121 = vmatpush.bf16.msra.mxu0 0
        %1122 = vmatpush.bf16.msra.mxu0 0
        %1123 = vmatpush.bf16.msra.mxu0 0
        %1124 = vmatpush.bf16.msra.mxu0 0
        %1125 = vmatpush.bf16.msra.mxu0 0
        %1126 = vmatpush.bf16.msra.mxu0 0
        %1127 = vmatpush.bf16.msra.mxu0 0
        %1128 = vmatpush.bf16.msra.mxu0 %v1119
        %1129 = vmatmul.bf16.gmra.mxu0 %v1115
        %v1130 = vpop.f32.mrf.mxu0
        %v1131 = vadd.f32 0.0, %v1130
        %v1132 = vpop.f32.mrf.mxu0
        %1133 = vdwg.mxu0
        %v1134 = vpack.c.bf16 %v1131, %v1131
        %v1135 = vld [vmem:[#allocation11] sm:$0xf]
        %v1136 = vstv %s847
        %v1137 = vmul.f32 %v1105, %v1136
        %v1138 = vmul.f32 %v1083, %v1137
        %v1139 = vstv %s851
        %v1140 = vadd.f32 %v1138, %v1139
        %v1141 = vpack.c.bf16 %v1140, %v1140
        %1142 = vrot.lane.b32.xlu0 %v909, 88
        %v1143 = vpop.permute.xlu0 %1142
        %v1145 = vsel %vm854, %v1141, 0
        %v1148 = vsel %vm1117, %v1143, 0
        %1150 = vmatpush.bf16.msra.mxu0 0
        %1151 = vmatpush.bf16.msra.mxu0 0
        %1152 = vmatpush.bf16.msra.mxu0 0
        %1153 = vmatpush.bf16.msra.mxu0 0
        %1154 = vmatpush.bf16.msra.mxu0 0
        %1155 = vmatpush.bf16.msra.mxu0 0
        %1156 = vmatpush.bf16.msra.mxu0 0
        %1157 = vmatpush.bf16.msra.mxu0 %v1148
        %1158 = vmatmul.bf16.gmra.mxu0 %v1145
        %v1159 = vpop.f32.mrf.mxu0
        %v1160 = vadd.f32 0.0, %v1159
        %v1161 = vpop.f32.mrf.mxu0
        %1162 = vdwg.mxu0
        %v1163 = vpack.c.bf16 %v1160, %v1160
        %v1164 = vld [vmem:[#allocation11 + $0x4] sm:$0xf]
        %v1166 = vsel %vm854, %v1163, 0
        %v1169 = vsel %vm1117, %v1164, 0
        %1171 = vmatpush.bf16.msra.mxu0 0
        %1172 = vmatpush.bf16.msra.mxu0 0
        %1173 = vmatpush.bf16.msra.mxu0 0
        %1174 = vmatpush.bf16.msra.mxu0 0
        %1175 = vmatpush.bf16.msra.mxu0 0
        %1176 = vmatpush.bf16.msra.mxu0 0
        %1177 = vmatpush.bf16.msra.mxu0 0
        %1178 = vmatpush.bf16.msra.mxu0 %v1169
        %1179 = vmatmul.bf16.gmra.mxu0 %v1166
        %v1180 = vpop.f32.mrf.mxu0
        %v1181 = vadd.f32 0.0, %v1180
        %v1182 = vpop.f32.mrf.mxu0
        %1183 = vdwg.mxu0
        %v1185 = vsel %vm854, %v1134, 0
        %v1188 = vsel %vm1117, %v1135, 0
        %1190 = vmatpush.bf16.msra.mxu0 0
        %1191 = vmatpush.bf16.msra.mxu0 0
        %1192 = vmatpush.bf16.msra.mxu0 0
        %1193 = vmatpush.bf16.msra.mxu0 0
        %1194 = vmatpush.bf16.msra.mxu0 0
        %1195 = vmatpush.bf16.msra.mxu0 0
        %1196 = vmatpush.bf16.msra.mxu0 0
        %1197 = vmatpush.bf16.msra.mxu0 %v1188
        %1198 = vmatmul.bf16.gmra.mxu0 %v1185
        %v1199 = vpop.f32.mrf.mxu0
        %v1200 = vadd.f32 %v1181, %v1199
        %v1201 = vpop.f32.mrf.mxu0
        %1202 = vdwg.mxu0
        %v1203 = vstv %s848
        %v1204 = vmul.f32 %v1105, %v1203
        %v1205 = vmul.f32 %v1087, %v1204
        %v1206 = vstv %s852
        %v1207 = vadd.f32 %v1205, %v1206
        %v1208 = vpack.c.bf16 %v1207, %v1207
        %1209 = vrot.lane.b32.xlu0 %v909, 80
        %v1210 = vpop.permute.xlu0 %1209
        %v1212 = vsel %vm854, %v1208, 0
        %v1215 = vsel %vm1117, %v1210, 0
        %1217 = vmatpush.bf16.msra.mxu0 0
        %1218 = vmatpush.bf16.msra.mxu0 0
        %1219 = vmatpush.bf16.msra.mxu0 0
        %1220 = vmatpush.bf16.msra.mxu0 0
        %1221 = vmatpush.bf16.msra.mxu0 0
        %1222 = vmatpush.bf16.msra.mxu0 0
        %1223 = vmatpush.bf16.msra.mxu0 0
        %1224 = vmatpush.bf16.msra.mxu0 %v1215
        %1225 = vmatmul.bf16.gmra.mxu0 %v1212
        %v1226 = vpop.f32.mrf.mxu0
        %v1227 = vadd.f32 0.0, %v1226
        %v1228 = vpop.f32.mrf.mxu0
        %1229 = vdwg.mxu0
        %v1230 = vpack.c.bf16 %v1227, %v1227
        %v1231 = vld [vmem:[#allocation11 + $0x8] sm:$0xf]
        %v1233 = vsel %vm854, %v1230, 0
        %v1236 = vsel %vm1117, %v1231, 0
        %1238 = vmatpush.bf16.msra.mxu0 0
        %1239 = vmatpush.bf16.msra.mxu0 0
        %1240 = vmatpush.bf16.msra.mxu0 0
        %1241 = vmatpush.bf16.msra.mxu0 0
        %1242 = vmatpush.bf16.msra.mxu0 0
        %1243 = vmatpush.bf16.msra.mxu0 0
        %1244 = vmatpush.bf16.msra.mxu0 0
        %1245 = vmatpush.bf16.msra.mxu0 %v1236
        %1246 = vmatmul.bf16.gmra.mxu0 %v1233
        %v1247 = vpop.f32.mrf.mxu0
        %v1248 = vadd.f32 0.0, %v1247
        %v1249 = vpop.f32.mrf.mxu0
        %1250 = vdwg.mxu0
        %v1251 = vadd.f32 %v1200, %v1248
        %v1252 = vstv %s849
        %v1253 = vmul.f32 %v1105, %v1252
        %v1254 = vmul.f32 %v1091, %v1253
        %v1255 = vstv %s853
        %v1256 = vadd.f32 %v1254, %v1255
        %v1257 = vpack.c.bf16 %v1256, %v1256
        %1258 = vrot.lane.b32.xlu0 %v909, 72
        %v1259 = vpop.permute.xlu0 %1258
        %v1261 = vsel %vm854, %v1257, 0
        %v1264 = vsel %vm1117, %v1259, 0
        %1266 = vmatpush.bf16.msra.mxu0 0
        %1267 = vmatpush.bf16.msra.mxu0 0
        %1268 = vmatpush.bf16.msra.mxu0 0
        %1269 = vmatpush.bf16.msra.mxu0 0
        %1270 = vmatpush.bf16.msra.mxu0 0
        %1271 = vmatpush.bf16.msra.mxu0 0
        %1272 = vmatpush.bf16.msra.mxu0 0
        %1273 = vmatpush.bf16.msra.mxu0 %v1264
        %1274 = vmatmul.bf16.gmra.mxu0 %v1261
        %v1275 = vpop.f32.mrf.mxu0
        %v1276 = vadd.f32 0.0, %v1275
        %v1277 = vpop.f32.mrf.mxu0
        %1278 = vdwg.mxu0
        %v1279 = vpack.c.bf16 %v1276, %v1276
        %v1280 = vld [vmem:[#allocation11 + $0xc] sm:$0xf]
        %v1282 = vsel %vm854, %v1279, 0
        %v1285 = vsel %vm1117, %v1280, 0
        %1287 = vmatpush.bf16.msra.mxu0 0
        %1288 = vmatpush.bf16.msra.mxu0 0
        %1289 = vmatpush.bf16.msra.mxu0 0
        %1290 = vmatpush.bf16.msra.mxu0 0
        %1291 = vmatpush.bf16.msra.mxu0 0
        %1292 = vmatpush.bf16.msra.mxu0 0
        %1293 = vmatpush.bf16.msra.mxu0 0
        %1294 = vmatpush.bf16.msra.mxu0 %v1285
        %1295 = vmatmul.bf16.gmra.mxu0 %v1282
        %v1296 = vpop.f32.mrf.mxu0
        %v1297 = vadd.f32 0.0, %v1296
        %v1298 = vpop.f32.mrf.mxu0
        %1299 = vdwg.mxu0
        %v1300 = vadd.f32 %v1251, %v1297
        %v1301 = vld [vmem:[%s10] sm:$0x1]
        %v1303 = vperm.slane %v1301, 0
        %v1305 = vadd.f32 %v1300, %v1303
        %v1306 = vadd.f32 %v1305, %v676
        %v1307 = vld [vmem:[%s11] sm:$0x1]
        %v1308 = vld [vmem:[%s12] sm:$0x1]
        %v1309 = vsel %vm680, %v1306, 0.0
        %1310 = vadd.xlane.f32.xlu0 %v1309
        %v1311 = vpop.xlane.xlu0 %1310
        %v1312 = vmul.f32 %v1311, %v690
        %v1313 = vsub.f32 %v1306, %v1312
        %v1314 = vmul.f32 %v1313, %v1313
        %v1315 = vsel %vm680, %v1314, 0.0
        %1316 = vadd.xlane.f32.xlu0 %v1315
        %v1317 = vpop.xlane.xlu0 %1316
        %v1318 = vmul.f32 %v1317, %v690
        %v1319 = vadd.f32 %v1318, 1e-05
        %v1320 = vrsqrt.pop %v1319
        %v1321 = vmul.f32 %v1320, %v1319
        %v1322 = vmul.f32 %v1321, %v1320
        %v1323 = vmul.f32 0.5, %v1322
        %v1324 = vsub.f32 1.5, %v1323
        %v1325 = vmul.f32 %v1320, %v1324
        %vm1326 = vweird.f32 %v1319
        %vm1327 = vweird.f32 %v1320
        %vm1328 = vmor %vm1326, %vm1327
        %v1329 = vsel %vm1328, %v1320, %v1325
        %v1330 = vmul.f32 %v1313, %v1329
        %v1332 = vperm.slane %v1307, 0
        %v1334 = vmul.f32 %v1330, %v1332
        %v1336 = vperm.slane %v1308, 0
        %v1338 = vadd.f32 %v1334, %v1336
        %v1339 = vpack.c.bf16 %v1338, %v1338
        %v1340 = vld [vmem:[#allocation13] sm:$0xf]
        %v1341 = vld [vmem:[#allocation13 + $0x4] sm:$0xf]
        %v1342 = vld [vmem:[#allocation13 + $0x8] sm:$0xf]
        %v1343 = vld [vmem:[#allocation13 + $0xc] sm:$0xf]
        %v1344 = vld [vmem:[%s14] sm:$0x1]
        %v1346 = vperm.slane %v1344, 0
        %v1352 = vunpack.c.l.b16 %v1340
        %v1353 = vunpack.c.l.b16 %v1341
        %v1354 = vunpack.c.l.b16 %v1342
        %v1355 = vunpack.c.l.b16 %v1343
        %v1356 = vpack.c.b16 %v1353, %v1352
        %v1357 = vpack.c.b16 %v1355, %v1354
        %v1361 = vsel %vm680, %v1339, 0
        %1363 = vmatpush.bf16.msra.mxu0 0
        %1364 = vmatpush.bf16.msra.mxu0 0
        %1365 = vmatpush.bf16.msra.mxu0 0
        %1366 = vmatpush.bf16.msra.mxu0 0
        %1367 = vmatpush.bf16.msra.mxu0 0
        %1368 = vmatpush.bf16.msra.mxu0 0
        %1369 = vmatpush.bf16.msra.mxu0 %v1357
        %1370 = vmatpush.bf16.msra.mxu0 %v1356
        %1371 = vmatmul.bf16.gmra.mxu0 %v1361
        %v1372 = vpop.f32.mrf.mxu0
        %v1373 = vadd.f32 %v1346, %v1372
        %v1374 = vpop.f32.mrf.mxu0
        %1375 = vdwg.mxu0
        %v1376 = vmul.f32 %v1373, 0.5
        %v1377 = vmul.f32 %v1373, 0.70710677
        %v1378 = vand.u32 2147483647, %v1377
        %v1379 = vmul.f32 %v1378, 0.3275911
        %v1380 = vadd.f32 %v1379, 1.0
        %v1381 = vrcp.pop %v1380
        %v1382 = vmul.f32 %v1381, 1.0614054
        %v1383 = vadd.f32 %v1382, -1.4531521
        %v1384 = vmul.f32 %v1383, %v1381
        %v1385 = vadd.f32 %v1384, 1.4214138
        %v1386 = vmul.f32 %v1385, %v1381
        %v1387 = vadd.f32 %v1386, -0.28449672
        %v1388 = vmul.f32 %v1387, %v1381
        %v1389 = vadd.f32 %v1388, 0.2548296
        %v1390 = vmul.f32 %v1389, %v1381
        %v1391 = vsub.f32 0.0, %v1378
        %v1392 = vmul.f32 %v1391, %v1378
        %v1393 = vmul.f32 %v1392, 1.442695
        %v1394 = vpow.pop %v1393
        %v1395 = vmul.f32 %v1390, %v1394
        %v1396 = vsub.f32 1.0, %v1395
        %vm1397 = vcmp.ge.f32.partialorder %v1377, 0.0
        %v1398 = vsub.f32 0.0, %v1396
        %v1399 = vsel %vm1397, %v1396, %v1398
        %v1400 = vadd.f32 %v1399, 1.0
        %v1401 = vmul.f32 %v1376, %v1400
        %v1402 = vpack.c.bf16 %v1401, %v1401
        %v1403 = vld [vmem:[%s15] sm:$0xf]
        %v1404 = vld [vmem:[%s15 + $0x4] sm:$0xf]
        %v1405 = vld [vmem:[%s15 + $0x8] sm:$0xf]
        %v1406 = vld [vmem:[%s15 + $0xc] sm:$0xf]
        %v1407 = vld [vmem:[%s15 + $0x10] sm:$0xf]
        %v1408 = vld [vmem:[%s15 + $0x14] sm:$0xf]
        %v1409 = vld [vmem:[%s15 + $0x18] sm:$0xf]
        %v1410 = vld [vmem:[%s15 + $0x1c] sm:$0xf]
        %v1411 = vld [vmem:[%s16] sm:$0x1]
        %v1413 = vperm.slane %v1411, 0
        %v1423 = vunpack.c.l.b16 %v1403
        %v1424 = vunpack.c.l.b16 %v1404
        %v1425 = vunpack.c.l.b16 %v1405
        %v1426 = vunpack.c.l.b16 %v1406
        %v1427 = vunpack.c.l.b16 %v1407
        %v1428 = vunpack.c.l.b16 %v1408
        %v1429 = vunpack.c.l.b16 %v1409
        %v1430 = vunpack.c.l.b16 %v1410
        %v1431 = vpack.c.b16 %v1424, %v1423
        %v1432 = vpack.c.b16 %v1426, %v1425
        %v1433 = vpack.c.b16 %v1428, %v1427
        %v1434 = vpack.c.b16 %v1430, %v1429
        %vm1439 = vcmask 523264
        %v1441 = vsel %vm1439, %v1402, 0
        %1443 = vmatpush.bf16.msra.mxu0 0
        %1444 = vmatpush.bf16.msra.mxu0 0
        %1445 = vmatpush.bf16.msra.mxu0 0
        %1446 = vmatpush.bf16.msra.mxu0 0
        %1447 = vmatpush.bf16.msra.mxu0 %v1434
        %1448 = vmatpush.bf16.msra.mxu0 %v1433
        %1449 = vmatpush.bf16.msra.mxu0 %v1432
        %1450 = vmatpush.bf16.msra.mxu0 %v1431
        %1451 = vmatmul.bf16.gmra.mxu0 %v1441
        %v1452 = vpop.f32.mrf.mxu0
        %v1453 = vadd.f32 %v1413, %v1452
        %v1454 = vpop.f32.mrf.mxu0
        %1455 = vdwg.mxu0
        %v1456 = vadd.f32 %v1453, %v1306
        %1457 = vst.msk [vmem:[%s663] sm:$0xff] %vm680, %v1456
        %s1458 = sand.u32 %s426, 1
        %s1459 = scalar_lea.sflag [#allocation5], %s1458
        %s1460 = sand.u32 %s426, 1
        %s1461 = smul.addr %s1460, 8
        %s1462 = scalar_lea.vmem [#allocation14], %s1461
        // Predicated region
        $region113: #{tpu_custom_call.1} parent=87 // pred_check
          %p1463 = pneg %p436
        $region114: #{tpu_custom_call.1} parent=87 // pred_check_branch
          %1465 = sbr.rel (%p1463) target = $region116
        $region115: #{tpu_custom_call.1} parent=87 // pred_region
          %1467 = vsyncadd %s1459, 0
          %s1468 = sadd.s32 %s40, %s39
          %s1469 = smul.addr %s1468, 8
          %s1470 = scalar_lea.hbm %s17, %s1469
          %s1472 = sshll.u32 %s1462, 4
          %s1473 = int_to_ptr.vmem [resolvable:$true] %s1472
          %s1474 = sshll.u32 %s1470, 4
          %s1475 = int_to_ptr.hbm [resolvable:$true] %s1474
          %1477 = dma.vmem_to_hbm [thread:$0]  %s1473, 128, %s1475, %s1459
        $region116: #{tpu_custom_call.1} parent=87 // pred_fallthru
          _
      $region88: #{tpu_custom_call.1} parent=5 // pred_fallthru
        _
      %p1478 = scmp.le.s32.totalorder 2, %s30
      // Predicated region
      $region117: #{tpu_custom_call.1} parent=5 // pred_check
        %p1479 = pneg %p1478
      $region118: #{tpu_custom_call.1} parent=5 // pred_check_branch
        %1481 = sbr.rel (%p1479) target = $region120
      $region119: #{tpu_custom_call.1} parent=5 // pred_region
        %s1482 = ssub.s32 %s30, 2
        // Predicated region
        $region121: #{tpu_custom_call.1} parent=119 // pred_check
          %p1483 = pneg %p442
        $region122: #{tpu_custom_call.1} parent=119 // pred_check_branch
          %1485 = sbr.rel (%p1483) target = $region124
        $region123: #{tpu_custom_call.1} parent=119 // pred_region
          %s1486 = sand.u32 %s427, 1
          %s1487 = scalar_lea.sflag [#allocation5], %s1486
          %s1488 = sand.u32 %s427, 1
          %s1489 = smul.addr %s1488, 8
          %s1490 = scalar_lea.vmem [#allocation14], %s1489
          %1492 = dma.done %s1487, 128
        $region124: #{tpu_custom_call.1} parent=119 // pred_fallthru
          _
      $region120: #{tpu_custom_call.1} parent=5 // pred_fallthru
        _
    $region6: #{tpu_custom_call.1} parent=1 // loop_footer
      %s34 = sadd.s32 1, %s30
    $region7: #{tpu_custom_call.1} parent=1 // loop_footer_branch
      %29 = sbr.rel target = $region3
    $region8: #{tpu_custom_call.1} parent=1 // loop_exit
      _
    %1493 = vsyncpa [#allocation4], 1
    %s1494 = scalar_lea.sflag [#allocation4], 1
    %1495 = vsyncpa %s1494, 1
    %1496 = vsyncpa [#allocation12], 1
    %1497 = vsyncpa [#allocation5], 1
    %s1498 = scalar_lea.sflag [#allocation5], 1
    %1499 = vsyncpa %s1498, 1
    %1500 = vsyncpa [#allocation6], 1
    %s1501 = scalar_lea.sflag [#allocation6], 1
    %1502 = vsyncpa %s1501, 1
    %1503 = vsyncpa [#allocation9], 1

</llo_original>
